<compile_context>
chip_gen: v7x
topology: tpu7x:2x2x1
jax: 0.10.0
libtpu: 0.0.40
codegen_flags: <defaults>
</compile_context>

<pallas_src>
import functools

import jax
import jax.numpy as jnp
from jax.experimental import pallas as pl
from jax.experimental.pallas import tpu as pltpu

_BN_EPS = 1e-5
_MXU_DTYPE = jnp.bfloat16          # matmul-input dtype (accumulate in f32)


# ---------------------------------------------------------------------------
# Generation-aware VMEM budgeting
# ---------------------------------------------------------------------------

def _tpu_vmem_capacity():
    try:
        cap = int(pltpu.get_tpu_info().vmem_capacity_bytes)
        if cap >= (1 << 20):
            return cap
    except Exception:
        pass
    return 128 << 20


_VMEM_PHYS = _tpu_vmem_capacity()
# v7x-class parts have 64 MiB VMEM per TC and 2 TCs per chip: a gridless fused
# call would leave one TC idle, so don't auto-fuse there.
_ASSUME_MULTI_TC = _VMEM_PHYS <= (64 << 20)
# Leave headroom for Mosaic internal scratch / semaphores / pipeline slack.
_VMEM_CAP = min((_VMEM_PHYS * 3) // 4, 100 << 20)     # ~48 MiB v7x, ~96 MiB v5e/v6e
_FUSE_VMEM_BUDGET = min(24 << 20, _VMEM_CAP // 2)


# ---------------------------------------------------------------------------
# Tiled per-layer kernels: grid = (Dout tiles, K tiles), K ("arbitrary") last
# ---------------------------------------------------------------------------

def _linear_bn_relu_kernel(x_ref, w_ref, g_ref, be_ref, o_ref, acc_ref, *,
                           eps, tk, x_resident):
    """relu(BatchNorm1d_train(x @ W)).  Full batch N lives in the block so the
    batch statistics are exact; only Dout (grid 0) and Din (grid 1) are tiled."""
    k = pl.program_id(1)

    @pl.when(k == 0)
    def _():
        acc_ref[...] = jnp.zeros_like(acc_ref)

    if x_resident:
        start = pl.multiple_of(k * tk, tk)
        x_blk = x_ref[:, pl.ds(start, tk)]
    else:
        x_blk = x_ref[...]
    acc_ref[...] += jnp.dot(x_blk, w_ref[...],
                            preferred_element_type=jnp.float32)

    @pl.when(k == pl.num_programs(1) - 1)
    def _():
        acc = acc_ref[...]                                    # (N, tn) f32
        inv_n = 1.0 / acc.shape[0]
        mean = jnp.sum(acc, axis=0, keepdims=True) * inv_n
        ex2 = jnp.sum(acc * acc, axis=0, keepdims=True) * inv_n
        var = jnp.maximum(ex2 - mean * mean, 0.0)             # biased (train)
        # NB: the Linear bias cancels exactly under train-mode BN
        #     ((y+b) - mean(y+b) == y - mean(y)), so it is folded away.
        scale = g_ref[...] * jax.lax.rsqrt(var + eps)         # (1, tn)
        out = (acc - mean) * scale + be_ref[...]
        o_ref[...] = jnp.maximum(out, 0.0).astype(o_ref.dtype)


def _linear_kernel(x_ref, w_ref, b_ref, o_ref, acc_ref, *, tk, x_resident):
    """Plain  x @ W + b  (last Expander layer)."""
    k = pl.program_id(1)

    @pl.when(k == 0)
    def _():
        acc_ref[...] = jnp.zeros_like(acc_ref)

    if x_resident:
        start = pl.multiple_of(k * tk, tk)
        x_blk = x_ref[:, pl.ds(start, tk)]
    else:
        x_blk = x_ref[...]
    acc_ref[...] += jnp.dot(x_blk, w_ref[...],
                            preferred_element_type=jnp.float32)

    @pl.when(k == pl.num_programs(1) - 1)
    def _():
        o_ref[...] = (acc_ref[...] + b_ref[...]).astype(o_ref.dtype)


# ---------------------------------------------------------------------------
# Fully fused kernel (whole network in one pallas_call; single-TC generations)
# ---------------------------------------------------------------------------

def _fused_expander_kernel(*refs, n_layers, eps):
    # refs = [x, (w, gamma, beta) * (n_layers-1), w_last, b_last, out]
    x = refs[0][...].astype(_MXU_DTYPE)
    idx = 1
    for _ in range(n_layers - 1):
        w_ref, g_ref, be_ref = refs[idx], refs[idx + 1], refs[idx + 2]
        idx += 3
        y = jnp.dot(x, w_ref[...], preferred_element_type=jnp.float32)
        inv_n = 1.0 / y.shape[0]
        mean = jnp.sum(y, axis=0, keepdims=True) * inv_n
        ex2 = jnp.sum(y * y, axis=0, keepdims=True) * inv_n
        var = jnp.maximum(ex2 - mean * mean, 0.0)
        scale = g_ref[...] * jax.lax.rsqrt(var + eps)
        x = jnp.maximum((y - mean) * scale + be_ref[...], 0.0).astype(_MXU_DTYPE)
    w_ref, b_ref, o_ref = refs[idx], refs[idx + 1], refs[idx + 2]
    y = jnp.dot(x, w_ref[...], preferred_element_type=jnp.float32) + b_ref[...]
    o_ref[...] = y.astype(o_ref.dtype)


# ---------------------------------------------------------------------------
# Tiling / VMEM planning
# ---------------------------------------------------------------------------

def _pick_tile(dim, target):
    """Largest MXU-friendly tile <= target that divides dim.

    Prefers 256-multiples (v6e/v7x MXU is 256 wide), then 128-multiples.
    Falls back to the full dimension (single tile) for odd sizes."""
    if dim <= target:
        return dim
    for base in (256, 128):
        t = (target // base) * base
        while t >= base:
            if dim % t == 0:
                return t
            t -= base
    return dim


def _vmem_need(n, d_in, tk, tn, out_bytes, x_resident):
    in_b = jnp.dtype(_MXU_DTYPE).itemsize
    x_bytes = 2 * n * (d_in if x_resident else tk) * in_b   # (conservatively 2-buf)
    w_bytes = 2 * tk * tn * in_b                            # double-buffered weights
    o_bytes = 2 * n * tn * out_bytes                        # double-buffered output
    acc_bytes = n * tn * 4                                  # f32 accumulator scratch
    vec_bytes = 2 * 2 * tn * 4                              # per-feature vectors
    return x_bytes + w_bytes + o_bytes + acc_bytes + vec_bytes + (2 << 20)


def _plan_tiles(n, d_in, d_out, block_n, block_k, out_bytes):
    tn = _pick_tile(d_out, block_n)
    tk = _pick_tile(d_in, block_k)
    # Keep the activation panel resident in VMEM when it comfortably fits so it
    # is DMA'd from HBM exactly once (not once per Dout tile).
    x_resident = (2 * n * d_in * jnp.dtype(_MXU_DTYPE).itemsize) <= (_VMEM_CAP // 3)
    # If the plan exceeds the VMEM cap, shrink tn first (weights still read once).
    while (_vmem_need(n, d_in, tk, tn, out_bytes, x_resident) > _VMEM_CAP
           and tn > 256):
        new_tn = _pick_tile(d_out, tn // 2)
        if new_tn >= tn:
            break
        tn = new_tn
    if _vmem_need(n, d_in, tk, tn, out_bytes, x_resident) > _VMEM_CAP:
        x_resident = False
    return tn, tk, x_resident


def _vmem_limit_bytes(n, d_in, tk, tn, out_bytes, x_resident):
    need = _vmem_need(n, d_in, tk, tn, out_bytes, x_resident)
    return int(min(_VMEM_CAP, max(32 << 20, need)))


# ---------------------------------------------------------------------------
# Wrappers
# ---------------------------------------------------------------------------

def _tiled_call(kernel_factory, x, w, vecs, out_dtype, block_n, block_k):
    n, d_in = x.shape
    d_out = w.shape[1]
    out_bytes = jnp.dtype(out_dtype).itemsize

    tn, tk, x_resident = _plan_tiles(n, d_in, d_out, block_n, block_k, out_bytes)
    grid = (d_out // tn, d_in // tk)

    # Weights arrive pre-cast (prepare_expander_params); these casts are no-ops
    # then.  Only the very first activation panel is ever cast here.
    xm = x if x.dtype == _MXU_DTYPE else x.astype(_MXU_DTYPE)
    wm = w if w.dtype == _MXU_DTYPE else w.astype(_MXU_DTYPE)
    vec2 = [jnp.asarray(v, jnp.float32).reshape(1, d_out) for v in vecs]

    if x_resident:
        x_spec = pl.BlockSpec((n, d_in), lambda j, k: (0, 0))   # resident: no re-DMA
    else:
        x_spec = pl.BlockSpec((n, tk), lambda j, k: (0, k))

    in_specs = [x_spec, pl.BlockSpec((tk, tn), lambda j, k: (k, j))]
    in_specs += [pl.BlockSpec((1, tn), lambda j, k: (0, j)) for _ in vec2]

    cost = pl.CostEstimate(
        flops=2 * n * d_in * d_out,
        transcendentals=0,
        bytes_accessed=int((n * d_in + d_in * d_out) * 2
                           + n * d_out * out_bytes
                           + sum(v.size for v in vec2) * 4))

    return pl.pallas_call(
        kernel_factory(tk, x_resident),
        out_shape=jax.ShapeDtypeStruct((n, d_out), out_dtype),
        grid_spec=pltpu.PrefetchScalarGridSpec(
            num_scalar_prefetch=0,
            grid=grid,
            in_specs=in_specs,
            out_specs=pl.BlockSpec((n, tn), lambda j, k: (0, j)),
            scratch_shapes=[pltpu.VMEM((n, tn), jnp.float32)],
        ),
        compiler_params=pltpu.CompilerParams(
            dimension_semantics=("parallel", "arbitrary"),
            vmem_limit_bytes=_vmem_limit_bytes(n, d_in, tk, tn, out_bytes,
                                               x_resident),
        ),
        cost_estimate=cost,
    )(xm, wm, *vec2)


def linear_bn_relu(x, w, gamma, beta, *, out_dtype=None, block_n=512,
                   block_k=512, eps=_BN_EPS):
    out_dtype = out_dtype if out_dtype is not None else x.dtype

    def factory(tk, x_resident):
        return functools.partial(_linear_bn_relu_kernel, eps=eps, tk=tk,
                                 x_resident=x_resident)

    return _tiled_call(factory, x, w, (gamma, beta), out_dtype, block_n, block_k)


def linear(x, w, b, *, out_dtype=None, block_n=512, block_k=512):
    out_dtype = out_dtype if out_dtype is not None else jnp.float32

    def factory(tk, x_resident):
        return functools.partial(_linear_kernel, tk=tk, x_resident=x_resident)

    return _tiled_call(factory, x, w, (b,), out_dtype, block_n, block_k)


def _full_spec(shape):
    nd = len(shape)
    return pl.BlockSpec(shape, lambda *_: (0,) * nd)


def _fused_vmem_estimate(prepared, x):
    n = x.shape[0]
    total = n * x.shape[1] * 2                       # bf16 input activation
    for (w, b, g, be) in prepared:
        total += w.size * 2                          # bf16 weight
        total += (b.size + g.size + be.size) * 4
        total += n * w.shape[1] * (4 + 2)            # f32 act + bf16 copy
    total += n * prepared[-1][0].shape[1] * 4        # output
    return total


def fused_expander(prepared, x, *, eps=_BN_EPS):
    n = x.shape[0]
    d_out = prepared[-1][0].shape[1]
    n_layers = len(prepared)

    ops = [x if x.dtype == _MXU_DTYPE else x.astype(_MXU_DTYPE)]
    for i, (w, b, gamma, beta) in enumerate(prepared):
        if i < n_layers - 1:
            ops.extend([w, gamma, beta])
        else:
            ops.extend([w, b])
    in_specs = [_full_spec(o.shape) for o in ops]

    est = _fused_vmem_estimate(prepared, x)
    return pl.pallas_call(
        functools.partial(_fused_expander_kernel, n_layers=n_layers, eps=eps),
        out_shape=jax.ShapeDtypeStruct((n, d_out), x.dtype),
        in_specs=in_specs,
        out_specs=_full_spec((n, d_out)),
        compiler_params=pltpu.CompilerParams(
            vmem_limit_bytes=int(min(_VMEM_CAP, max(32 << 20, int(1.5 * est)))),
        ),
    )(*ops)


# ---------------------------------------------------------------------------
# Expander module (parameter init + one-time prep + forward composition)
# ---------------------------------------------------------------------------

def init_expander_params(key, input_dim, exp_dims):
    """nn.Linear default init (uniform +-1/sqrt(fan_in)); BN gamma=1, beta=0."""
    if not isinstance(exp_dims, (list, tuple)):
        exp_dims = [exp_dims]
    params = []
    d_in = input_dim
    for ex in exp_dims:
        key, kw, kb = jax.random.split(key, 3)
        bound = 1.0 / jnp.sqrt(jnp.float32(d_in))
        w = jax.random.uniform(kw, (d_in, ex), jnp.float32, -bound, bound)
        b = jax.random.uniform(kb, (ex,), jnp.float32, -bound, bound)
        gamma = jnp.ones((ex,), jnp.float32)
        beta = jnp.zeros((ex,), jnp.float32)
        params.append((w, b, gamma, beta))
        d_in = ex
    return params


def prepare_expander_params(params):
    """One-time (per training step / per weight update) prep: cast Linear
    weights to bf16 once and lay the per-feature vectors out as lane-dense
    (1, D) f32 rows — removes the per-forward f32->bf16 weight HBM pass."""
    prepared = []
    for (w, b, gamma, beta) in params:
        prepared.append((
            w.astype(_MXU_DTYPE),
            b.reshape(1, -1).astype(jnp.float32),
            gamma.reshape(1, -1).astype(jnp.float32),
            beta.reshape(1, -1).astype(jnp.float32),
        ))
    return prepared


def expander_forward(prepared, x, *, fuse=None, block_n=512, block_k=512):
    """Linear+BN+ReLU for all layers except the last, plain Linear last."""
    n_layers = len(prepared)
    if fuse is None:
        # Gridless fused call runs on a single TensorCore: only auto-fuse on
        # single-TC generations (v5e/v6e); on v7x prefer the Dout-parallel
        # tiled path, which shards across both cores.
        fuse = (not _ASSUME_MULTI_TC) and \
            _fused_vmem_estimate(prepared, x) <= _FUSE_VMEM_BUDGET
    if fuse:
        return fused_expander(prepared, x)

    h = x
    final_dtype = x.dtype
    for i, (w, b, gamma, beta) in enumerate(prepared):
        if i < n_layers - 1:
            # Intermediate activations in bf16: next matmul consumes bf16,
            # halving the activation HBM round trip.
            h = linear_bn_relu(h, w, gamma, beta, out_dtype=_MXU_DTYPE,
                               block_n=block_n, block_k=block_k)
        else:
            h = linear(h, w, b, out_dtype=final_dtype,
                       block_n=block_n, block_k=block_k)
    return h


def expander_reference(params, x, *, matmul_dtype=jnp.float32):
    """Pure-JAX reference (optionally with the same bf16 matmul inputs)."""
    n_layers = len(params)
    h = x
    for i, (w, b, gamma, beta) in enumerate(params):
        y = jnp.dot(h.astype(matmul_dtype), w.astype(matmul_dtype),
                    preferred_element_type=jnp.float32) + b
        if i < n_layers - 1:
            mean = jnp.mean(y, axis=0, keepdims=True)
            var = jnp.mean(jnp.square(y - mean), axis=0, keepdims=True)
            y = (y - mean) * jax.lax.rsqrt(var + _BN_EPS) * gamma + beta
            y = jnp.maximum(y, 0.0)
        h = y
    return h


if __name__ == "__main__":
    key = jax.random.PRNGKey(0)
    k_x, k_p = jax.random.split(key)

    batch, input_dim = 128, 256          # lane/sublane-friendly small shapes
    exp_dims = [512, 384, 256]           # Lin+BN+ReLU, Lin+BN+ReLU, final Lin

    x = jax.random.normal(k_x, (batch, input_dim), jnp.float32)
    params = init_expander_params(k_p, input_dim, exp_dims)
    prepared = prepare_expander_params(params)     # bf16 weight cast: once, here

    fwd_auto = jax.jit(expander_forward)
    fwd_fused = jax.jit(functools.partial(expander_forward, fuse=True))
    fwd_tiled = jax.jit(functools.partial(expander_forward, fuse=False,
                                          block_n=256, block_k=256))

    out_auto = jax.block_until_ready(fwd_auto(prepared, x))
    out_fused = jax.block_until_ready(fwd_fused(prepared, x))
    out_tiled = jax.block_until_ready(fwd_tiled(prepared, x))

    ref_bf16 = expander_reference(params, x, matmul_dtype=jnp.bfloat16)
    ref_f32 = expander_reference(params, x, matmul_dtype=jnp.float32)

    for name, out in (("auto", out_auto), ("fused", out_fused),
                      ("tiled", out_tiled)):
        assert out.shape == (batch, exp_dims[-1]), (name, out.shape)
        # Tight check vs a reference using the same bf16 matmul inputs.
        assert jnp.allclose(out, ref_bf16, atol=5e-3, rtol=5e-3), \
            f"{name} kernel mismatch vs bf16 reference"
        # Loose sanity check vs full-f32 (PyTorch-semantics) reference.
        assert jnp.allclose(out, ref_f32, atol=1e-1, rtol=1e-1), \
            f"{name} kernel diverges from f32 reference"

    print("KERNEL_OK")
</pallas_src>

<mosaic_0001>
module attributes {stable_mosaic.version = 11 : i64} {
  func.func @_fused_expander_kernel(%arg0: memref<128x256xbf16, #tpu.memory_space<vmem>>, %arg1: memref<256x512xbf16, #tpu.memory_space<vmem>>, %arg2: memref<1x512xf32, #tpu.memory_space<vmem>>, %arg3: memref<1x512xf32, #tpu.memory_space<vmem>>, %arg4: memref<512x384xbf16, #tpu.memory_space<vmem>>, %arg5: memref<1x384xf32, #tpu.memory_space<vmem>>, %arg6: memref<1x384xf32, #tpu.memory_space<vmem>>, %arg7: memref<384x256xbf16, #tpu.memory_space<vmem>>, %arg8: memref<1x256xf32, #tpu.memory_space<vmem>>, %arg9: memref<128x256xf32, #tpu.memory_space<vmem>>) attributes {dimension_semantics = [], scalar_prefetch = 0 : i64, scratch_operands = 0 : i64, tpu.core_type = #tpu.core_type<tc>} {
    %c0 = arith.constant 0 : index
    %c0_0 = arith.constant 0 : index
    %0 = vector.load %arg0[%c0, %c0_0] : memref<128x256xbf16, #tpu.memory_space<vmem>>, vector<128x256xbf16>
    %c0_1 = arith.constant 0 : index
    %c0_2 = arith.constant 0 : index
    %1 = vector.load %arg1[%c0_1, %c0_2] : memref<256x512xbf16, #tpu.memory_space<vmem>>, vector<256x512xbf16>
    %cst = arith.constant dense<0.000000e+00> : vector<128x512xf32>
    %2 = tpu.matmul %0, %1, %cst {dimension_numbers = #tpu.dot_dimension_numbers<[1], [0], [0], [1], [0, 0, 1, 1], [], []>} : vector<128x256xbf16>, vector<256x512xbf16>, vector<128x512xf32> -> vector<128x512xf32>
    %cst_3 = arith.constant dense<0.000000e+00> : vector<512xf32>
    %3 = vector.multi_reduction <add>, %2, %cst_3 [0] : vector<128x512xf32> to vector<512xf32>
    %4 = vector.shape_cast %3 : vector<512xf32> to vector<1x512xf32>
    %cst_4 = arith.constant 7.812500e-03 : f32
    %5 = vector.broadcast %cst_4 : f32 to vector<1x512xf32>
    %6 = arith.mulf %4, %5 : vector<1x512xf32>
    %7 = arith.mulf %2, %2 : vector<128x512xf32>
    %cst_5 = arith.constant dense<0.000000e+00> : vector<512xf32>
    %8 = vector.multi_reduction <add>, %7, %cst_5 [0] : vector<128x512xf32> to vector<512xf32>
    %9 = vector.shape_cast %8 : vector<512xf32> to vector<1x512xf32>
    %cst_6 = arith.constant 7.812500e-03 : f32
    %10 = vector.broadcast %cst_6 : f32 to vector<1x512xf32>
    %11 = arith.mulf %9, %10 : vector<1x512xf32>
    %12 = arith.mulf %6, %6 : vector<1x512xf32>
    %13 = arith.subf %11, %12 : vector<1x512xf32>
    %cst_7 = arith.constant 0.000000e+00 : f32
    %14 = vector.broadcast %cst_7 : f32 to vector<1x512xf32>
    %15 = arith.maximumf %13, %14 : vector<1x512xf32>
    %c0_8 = arith.constant 0 : index
    %c0_9 = arith.constant 0 : index
    %16 = vector.load %arg2[%c0_8, %c0_9] : memref<1x512xf32, #tpu.memory_space<vmem>>, vector<1x512xf32>
    %cst_10 = arith.constant 9.99999974E-6 : f32
    %17 = vector.broadcast %cst_10 : f32 to vector<1x512xf32>
    %18 = arith.addf %15, %17 : vector<1x512xf32>
    %19 = math.rsqrt %18 : vector<1x512xf32>
    %20 = arith.mulf %16, %19 : vector<1x512xf32>
    %21 = vector.broadcast %6 : vector<1x512xf32> to vector<128x512xf32>
    %22 = arith.subf %2, %21 : vector<128x512xf32>
    %23 = vector.broadcast %20 : vector<1x512xf32> to vector<128x512xf32>
    %24 = arith.mulf %22, %23 : vector<128x512xf32>
    %c0_11 = arith.constant 0 : index
    %c0_12 = arith.constant 0 : index
    %25 = vector.load %arg3[%c0_11, %c0_12] : memref<1x512xf32, #tpu.memory_space<vmem>>, vector<1x512xf32>
    %26 = vector.broadcast %25 : vector<1x512xf32> to vector<128x512xf32>
    %27 = arith.addf %24, %26 : vector<128x512xf32>
    %cst_13 = arith.constant 0.000000e+00 : f32
    %28 = vector.broadcast %cst_13 : f32 to vector<128x512xf32>
    %29 = arith.maximumf %27, %28 : vector<128x512xf32>
    %30 = arith.truncf %29 : vector<128x512xf32> to vector<128x512xbf16>
    %c0_14 = arith.constant 0 : index
    %c0_15 = arith.constant 0 : index
    %31 = vector.load %arg4[%c0_14, %c0_15] : memref<512x384xbf16, #tpu.memory_space<vmem>>, vector<512x384xbf16>
    %cst_16 = arith.constant dense<0.000000e+00> : vector<128x384xf32>
    %32 = tpu.matmul %30, %31, %cst_16 {dimension_numbers = #tpu.dot_dimension_numbers<[1], [0], [0], [1], [0, 0, 1, 1], [], []>} : vector<128x512xbf16>, vector<512x384xbf16>, vector<128x384xf32> -> vector<128x384xf32>
    %cst_17 = arith.constant dense<0.000000e+00> : vector<384xf32>
    %33 = vector.multi_reduction <add>, %32, %cst_17 [0] : vector<128x384xf32> to vector<384xf32>
    %34 = vector.shape_cast %33 : vector<384xf32> to vector<1x384xf32>
    %cst_18 = arith.constant 7.812500e-03 : f32
    %35 = vector.broadcast %cst_18 : f32 to vector<1x384xf32>
    %36 = arith.mulf %34, %35 : vector<1x384xf32>
    %37 = arith.mulf %32, %32 : vector<128x384xf32>
    %cst_19 = arith.constant dense<0.000000e+00> : vector<384xf32>
    %38 = vector.multi_reduction <add>, %37, %cst_19 [0] : vector<128x384xf32> to vector<384xf32>
    %39 = vector.shape_cast %38 : vector<384xf32> to vector<1x384xf32>
    %cst_20 = arith.constant 7.812500e-03 : f32
    %40 = vector.broadcast %cst_20 : f32 to vector<1x384xf32>
    %41 = arith.mulf %39, %40 : vector<1x384xf32>
    %42 = arith.mulf %36, %36 : vector<1x384xf32>
    %43 = arith.subf %41, %42 : vector<1x384xf32>
    %cst_21 = arith.constant 0.000000e+00 : f32
    %44 = vector.broadcast %cst_21 : f32 to vector<1x384xf32>
    %45 = arith.maximumf %43, %44 : vector<1x384xf32>
    %c0_22 = arith.constant 0 : index
    %c0_23 = arith.constant 0 : index
    %46 = vector.load %arg5[%c0_22, %c0_23] : memref<1x384xf32, #tpu.memory_space<vmem>>, vector<1x384xf32>
    %cst_24 = arith.constant 9.99999974E-6 : f32
    %47 = vector.broadcast %cst_24 : f32 to vector<1x384xf32>
    %48 = arith.addf %45, %47 : vector<1x384xf32>
    %49 = math.rsqrt %48 : vector<1x384xf32>
    %50 = arith.mulf %46, %49 : vector<1x384xf32>
    %51 = vector.broadcast %36 : vector<1x384xf32> to vector<128x384xf32>
    %52 = arith.subf %32, %51 : vector<128x384xf32>
    %53 = vector.broadcast %50 : vector<1x384xf32> to vector<128x384xf32>
    %54 = arith.mulf %52, %53 : vector<128x384xf32>
    %c0_25 = arith.constant 0 : index
    %c0_26 = arith.constant 0 : index
    %55 = vector.load %arg6[%c0_25, %c0_26] : memref<1x384xf32, #tpu.memory_space<vmem>>, vector<1x384xf32>
    %56 = vector.broadcast %55 : vector<1x384xf32> to vector<128x384xf32>
    %57 = arith.addf %54, %56 : vector<128x384xf32>
    %cst_27 = arith.constant 0.000000e+00 : f32
    %58 = vector.broadcast %cst_27 : f32 to vector<128x384xf32>
    %59 = arith.maximumf %57, %58 : vector<128x384xf32>
    %60 = arith.truncf %59 : vector<128x384xf32> to vector<128x384xbf16>
    %c0_28 = arith.constant 0 : index
    %c0_29 = arith.constant 0 : index
    %61 = vector.load %arg7[%c0_28, %c0_29] : memref<384x256xbf16, #tpu.memory_space<vmem>>, vector<384x256xbf16>
    %cst_30 = arith.constant dense<0.000000e+00> : vector<128x256xf32>
    %62 = tpu.matmul %60, %61, %cst_30 {dimension_numbers = #tpu.dot_dimension_numbers<[1], [0], [0], [1], [0, 0, 1, 1], [], []>} : vector<128x384xbf16>, vector<384x256xbf16>, vector<128x256xf32> -> vector<128x256xf32>
    %c0_31 = arith.constant 0 : index
    %c0_32 = arith.constant 0 : index
    %63 = vector.load %arg8[%c0_31, %c0_32] : memref<1x256xf32, #tpu.memory_space<vmem>>, vector<1x256xf32>
    %64 = vector.broadcast %63 : vector<1x256xf32> to vector<128x256xf32>
    %65 = arith.addf %62, %64 : vector<128x256xf32>
    %c0_33 = arith.constant 0 : index
    %c0_34 = arith.constant 0 : index
    %66 = vector.load %arg9[%c0_33, %c0_34] : memref<128x256xf32, #tpu.memory_space<vmem>>, vector<128x256xf32>
    tpu.vector_store %arg9[%c0_33, %c0_34], %65 {strides = array<i32>} : memref<128x256xf32, #tpu.memory_space<vmem>>, vector<128x256xf32>,
    return
  }
}

</mosaic_0001>

<llo_original>
// kernel: expander_forward.1
$region0: #{expander_forward.1}
  #allocation0 [shape = 'u32[]', space=smem, size = 0x4, offset = 0x4, fixed_abs, tag = 'smem constant byte address 0x4 - core index']
  #allocation1 [shape = 'u32[144,128]{1,0:T(1,128)}', space=vmem, size = 0x12000, scoped, tag = 'internal scratch']
  %s0 = inlined_call_operand.vmem [shape: bf16[128,256], index: 0, kind: input, shape index: {}]
  %s1 = inlined_call_operand.hbm [shape: bf16[256,512], index: 1, kind: input, shape index: {}]
  %s2 = inlined_call_operand.vmem [shape: f32[1,512], index: 2, kind: input, shape index: {}]
  %s3 = inlined_call_operand.vmem [shape: f32[1,512], index: 3, kind: input, shape index: {}]
  %s4 = inlined_call_operand.hbm [shape: bf16[512,384], index: 4, kind: input, shape index: {}]
  %s5 = inlined_call_operand.vmem [shape: f32[1,384], index: 5, kind: input, shape index: {}]
  %s6 = inlined_call_operand.vmem [shape: f32[1,384], index: 6, kind: input, shape index: {}]
  %s7 = inlined_call_operand.vmem [shape: bf16[384,256], index: 7, kind: input, shape index: {}]
  %s8 = inlined_call_operand.vmem [shape: f32[1,256], index: 8, kind: input, shape index: {}]
  %s9 = inlined_call_operand.hbm [shape: f32[128,256], index: 9, kind: output, shape index: {}]
  %s10 = sld [smem:[#allocation0]]
  $region54: #{expander_forward.1} parent=0
    _
  %s12 = ssub.s32 1, %s10
  %s13 = scalar_select 0, %s12, %s10
  $region1: #{expander_forward.1} parent=0
    #allocation2 [shape = 'u8[262144]{0}', space=vmem, size = 0x40000, scoped, tag = 'input window, operand 1, single buffered']
    #allocation3 [shape = 's32[1]{0}', space=sflag, size = 0x4, scoped, tag = 'scoped memory for expander_forward.1']
    #allocation4 [shape = 's32[1]{0}', space=sflag, size = 0x4, scoped, tag = 'scoped memory for expander_forward.1']
    #allocation5 [shape = 'u8[393216]{0}', space=vmem, size = 0x60000, scoped, tag = 'input window, operand 4, single buffered']
    #allocation6 [shape = 's32[1]{0}', space=sflag, size = 0x4, scoped, tag = 'scoped memory for expander_forward.1']
    #allocation7 [shape = 'u8[131072]{0}', space=vmem, size = 0x20000, scoped, tag = 'output window, operand 0, single buffered']
    %14 = vsyncpa [#allocation3], 0
    %15 = vsyncpa [#allocation6], 0
    %16 = vsyncpa [#allocation4], 0
    // Predicated region
    $region2: #{expander_forward.1} parent=1 // pred_check
      _
    $region3: #{expander_forward.1} parent=1 // pred_check_branch
      %18 = sbr.rel (0) target = $region5
    $region4: #{expander_forward.1} parent=1 // pred_region
      _
    $region5: #{expander_forward.1} parent=1 // pred_fallthru
      _
    // Predicated region
    $region6: #{expander_forward.1} parent=1 // pred_check
      _
    $region7: #{expander_forward.1} parent=1 // pred_check_branch
      %20 = sbr.rel (0) target = $region9
    $region8: #{expander_forward.1} parent=1 // pred_region
      %s22 = ssub.s32 8192, 8192
      %23 = vsyncadd [#allocation3], %s22
      %s24 = sshll.u32 [#allocation2], 4
      %s25 = int_to_ptr.vmem [resolvable:$true] %s24
      %30 = dma.hbm_to_vmem [thread:$0]  %s1, 8192, %s25, [#allocation3], 256, 256, 16
    $region9: #{expander_forward.1} parent=1 // pred_fallthru
      _
    // Predicated region
    $region10: #{expander_forward.1} parent=1 // pred_check
      _
    $region11: #{expander_forward.1} parent=1 // pred_check_branch
      %32 = sbr.rel (0) target = $region13
    $region12: #{expander_forward.1} parent=1 // pred_region
      _
    $region13: #{expander_forward.1} parent=1 // pred_fallthru
      _
    // Predicated region
    $region14: #{expander_forward.1} parent=1 // pred_check
      _
    $region15: #{expander_forward.1} parent=1 // pred_check_branch
      %34 = sbr.rel (0) target = $region17
    $region16: #{expander_forward.1} parent=1 // pred_region
      _
    $region17: #{expander_forward.1} parent=1 // pred_fallthru
      _
    // Predicated region
    $region18: #{expander_forward.1} parent=1 // pred_check
      _
    $region19: #{expander_forward.1} parent=1 // pred_check_branch
      %36 = sbr.rel (0) target = $region21
    $region20: #{expander_forward.1} parent=1 // pred_region
      %s38 = ssub.s32 12288, 12288
      %39 = vsyncadd [#allocation6], %s38
      %s40 = sshll.u32 [#allocation5], 4
      %s41 = int_to_ptr.vmem [resolvable:$true] %s40
      %46 = dma.hbm_to_vmem [thread:$0]  %s4, 12288, %s41, [#allocation6], 192, 192, 12
    $region21: #{expander_forward.1} parent=1 // pred_fallthru
      _
    // Predicated region
    $region22: #{expander_forward.1} parent=1 // pred_check
      _
    $region23: #{expander_forward.1} parent=1 // pred_check_branch
      %48 = sbr.rel (0) target = $region25
    $region24: #{expander_forward.1} parent=1 // pred_region
      _
    $region25: #{expander_forward.1} parent=1 // pred_fallthru
      _
    // Predicated region
    $region26: #{expander_forward.1} parent=1 // pred_check
      _
    $region27: #{expander_forward.1} parent=1 // pred_check_branch
      %50 = sbr.rel (0) target = $region29
    $region28: #{expander_forward.1} parent=1 // pred_region
      _
    $region29: #{expander_forward.1} parent=1 // pred_fallthru
      _
    // Predicated region
    $region30: #{expander_forward.1} parent=1 // pred_check
      _
    $region31: #{expander_forward.1} parent=1 // pred_check_branch
      %52 = sbr.rel (0) target = $region33
    $region32: #{expander_forward.1} parent=1 // pred_region
      _
    $region33: #{expander_forward.1} parent=1 // pred_fallthru
      _
    // Predicated region
    $region34: #{expander_forward.1} parent=1 // pred_check
      _
    $region35: #{expander_forward.1} parent=1 // pred_check_branch
      %54 = sbr.rel (0) target = $region37
    $region36: #{expander_forward.1} parent=1 // pred_region
      _
    $region37: #{expander_forward.1} parent=1 // pred_fallthru
      _
    // Predicated region
    $region38: #{expander_forward.1} parent=1 // pred_check
      _
    $region39: #{expander_forward.1} parent=1 // pred_check_branch
      %56 = sbr.rel (0) target = $region41
    $region40: #{expander_forward.1} parent=1 // pred_region
      %57 = dma.done [#allocation3], 8192
    $region41: #{expander_forward.1} parent=1 // pred_fallthru
      _
    // Predicated region
    $region42: #{expander_forward.1} parent=1 // pred_check
      _
    $region43: #{expander_forward.1} parent=1 // pred_check_branch
      %59 = sbr.rel (0) target = $region45
    $region44: #{expander_forward.1} parent=1 // pred_region
      %60 = dma.done [#allocation6], 12288
    $region45: #{expander_forward.1} parent=1 // pred_fallthru
      _
    %v62 = vld [vmem:[%s0] sm:$0xff]
    %v63 = vld [vmem:[%s0 + $0x8] sm:$0xff]
    %v64 = vld [vmem:[%s0 + $0x10] sm:$0xff]
    %v65 = vld [vmem:[%s0 + $0x18] sm:$0xff]
    %v66 = vld [vmem:[%s0 + $0x20] sm:$0xff]
    %v67 = vld [vmem:[%s0 + $0x28] sm:$0xff]
    %v68 = vld [vmem:[%s0 + $0x30] sm:$0xff]
    %v69 = vld [vmem:[%s0 + $0x38] sm:$0xff]
    %v70 = vld [vmem:[%s0 + $0x40] sm:$0xff]
    %v71 = vld [vmem:[%s0 + $0x48] sm:$0xff]
    %v72 = vld [vmem:[%s0 + $0x50] sm:$0xff]
    %v73 = vld [vmem:[%s0 + $0x58] sm:$0xff]
    %v74 = vld [vmem:[%s0 + $0x60] sm:$0xff]
    %v75 = vld [vmem:[%s0 + $0x68] sm:$0xff]
    %v76 = vld [vmem:[%s0 + $0x70] sm:$0xff]
    %v77 = vld [vmem:[%s0 + $0x78] sm:$0xff]
    %v78 = vld [vmem:[#allocation2] sm:$0xff]
    %v79 = vld [vmem:[#allocation2 + $0x8] sm:$0xff]
    %v80 = vld [vmem:[#allocation2 + $0x10] sm:$0xff]
    %v81 = vld [vmem:[#allocation2 + $0x18] sm:$0xff]
    %v82 = vld [vmem:[#allocation2 + $0x20] sm:$0xff]
    %v83 = vld [vmem:[#allocation2 + $0x28] sm:$0xff]
    %v84 = vld [vmem:[#allocation2 + $0x30] sm:$0xff]
    %v85 = vld [vmem:[#allocation2 + $0x38] sm:$0xff]
    %v86 = vld [vmem:[#allocation2 + $0x40] sm:$0xff]
    %v87 = vld [vmem:[#allocation2 + $0x48] sm:$0xff]
    %v88 = vld [vmem:[#allocation2 + $0x50] sm:$0xff]
    %v89 = vld [vmem:[#allocation2 + $0x58] sm:$0xff]
    %v90 = vld [vmem:[#allocation2 + $0x60] sm:$0xff]
    %v91 = vld [vmem:[#allocation2 + $0x68] sm:$0xff]
    %v92 = vld [vmem:[#allocation2 + $0x70] sm:$0xff]
    %v93 = vld [vmem:[#allocation2 + $0x78] sm:$0xff]
    %v94 = vld [vmem:[#allocation2 + $0x80] sm:$0xff]
    %v95 = vld [vmem:[#allocation2 + $0x88] sm:$0xff]
    %v96 = vld [vmem:[#allocation2 + $0x90] sm:$0xff]
    %v97 = vld [vmem:[#allocation2 + $0x98] sm:$0xff]
    %v98 = vld [vmem:[#allocation2 + $0xa0] sm:$0xff]
    %v99 = vld [vmem:[#allocation2 + $0xa8] sm:$0xff]
    %v100 = vld [vmem:[#allocation2 + $0xb0] sm:$0xff]
    %v101 = vld [vmem:[#allocation2 + $0xb8] sm:$0xff]
    %v102 = vld [vmem:[#allocation2 + $0xc0] sm:$0xff]
    %v103 = vld [vmem:[#allocation2 + $0xc8] sm:$0xff]
    %v104 = vld [vmem:[#allocation2 + $0xd0] sm:$0xff]
    %v105 = vld [vmem:[#allocation2 + $0xd8] sm:$0xff]
    %v106 = vld [vmem:[#allocation2 + $0xe0] sm:$0xff]
    %v107 = vld [vmem:[#allocation2 + $0xe8] sm:$0xff]
    %v108 = vld [vmem:[#allocation2 + $0xf0] sm:$0xff]
    %v109 = vld [vmem:[#allocation2 + $0xf8] sm:$0xff]
    %v110 = vld [vmem:[#allocation2 + $0x100] sm:$0xff]
    %v111 = vld [vmem:[#allocation2 + $0x108] sm:$0xff]
    %v112 = vld [vmem:[#allocation2 + $0x110] sm:$0xff]
    %v113 = vld [vmem:[#allocation2 + $0x118] sm:$0xff]
    %v114 = vld [vmem:[#allocation2 + $0x120] sm:$0xff]
    %v115 = vld [vmem:[#allocation2 + $0x128] sm:$0xff]
    %v116 = vld [vmem:[#allocation2 + $0x130] sm:$0xff]
    %v117 = vld [vmem:[#allocation2 + $0x138] sm:$0xff]
    %v118 = vld [vmem:[#allocation2 + $0x140] sm:$0xff]
    %v119 = vld [vmem:[#allocation2 + $0x148] sm:$0xff]
    %v120 = vld [vmem:[#allocation2 + $0x150] sm:$0xff]
    %v121 = vld [vmem:[#allocation2 + $0x158] sm:$0xff]
    %v122 = vld [vmem:[#allocation2 + $0x160] sm:$0xff]
    %v123 = vld [vmem:[#allocation2 + $0x168] sm:$0xff]
    %v124 = vld [vmem:[#allocation2 + $0x170] sm:$0xff]
    %v125 = vld [vmem:[#allocation2 + $0x178] sm:$0xff]
    %v126 = vld [vmem:[#allocation2 + $0x180] sm:$0xff]
    %v127 = vld [vmem:[#allocation2 + $0x188] sm:$0xff]
    %v128 = vld [vmem:[#allocation2 + $0x190] sm:$0xff]
    %v129 = vld [vmem:[#allocation2 + $0x198] sm:$0xff]
    %v130 = vld [vmem:[#allocation2 + $0x1a0] sm:$0xff]
    %v131 = vld [vmem:[#allocation2 + $0x1a8] sm:$0xff]
    %v132 = vld [vmem:[#allocation2 + $0x1b0] sm:$0xff]
    %v133 = vld [vmem:[#allocation2 + $0x1b8] sm:$0xff]
    %v134 = vld [vmem:[#allocation2 + $0x1c0] sm:$0xff]
    %v135 = vld [vmem:[#allocation2 + $0x1c8] sm:$0xff]
    %v136 = vld [vmem:[#allocation2 + $0x1d0] sm:$0xff]
    %v137 = vld [vmem:[#allocation2 + $0x1d8] sm:$0xff]
    %v138 = vld [vmem:[#allocation2 + $0x1e0] sm:$0xff]
    %v139 = vld [vmem:[#allocation2 + $0x1e8] sm:$0xff]
    %v140 = vld [vmem:[#allocation2 + $0x1f0] sm:$0xff]
    %v141 = vld [vmem:[#allocation2 + $0x1f8] sm:$0xff]
    %v158 = vunpack.c.l.b16 %v62
    %v159 = vunpack.c.h.b16 %v62
    %v160 = vunpack.c.l.b16 %v63
    %v161 = vunpack.c.h.b16 %v63
    %v162 = vunpack.c.l.b16 %v64
    %v163 = vunpack.c.h.b16 %v64
    %v164 = vunpack.c.l.b16 %v65
    %v165 = vunpack.c.h.b16 %v65
    %v166 = vunpack.c.l.b16 %v66
    %v167 = vunpack.c.h.b16 %v66
    %v168 = vunpack.c.l.b16 %v67
    %v169 = vunpack.c.h.b16 %v67
    %v170 = vunpack.c.l.b16 %v68
    %v171 = vunpack.c.h.b16 %v68
    %v172 = vunpack.c.l.b16 %v69
    %v173 = vunpack.c.h.b16 %v69
    %v174 = vunpack.c.l.b16 %v70
    %v175 = vunpack.c.h.b16 %v70
    %v176 = vunpack.c.l.b16 %v71
    %v177 = vunpack.c.h.b16 %v71
    %v178 = vunpack.c.l.b16 %v72
    %v179 = vunpack.c.h.b16 %v72
    %v180 = vunpack.c.l.b16 %v73
    %v181 = vunpack.c.h.b16 %v73
    %v182 = vunpack.c.l.b16 %v74
    %v183 = vunpack.c.h.b16 %v74
    %v184 = vunpack.c.l.b16 %v75
    %v185 = vunpack.c.h.b16 %v75
    %v186 = vunpack.c.l.b16 %v76
    %v187 = vunpack.c.h.b16 %v76
    %v188 = vunpack.c.l.b16 %v77
    %v189 = vunpack.c.h.b16 %v77
    %v190 = vpack.c.b16 %v160, %v158
    %v191 = vpack.c.b16 %v161, %v159
    %v192 = vpack.c.b16 %v164, %v162
    %v193 = vpack.c.b16 %v165, %v163
    %v194 = vpack.c.b16 %v168, %v166
    %v195 = vpack.c.b16 %v169, %v167
    %v196 = vpack.c.b16 %v172, %v170
    %v197 = vpack.c.b16 %v173, %v171
    %v198 = vpack.c.b16 %v176, %v174
    %v199 = vpack.c.b16 %v177, %v175
    %v200 = vpack.c.b16 %v180, %v178
    %v201 = vpack.c.b16 %v181, %v179
    %v202 = vpack.c.b16 %v184, %v182
    %v203 = vpack.c.b16 %v185, %v183
    %v204 = vpack.c.b16 %v188, %v186
    %v205 = vpack.c.b16 %v189, %v187
    %v286 = vunpack.c.l.b16 %v78
    %v287 = vunpack.c.h.b16 %v78
    %v288 = vunpack.c.l.b16 %v79
    %v289 = vunpack.c.h.b16 %v79
    %v290 = vunpack.c.l.b16 %v80
    %v291 = vunpack.c.h.b16 %v80
    %v292 = vunpack.c.l.b16 %v81
    %v293 = vunpack.c.h.b16 %v81
    %v294 = vunpack.c.l.b16 %v82
    %v295 = vunpack.c.h.b16 %v82
    %v296 = vunpack.c.l.b16 %v83
    %v297 = vunpack.c.h.b16 %v83
    %v298 = vunpack.c.l.b16 %v84
    %v299 = vunpack.c.h.b16 %v84
    %v300 = vunpack.c.l.b16 %v85
    %v301 = vunpack.c.h.b16 %v85
    %v302 = vunpack.c.l.b16 %v86
    %v303 = vunpack.c.h.b16 %v86
    %v304 = vunpack.c.l.b16 %v87
    %v305 = vunpack.c.h.b16 %v87
    %v306 = vunpack.c.l.b16 %v88
    %v307 = vunpack.c.h.b16 %v88
    %v308 = vunpack.c.l.b16 %v89
    %v309 = vunpack.c.h.b16 %v89
    %v310 = vunpack.c.l.b16 %v90
    %v311 = vunpack.c.h.b16 %v90
    %v312 = vunpack.c.l.b16 %v91
    %v313 = vunpack.c.h.b16 %v91
    %v314 = vunpack.c.l.b16 %v92
    %v315 = vunpack.c.h.b16 %v92
    %v316 = vunpack.c.l.b16 %v93
    %v317 = vunpack.c.h.b16 %v93
    %v318 = vunpack.c.l.b16 %v94
    %v319 = vunpack.c.h.b16 %v94
    %v320 = vunpack.c.l.b16 %v95
    %v321 = vunpack.c.h.b16 %v95
    %v322 = vunpack.c.l.b16 %v96
    %v323 = vunpack.c.h.b16 %v96
    %v324 = vunpack.c.l.b16 %v97
    %v325 = vunpack.c.h.b16 %v97
    %v326 = vunpack.c.l.b16 %v98
    %v327 = vunpack.c.h.b16 %v98
    %v328 = vunpack.c.l.b16 %v99
    %v329 = vunpack.c.h.b16 %v99
    %v330 = vunpack.c.l.b16 %v100
    %v331 = vunpack.c.h.b16 %v100
    %v332 = vunpack.c.l.b16 %v101
    %v333 = vunpack.c.h.b16 %v101
    %v334 = vunpack.c.l.b16 %v102
    %v335 = vunpack.c.h.b16 %v102
    %v336 = vunpack.c.l.b16 %v103
    %v337 = vunpack.c.h.b16 %v103
    %v338 = vunpack.c.l.b16 %v104
    %v339 = vunpack.c.h.b16 %v104
    %v340 = vunpack.c.l.b16 %v105
    %v341 = vunpack.c.h.b16 %v105
    %v342 = vunpack.c.l.b16 %v106
    %v343 = vunpack.c.h.b16 %v106
    %v344 = vunpack.c.l.b16 %v107
    %v345 = vunpack.c.h.b16 %v107
    %v346 = vunpack.c.l.b16 %v108
    %v347 = vunpack.c.h.b16 %v108
    %v348 = vunpack.c.l.b16 %v109
    %v349 = vunpack.c.h.b16 %v109
    %v350 = vunpack.c.l.b16 %v110
    %v351 = vunpack.c.h.b16 %v110
    %v352 = vunpack.c.l.b16 %v111
    %v353 = vunpack.c.h.b16 %v111
    %v354 = vunpack.c.l.b16 %v112
    %v355 = vunpack.c.h.b16 %v112
    %v356 = vunpack.c.l.b16 %v113
    %v357 = vunpack.c.h.b16 %v113
    %v358 = vunpack.c.l.b16 %v114
    %v359 = vunpack.c.h.b16 %v114
    %v360 = vunpack.c.l.b16 %v115
    %v361 = vunpack.c.h.b16 %v115
    %v362 = vunpack.c.l.b16 %v116
    %v363 = vunpack.c.h.b16 %v116
    %v364 = vunpack.c.l.b16 %v117
    %v365 = vunpack.c.h.b16 %v117
    %v366 = vunpack.c.l.b16 %v118
    %v367 = vunpack.c.h.b16 %v118
    %v368 = vunpack.c.l.b16 %v119
    %v369 = vunpack.c.h.b16 %v119
    %v370 = vunpack.c.l.b16 %v120
    %v371 = vunpack.c.h.b16 %v120
    %v372 = vunpack.c.l.b16 %v121
    %v373 = vunpack.c.h.b16 %v121
    %v374 = vunpack.c.l.b16 %v122
    %v375 = vunpack.c.h.b16 %v122
    %v376 = vunpack.c.l.b16 %v123
    %v377 = vunpack.c.h.b16 %v123
    %v378 = vunpack.c.l.b16 %v124
    %v379 = vunpack.c.h.b16 %v124
    %v380 = vunpack.c.l.b16 %v125
    %v381 = vunpack.c.h.b16 %v125
    %v382 = vunpack.c.l.b16 %v126
    %v383 = vunpack.c.h.b16 %v126
    %v384 = vunpack.c.l.b16 %v127
    %v385 = vunpack.c.h.b16 %v127
    %v386 = vunpack.c.l.b16 %v128
    %v387 = vunpack.c.h.b16 %v128
    %v388 = vunpack.c.l.b16 %v129
    %v389 = vunpack.c.h.b16 %v129
    %v390 = vunpack.c.l.b16 %v130
    %v391 = vunpack.c.h.b16 %v130
    %v392 = vunpack.c.l.b16 %v131
    %v393 = vunpack.c.h.b16 %v131
    %v394 = vunpack.c.l.b16 %v132
    %v395 = vunpack.c.h.b16 %v132
    %v396 = vunpack.c.l.b16 %v133
    %v397 = vunpack.c.h.b16 %v133
    %v398 = vunpack.c.l.b16 %v134
    %v399 = vunpack.c.h.b16 %v134
    %v400 = vunpack.c.l.b16 %v135
    %v401 = vunpack.c.h.b16 %v135
    %v402 = vunpack.c.l.b16 %v136
    %v403 = vunpack.c.h.b16 %v136
    %v404 = vunpack.c.l.b16 %v137
    %v405 = vunpack.c.h.b16 %v137
    %v406 = vunpack.c.l.b16 %v138
    %v407 = vunpack.c.h.b16 %v138
    %v408 = vunpack.c.l.b16 %v139
    %v409 = vunpack.c.h.b16 %v139
    %v410 = vunpack.c.l.b16 %v140
    %v411 = vunpack.c.h.b16 %v140
    %v412 = vunpack.c.l.b16 %v141
    %v413 = vunpack.c.h.b16 %v141
    %v414 = vpack.c.b16 %v290, %v286
    %v415 = vpack.c.b16 %v291, %v287
    %v416 = vpack.c.b16 %v292, %v288
    %v417 = vpack.c.b16 %v293, %v289
    %v418 = vpack.c.b16 %v298, %v294
    %v419 = vpack.c.b16 %v299, %v295
    %v420 = vpack.c.b16 %v300, %v296
    %v421 = vpack.c.b16 %v301, %v297
    %v422 = vpack.c.b16 %v306, %v302
    %v423 = vpack.c.b16 %v307, %v303
    %v424 = vpack.c.b16 %v308, %v304
    %v425 = vpack.c.b16 %v309, %v305
    %v426 = vpack.c.b16 %v314, %v310
    %v427 = vpack.c.b16 %v315, %v311
    %v428 = vpack.c.b16 %v316, %v312
    %v429 = vpack.c.b16 %v317, %v313
    %v430 = vpack.c.b16 %v322, %v318
    %v431 = vpack.c.b16 %v323, %v319
    %v432 = vpack.c.b16 %v324, %v320
    %v433 = vpack.c.b16 %v325, %v321
    %v434 = vpack.c.b16 %v330, %v326
    %v435 = vpack.c.b16 %v331, %v327
    %v436 = vpack.c.b16 %v332, %v328
    %v437 = vpack.c.b16 %v333, %v329
    %v438 = vpack.c.b16 %v338, %v334
    %v439 = vpack.c.b16 %v339, %v335
    %v440 = vpack.c.b16 %v340, %v336
    %v441 = vpack.c.b16 %v341, %v337
    %v442 = vpack.c.b16 %v346, %v342
    %v443 = vpack.c.b16 %v347, %v343
    %v444 = vpack.c.b16 %v348, %v344
    %v445 = vpack.c.b16 %v349, %v345
    %v446 = vpack.c.b16 %v354, %v350
    %v447 = vpack.c.b16 %v355, %v351
    %v448 = vpack.c.b16 %v356, %v352
    %v449 = vpack.c.b16 %v357, %v353
    %v450 = vpack.c.b16 %v362, %v358
    %v451 = vpack.c.b16 %v363, %v359
    %v452 = vpack.c.b16 %v364, %v360
    %v453 = vpack.c.b16 %v365, %v361
    %v454 = vpack.c.b16 %v370, %v366
    %v455 = vpack.c.b16 %v371, %v367
    %v456 = vpack.c.b16 %v372, %v368
    %v457 = vpack.c.b16 %v373, %v369
    %v458 = vpack.c.b16 %v378, %v374
    %v459 = vpack.c.b16 %v379, %v375
    %v460 = vpack.c.b16 %v380, %v376
    %v461 = vpack.c.b16 %v381, %v377
    %v462 = vpack.c.b16 %v386, %v382
    %v463 = vpack.c.b16 %v387, %v383
    %v464 = vpack.c.b16 %v388, %v384
    %v465 = vpack.c.b16 %v389, %v385
    %v466 = vpack.c.b16 %v394, %v390
    %v467 = vpack.c.b16 %v395, %v391
    %v468 = vpack.c.b16 %v396, %v392
    %v469 = vpack.c.b16 %v397, %v393
    %v470 = vpack.c.b16 %v402, %v398
    %v471 = vpack.c.b16 %v403, %v399
    %v472 = vpack.c.b16 %v404, %v400
    %v473 = vpack.c.b16 %v405, %v401
    %v474 = vpack.c.b16 %v410, %v406
    %v475 = vpack.c.b16 %v411, %v407
    %v476 = vpack.c.b16 %v412, %v408
    %v477 = vpack.c.b16 %v413, %v409
    %542 = vmatprep.subr.bf16.mxu0 %v415
    %543 = vmatpush1.bf16.msra.mxu0 %v414
    %544 = vmatprep.subr.bf16.mxu0 %v419
    %545 = vmatpush1.bf16.msra.mxu0 %v418
    %546 = vmatprep.subr.bf16.mxu0 %v423
    %547 = vmatpush1.bf16.msra.mxu0 %v422
    %548 = vmatprep.subr.bf16.mxu0 %v427
    %549 = vmatpush1.bf16.msra.mxu0 %v426
    %550 = vmatprep.subr.bf16.mxu0 %v431
    %551 = vmatpush1.bf16.msra.mxu0 %v430
    %552 = vmatprep.subr.bf16.mxu0 %v435
    %553 = vmatpush1.bf16.msra.mxu0 %v434
    %554 = vmatprep.subr.bf16.mxu0 %v439
    %555 = vmatpush1.bf16.msra.mxu0 %v438
    %556 = vmatprep.subr.bf16.mxu0 %v443
    %557 = vmatpush1.bf16.msra.mxu0 %v442
    %558 = vmatprep.subr.bf16.mxu0 %v447
    %559 = vmatpush1.bf16.msra.mxu0 %v446
    %560 = vmatprep.subr.bf16.mxu0 %v451
    %561 = vmatpush1.bf16.msra.mxu0 %v450
    %562 = vmatprep.subr.bf16.mxu0 %v455
    %563 = vmatpush1.bf16.msra.mxu0 %v454
    %564 = vmatprep.subr.bf16.mxu0 %v459
    %565 = vmatpush1.bf16.msra.mxu0 %v458
    %566 = vmatprep.subr.bf16.mxu0 %v463
    %567 = vmatpush1.bf16.msra.mxu0 %v462
    %568 = vmatprep.subr.bf16.mxu0 %v467
    %569 = vmatpush1.bf16.msra.mxu0 %v466
    %570 = vmatprep.subr.bf16.mxu0 %v471
    %571 = vmatpush1.bf16.msra.mxu0 %v470
    %572 = vmatprep.subr.bf16.mxu0 %v475
    %573 = vmatpush1.bf16.msra.mxu0 %v474
    %574 = vmatprep.mubr.bf16.mxu0 %v191
    %575 = vmatmul.mubr.bf16.gmra.mrb[0].mxu0 %v190
    %v576 = vpop.f32.mrb[0].mxu0
    %v577 = vadd.f32 0.0, %v576
    %v578 = vpop.f32.mrb[0].mxu0
    %v579 = vadd.f32 0.0, %v578
    %v580 = vpop.f32.mrb[0].mxu0
    %v581 = vadd.f32 0.0, %v580
    %v582 = vpop.f32.mrb[0].mxu0
    %v583 = vadd.f32 0.0, %v582
    %584 = vmatprep.mubr.bf16.mxu0 %v193
    %585 = vmatmul.mubr.bf16.gmra.mrb[0].mxu0 %v192
    %v586 = vpop.f32.mrb[0].mxu0
    %v587 = vadd.f32 0.0, %v586
    %v588 = vpop.f32.mrb[0].mxu0
    %v589 = vadd.f32 0.0, %v588
    %v590 = vpop.f32.mrb[0].mxu0
    %v591 = vadd.f32 0.0, %v590
    %v592 = vpop.f32.mrb[0].mxu0
    %v593 = vadd.f32 0.0, %v592
    %594 = vmatprep.mubr.bf16.mxu0 %v195
    %595 = vmatmul.mubr.bf16.gmra.mrb[0].mxu0 %v194
    %v596 = vpop.f32.mrb[0].mxu0
    %v597 = vadd.f32 0.0, %v596
    %v598 = vpop.f32.mrb[0].mxu0
    %v599 = vadd.f32 0.0, %v598
    %v600 = vpop.f32.mrb[0].mxu0
    %v601 = vadd.f32 0.0, %v600
    %v602 = vpop.f32.mrb[0].mxu0
    %v603 = vadd.f32 0.0, %v602
    %604 = vmatprep.mubr.bf16.mxu0 %v197
    %605 = vmatmul.mubr.bf16.gmra.mrb[0].mxu0 %v196
    %v606 = vpop.f32.mrb[0].mxu0
    %v607 = vadd.f32 0.0, %v606
    %v608 = vpop.f32.mrb[0].mxu0
    %v609 = vadd.f32 0.0, %v608
    %v610 = vpop.f32.mrb[0].mxu0
    %v611 = vadd.f32 0.0, %v610
    %v612 = vpop.f32.mrb[0].mxu0
    %v613 = vadd.f32 0.0, %v612
    %614 = vmatprep.mubr.bf16.mxu0 %v199
    %615 = vmatmul.mubr.bf16.gmra.mrb[0].mxu0 %v198
    %v616 = vpop.f32.mrb[0].mxu0
    %v617 = vadd.f32 0.0, %v616
    %v618 = vpop.f32.mrb[0].mxu0
    %v619 = vadd.f32 0.0, %v618
    %v620 = vpop.f32.mrb[0].mxu0
    %v621 = vadd.f32 0.0, %v620
    %v622 = vpop.f32.mrb[0].mxu0
    %v623 = vadd.f32 0.0, %v622
    %624 = vmatprep.mubr.bf16.mxu0 %v201
    %625 = vmatmul.mubr.bf16.gmra.mrb[0].mxu0 %v200
    %v626 = vpop.f32.mrb[0].mxu0
    %v627 = vadd.f32 0.0, %v626
    %v628 = vpop.f32.mrb[0].mxu0
    %v629 = vadd.f32 0.0, %v628
    %v630 = vpop.f32.mrb[0].mxu0
    %v631 = vadd.f32 0.0, %v630
    %v632 = vpop.f32.mrb[0].mxu0
    %v633 = vadd.f32 0.0, %v632
    %634 = vmatprep.mubr.bf16.mxu0 %v203
    %635 = vmatmul.mubr.bf16.gmra.mrb[0].mxu0 %v202
    %v636 = vpop.f32.mrb[0].mxu0
    %v637 = vadd.f32 0.0, %v636
    %v638 = vpop.f32.mrb[0].mxu0
    %v639 = vadd.f32 0.0, %v638
    %v640 = vpop.f32.mrb[0].mxu0
    %v641 = vadd.f32 0.0, %v640
    %v642 = vpop.f32.mrb[0].mxu0
    %v643 = vadd.f32 0.0, %v642
    %644 = vmatprep.mubr.bf16.mxu0 %v205
    %645 = vmatmul.mubr.bf16.gmra.mrb[0].mxu0 %v204
    %v646 = vpop.f32.mrb[0].mxu0
    %v647 = vadd.f32 0.0, %v646
    %v648 = vpop.f32.mrb[0].mxu0
    %v649 = vadd.f32 0.0, %v648
    %v650 = vpop.f32.mrb[0].mxu0
    %v651 = vadd.f32 0.0, %v650
    %v652 = vpop.f32.mrb[0].mxu0
    %v653 = vadd.f32 0.0, %v652
    %654 = vdwg.mxu0
    %655 = vmatprep.subr.bf16.mxu0 %v417
    %656 = vmatpush1.bf16.msra.mxu0 %v416
    %657 = vmatprep.subr.bf16.mxu0 %v421
    %658 = vmatpush1.bf16.msra.mxu0 %v420
    %659 = vmatprep.subr.bf16.mxu0 %v425
    %660 = vmatpush1.bf16.msra.mxu0 %v424
    %661 = vmatprep.subr.bf16.mxu0 %v429
    %662 = vmatpush1.bf16.msra.mxu0 %v428
    %663 = vmatprep.subr.bf16.mxu0 %v433
    %664 = vmatpush1.bf16.msra.mxu0 %v432
    %665 = vmatprep.subr.bf16.mxu0 %v437
    %666 = vmatpush1.bf16.msra.mxu0 %v436
    %667 = vmatprep.subr.bf16.mxu0 %v441
    %668 = vmatpush1.bf16.msra.mxu0 %v440
    %669 = vmatprep.subr.bf16.mxu0 %v445
    %670 = vmatpush1.bf16.msra.mxu0 %v444
    %671 = vmatprep.subr.bf16.mxu0 %v449
    %672 = vmatpush1.bf16.msra.mxu0 %v448
    %673 = vmatprep.subr.bf16.mxu0 %v453
    %674 = vmatpush1.bf16.msra.mxu0 %v452
    %675 = vmatprep.subr.bf16.mxu0 %v457
    %676 = vmatpush1.bf16.msra.mxu0 %v456
    %677 = vmatprep.subr.bf16.mxu0 %v461
    %678 = vmatpush1.bf16.msra.mxu0 %v460
    %679 = vmatprep.subr.bf16.mxu0 %v465
    %680 = vmatpush1.bf16.msra.mxu0 %v464
    %681 = vmatprep.subr.bf16.mxu0 %v469
    %682 = vmatpush1.bf16.msra.mxu0 %v468
    %683 = vmatprep.subr.bf16.mxu0 %v473
    %684 = vmatpush1.bf16.msra.mxu0 %v472
    %685 = vmatprep.subr.bf16.mxu0 %v477
    %686 = vmatpush1.bf16.msra.mxu0 %v476
    %687 = vmatprep.mubr.bf16.mxu0 %v191
    %688 = vmatmul.mubr.bf16.gmra.mrb[0].mxu0 %v190
    %v689 = vpop.f32.mrb[0].mxu0
    %v690 = vadd.f32 0.0, %v689
    %v691 = vpop.f32.mrb[0].mxu0
    %v692 = vadd.f32 0.0, %v691
    %v693 = vpop.f32.mrb[0].mxu0
    %v694 = vadd.f32 0.0, %v693
    %v695 = vpop.f32.mrb[0].mxu0
    %v696 = vadd.f32 0.0, %v695
    %697 = vmatprep.mubr.bf16.mxu0 %v193
    %698 = vmatmul.mubr.bf16.gmra.mrb[0].mxu0 %v192
    %v699 = vpop.f32.mrb[0].mxu0
    %v700 = vadd.f32 0.0, %v699
    %v701 = vpop.f32.mrb[0].mxu0
    %v702 = vadd.f32 0.0, %v701
    %v703 = vpop.f32.mrb[0].mxu0
    %v704 = vadd.f32 0.0, %v703
    %v705 = vpop.f32.mrb[0].mxu0
    %v706 = vadd.f32 0.0, %v705
    %707 = vmatprep.mubr.bf16.mxu0 %v195
    %708 = vmatmul.mubr.bf16.gmra.mrb[0].mxu0 %v194
    %v709 = vpop.f32.mrb[0].mxu0
    %v710 = vadd.f32 0.0, %v709
    %v711 = vpop.f32.mrb[0].mxu0
    %v712 = vadd.f32 0.0, %v711
    %v713 = vpop.f32.mrb[0].mxu0
    %v714 = vadd.f32 0.0, %v713
    %v715 = vpop.f32.mrb[0].mxu0
    %v716 = vadd.f32 0.0, %v715
    %717 = vmatprep.mubr.bf16.mxu0 %v197
    %718 = vmatmul.mubr.bf16.gmra.mrb[0].mxu0 %v196
    %v719 = vpop.f32.mrb[0].mxu0
    %v720 = vadd.f32 0.0, %v719
    %v721 = vpop.f32.mrb[0].mxu0
    %v722 = vadd.f32 0.0, %v721
    %v723 = vpop.f32.mrb[0].mxu0
    %v724 = vadd.f32 0.0, %v723
    %v725 = vpop.f32.mrb[0].mxu0
    %v726 = vadd.f32 0.0, %v725
    %727 = vmatprep.mubr.bf16.mxu0 %v199
    %728 = vmatmul.mubr.bf16.gmra.mrb[0].mxu0 %v198
    %v729 = vpop.f32.mrb[0].mxu0
    %v730 = vadd.f32 0.0, %v729
    %v731 = vpop.f32.mrb[0].mxu0
    %v732 = vadd.f32 0.0, %v731
    %v733 = vpop.f32.mrb[0].mxu0
    %v734 = vadd.f32 0.0, %v733
    %v735 = vpop.f32.mrb[0].mxu0
    %v736 = vadd.f32 0.0, %v735
    %737 = vmatprep.mubr.bf16.mxu0 %v201
    %738 = vmatmul.mubr.bf16.gmra.mrb[0].mxu0 %v200
    %v739 = vpop.f32.mrb[0].mxu0
    %v740 = vadd.f32 0.0, %v739
    %v741 = vpop.f32.mrb[0].mxu0
    %v742 = vadd.f32 0.0, %v741
    %v743 = vpop.f32.mrb[0].mxu0
    %v744 = vadd.f32 0.0, %v743
    %v745 = vpop.f32.mrb[0].mxu0
    %v746 = vadd.f32 0.0, %v745
    %747 = vmatprep.mubr.bf16.mxu0 %v203
    %748 = vmatmul.mubr.bf16.gmra.mrb[0].mxu0 %v202
    %v749 = vpop.f32.mrb[0].mxu0
    %v750 = vadd.f32 0.0, %v749
    %v751 = vpop.f32.mrb[0].mxu0
    %v752 = vadd.f32 0.0, %v751
    %v753 = vpop.f32.mrb[0].mxu0
    %v754 = vadd.f32 0.0, %v753
    %v755 = vpop.f32.mrb[0].mxu0
    %v756 = vadd.f32 0.0, %v755
    %757 = vmatprep.mubr.bf16.mxu0 %v205
    %758 = vmatmul.mubr.bf16.gmra.mrb[0].mxu0 %v204
    %v759 = vpop.f32.mrb[0].mxu0
    %v760 = vadd.f32 0.0, %v759
    %v761 = vpop.f32.mrb[0].mxu0
    %v762 = vadd.f32 0.0, %v761
    %v763 = vpop.f32.mrb[0].mxu0
    %v764 = vadd.f32 0.0, %v763
    %v765 = vpop.f32.mrb[0].mxu0
    %v766 = vadd.f32 0.0, %v765
    %767 = vdwg.mxu0
    %v768 = vadd.f32 %v577, %v581
    %v769 = vadd.f32 %v768, %v587
    %v770 = vadd.f32 %v769, %v591
    %v771 = vadd.f32 %v770, %v597
    %v772 = vadd.f32 %v771, %v601
    %v773 = vadd.f32 %v772, %v607
    %v774 = vadd.f32 %v773, %v611
    %v775 = vadd.f32 %v774, %v617
    %v776 = vadd.f32 %v775, %v621
    %v777 = vadd.f32 %v776, %v627
    %v778 = vadd.f32 %v777, %v631
    %v779 = vadd.f32 %v778, %v637
    %v780 = vadd.f32 %v779, %v641
    %v781 = vadd.f32 %v780, %v647
    %v782 = vadd.f32 %v781, %v651
    %v783 = vrot.slane %v782, 4
    %v784 = vadd.f32 %v782, %v783
    %v785 = vrot.slane %v784, 2
    %v786 = vadd.f32 %v784, %v785
    %v787 = vrot.slane %v786, 1
    %v788 = vadd.f32 %v786, %v787
    %v789 = vadd.f32 %v579, %v583
    %v790 = vadd.f32 %v789, %v589
    %v791 = vadd.f32 %v790, %v593
    %v792 = vadd.f32 %v791, %v599
    %v793 = vadd.f32 %v792, %v603
    %v794 = vadd.f32 %v793, %v609
    %v795 = vadd.f32 %v794, %v613
    %v796 = vadd.f32 %v795, %v619
    %v797 = vadd.f32 %v796, %v623
    %v798 = vadd.f32 %v797, %v629
    %v799 = vadd.f32 %v798, %v633
    %v800 = vadd.f32 %v799, %v639
    %v801 = vadd.f32 %v800, %v643
    %v802 = vadd.f32 %v801, %v649
    %v803 = vadd.f32 %v802, %v653
    %v804 = vrot.slane %v803, 4
    %v805 = vadd.f32 %v803, %v804
    %v806 = vrot.slane %v805, 2
    %v807 = vadd.f32 %v805, %v806
    %v808 = vrot.slane %v807, 1
    %v809 = vadd.f32 %v807, %v808
    %v810 = vadd.f32 %v690, %v694
    %v811 = vadd.f32 %v810, %v700
    %v812 = vadd.f32 %v811, %v704
    %v813 = vadd.f32 %v812, %v710
    %v814 = vadd.f32 %v813, %v714
    %v815 = vadd.f32 %v814, %v720
    %v816 = vadd.f32 %v815, %v724
    %v817 = vadd.f32 %v816, %v730
    %v818 = vadd.f32 %v817, %v734
    %v819 = vadd.f32 %v818, %v740
    %v820 = vadd.f32 %v819, %v744
    %v821 = vadd.f32 %v820, %v750
    %v822 = vadd.f32 %v821, %v754
    %v823 = vadd.f32 %v822, %v760
    %v824 = vadd.f32 %v823, %v764
    %v825 = vrot.slane %v824, 4
    %v826 = vadd.f32 %v824, %v825
    %v827 = vrot.slane %v826, 2
    %v828 = vadd.f32 %v826, %v827
    %v829 = vrot.slane %v828, 1
    %v830 = vadd.f32 %v828, %v829
    %v831 = vadd.f32 %v692, %v696
    %v832 = vadd.f32 %v831, %v702
    %v833 = vadd.f32 %v832, %v706
    %v834 = vadd.f32 %v833, %v712
    %v835 = vadd.f32 %v834, %v716
    %v836 = vadd.f32 %v835, %v722
    %v837 = vadd.f32 %v836, %v726
    %v838 = vadd.f32 %v837, %v732
    %v839 = vadd.f32 %v838, %v736
    %v840 = vadd.f32 %v839, %v742
    %v841 = vadd.f32 %v840, %v746
    %v842 = vadd.f32 %v841, %v752
    %v843 = vadd.f32 %v842, %v756
    %v844 = vadd.f32 %v843, %v762
    %v845 = vadd.f32 %v844, %v766
    %v846 = vrot.slane %v845, 4
    %v847 = vadd.f32 %v845, %v846
    %v848 = vrot.slane %v847, 2
    %v849 = vadd.f32 %v847, %v848
    %v850 = vrot.slane %v849, 1
    %v851 = vadd.f32 %v849, %v850
    %v852 = vmul.f32 %v788, 0.0078125
    %v853 = vmul.f32 %v809, 0.0078125
    %v854 = vmul.f32 %v830, 0.0078125
    %v855 = vmul.f32 %v851, 0.0078125
    %v856 = vmul.f32 %v577, %v577
    %v857 = vmul.f32 %v579, %v579
    %v858 = vmul.f32 %v690, %v690
    %v859 = vmul.f32 %v692, %v692
    %v860 = vmul.f32 %v581, %v581
    %v861 = vmul.f32 %v583, %v583
    %v862 = vmul.f32 %v694, %v694
    %v863 = vmul.f32 %v696, %v696
    %v864 = vmul.f32 %v587, %v587
    %v865 = vmul.f32 %v589, %v589
    %v866 = vmul.f32 %v700, %v700
    %v867 = vmul.f32 %v702, %v702
    %v868 = vmul.f32 %v591, %v591
    %v869 = vmul.f32 %v593, %v593
    %v870 = vmul.f32 %v704, %v704
    %v871 = vmul.f32 %v706, %v706
    %v872 = vmul.f32 %v597, %v597
    %v873 = vmul.f32 %v599, %v599
    %v874 = vmul.f32 %v710, %v710
    %v875 = vmul.f32 %v712, %v712
    %v876 = vmul.f32 %v601, %v601
    %v877 = vmul.f32 %v603, %v603
    %v878 = vmul.f32 %v714, %v714
    %v879 = vmul.f32 %v716, %v716
    %v880 = vmul.f32 %v607, %v607
    %v881 = vmul.f32 %v609, %v609
    %v882 = vmul.f32 %v720, %v720
    %v883 = vmul.f32 %v722, %v722
    %v884 = vmul.f32 %v611, %v611
    %v885 = vmul.f32 %v613, %v613
    %v886 = vmul.f32 %v724, %v724
    %v887 = vmul.f32 %v726, %v726
    %v888 = vmul.f32 %v617, %v617
    %v889 = vmul.f32 %v619, %v619
    %v890 = vmul.f32 %v730, %v730
    %v891 = vmul.f32 %v732, %v732
    %v892 = vmul.f32 %v621, %v621
    %v893 = vmul.f32 %v623, %v623
    %v894 = vmul.f32 %v734, %v734
    %v895 = vmul.f32 %v736, %v736
    %v896 = vmul.f32 %v627, %v627
    %v897 = vmul.f32 %v629, %v629
    %v898 = vmul.f32 %v740, %v740
    %v899 = vmul.f32 %v742, %v742
    %v900 = vmul.f32 %v631, %v631
    %v901 = vmul.f32 %v633, %v633
    %v902 = vmul.f32 %v744, %v744
    %v903 = vmul.f32 %v746, %v746
    %v904 = vmul.f32 %v637, %v637
    %v905 = vmul.f32 %v639, %v639
    %v906 = vmul.f32 %v750, %v750
    %v907 = vmul.f32 %v752, %v752
    %v908 = vmul.f32 %v641, %v641
    %v909 = vmul.f32 %v643, %v643
    %v910 = vmul.f32 %v754, %v754
    %v911 = vmul.f32 %v756, %v756
    %v912 = vmul.f32 %v647, %v647
    %v913 = vmul.f32 %v649, %v649
    %v914 = vmul.f32 %v760, %v760
    %v915 = vmul.f32 %v762, %v762
    %v916 = vmul.f32 %v651, %v651
    %v917 = vmul.f32 %v653, %v653
    %v918 = vmul.f32 %v764, %v764
    %v919 = vmul.f32 %v766, %v766
    %v920 = vadd.f32 %v856, %v860
    %v921 = vadd.f32 %v920, %v864
    %v922 = vadd.f32 %v921, %v868
    %v923 = vadd.f32 %v922, %v872
    %v924 = vadd.f32 %v923, %v876
    %v925 = vadd.f32 %v924, %v880
    %v926 = vadd.f32 %v925, %v884
    %v927 = vadd.f32 %v926, %v888
    %v928 = vadd.f32 %v927, %v892
    %v929 = vadd.f32 %v928, %v896
    %v930 = vadd.f32 %v929, %v900
    %v931 = vadd.f32 %v930, %v904
    %v932 = vadd.f32 %v931, %v908
    %v933 = vadd.f32 %v932, %v912
    %v934 = vadd.f32 %v933, %v916
    %v935 = vrot.slane %v934, 4
    %v936 = vadd.f32 %v934, %v935
    %v937 = vrot.slane %v936, 2
    %v938 = vadd.f32 %v936, %v937
    %v939 = vrot.slane %v938, 1
    %v940 = vadd.f32 %v938, %v939
    %v941 = vadd.f32 %v857, %v861
    %v942 = vadd.f32 %v941, %v865
    %v943 = vadd.f32 %v942, %v869
    %v944 = vadd.f32 %v943, %v873
    %v945 = vadd.f32 %v944, %v877
    %v946 = vadd.f32 %v945, %v881
    %v947 = vadd.f32 %v946, %v885
    %v948 = vadd.f32 %v947, %v889
    %v949 = vadd.f32 %v948, %v893
    %v950 = vadd.f32 %v949, %v897
    %v951 = vadd.f32 %v950, %v901
    %v952 = vadd.f32 %v951, %v905
    %v953 = vadd.f32 %v952, %v909
    %v954 = vadd.f32 %v953, %v913
    %v955 = vadd.f32 %v954, %v917
    %v956 = vrot.slane %v955, 4
    %v957 = vadd.f32 %v955, %v956
    %v958 = vrot.slane %v957, 2
    %v959 = vadd.f32 %v957, %v958
    %v960 = vrot.slane %v959, 1
    %v961 = vadd.f32 %v959, %v960
    %v962 = vadd.f32 %v858, %v862
    %v963 = vadd.f32 %v962, %v866
    %v964 = vadd.f32 %v963, %v870
    %v965 = vadd.f32 %v964, %v874
    %v966 = vadd.f32 %v965, %v878
    %v967 = vadd.f32 %v966, %v882
    %v968 = vadd.f32 %v967, %v886
    %v969 = vadd.f32 %v968, %v890
    %v970 = vadd.f32 %v969, %v894
    %v971 = vadd.f32 %v970, %v898
    %v972 = vadd.f32 %v971, %v902
    %v973 = vadd.f32 %v972, %v906
    %v974 = vadd.f32 %v973, %v910
    %v975 = vadd.f32 %v974, %v914
    %v976 = vadd.f32 %v975, %v918
    %v977 = vrot.slane %v976, 4
    %v978 = vadd.f32 %v976, %v977
    %v979 = vrot.slane %v978, 2
    %v980 = vadd.f32 %v978, %v979
    %v981 = vrot.slane %v980, 1
    %v982 = vadd.f32 %v980, %v981
    %v983 = vadd.f32 %v859, %v863
    %v984 = vadd.f32 %v983, %v867
    %v985 = vadd.f32 %v984, %v871
    %v986 = vadd.f32 %v985, %v875
    %v987 = vadd.f32 %v986, %v879
    %v988 = vadd.f32 %v987, %v883
    %v989 = vadd.f32 %v988, %v887
    %v990 = vadd.f32 %v989, %v891
    %v991 = vadd.f32 %v990, %v895
    %v992 = vadd.f32 %v991, %v899
    %v993 = vadd.f32 %v992, %v903
    %v994 = vadd.f32 %v993, %v907
    %v995 = vadd.f32 %v994, %v911
    %v996 = vadd.f32 %v995, %v915
    %v997 = vadd.f32 %v996, %v919
    %v998 = vrot.slane %v997, 4
    %v999 = vadd.f32 %v997, %v998
    %v1000 = vrot.slane %v999, 2
    %v1001 = vadd.f32 %v999, %v1000
    %v1002 = vrot.slane %v1001, 1
    %v1003 = vadd.f32 %v1001, %v1002
    %v1004 = vmul.f32 %v940, 0.0078125
    %v1005 = vmul.f32 %v961, 0.0078125
    %v1006 = vmul.f32 %v982, 0.0078125
    %v1007 = vmul.f32 %v1003, 0.0078125
    %v1008 = vmul.f32 %v852, %v852
    %v1009 = vmul.f32 %v853, %v853
    %v1010 = vmul.f32 %v854, %v854
    %v1011 = vmul.f32 %v855, %v855
    %v1012 = vsub.f32 %v1004, %v1008
    %v1013 = vsub.f32 %v1005, %v1009
    %v1014 = vsub.f32 %v1006, %v1010
    %v1015 = vsub.f32 %v1007, %v1011
    %v1016 = vmax.f32 %v1012, 0.0
    %v1017 = vmax.f32 %v1013, 0.0
    %v1018 = vmax.f32 %v1014, 0.0
    %v1019 = vmax.f32 %v1015, 0.0
    %v1020 = vld [vmem:[%s2] sm:$0xf]
    %v1021 = vadd.f32 %v1016, 1e-05
    %v1022 = vadd.f32 %v1017, 1e-05
    %v1023 = vadd.f32 %v1018, 1e-05
    %v1024 = vadd.f32 %v1019, 1e-05
    %v1025 = vrsqrt.pop %v1021
    %v1026 = vrsqrt.pop %v1022
    %v1027 = vrsqrt.pop %v1023
    %v1028 = vrsqrt.pop %v1024
    %v1033 = vcombine.low %v1025, %v1026
    %v1034 = vcombine.low %v1027, %v1028
    %v1036 = vunpack.c.l.s4 1966171168
    %v1037 = vunpack.c.0.s8 %v1036
    %v1038 = vlaneseq
    %v1039 = vshrl.u32 %v1038, 7
    %v1040 = vsub.s32 %v1037, %v1039
    %v1041 = vrot.slane %v1033, %v1040
    %v1043 = vunpack.c.l.s4 1966171168
    %v1044 = vunpack.c.0.s8 %v1043
    %v1045 = vlaneseq
    %v1046 = vshrl.u32 %v1045, 7
    %v1047 = vsub.s32 %v1044, %v1046
    %v1048 = vrot.slane %v1034, %v1047
    %v1049 = vcombine.low %v1041, %v1048
    %v1051 = vunpack.c.l.s4 1966171168
    %v1052 = vunpack.c.0.s8 %v1051
    %v1053 = vlaneseq
    %v1054 = vshrl.u32 %v1053, 7
    %v1055 = vsub.s32 %v1052, %v1054
    %v1056 = vrot.slane %v1049, %v1055
    %v1058 = vmul.f32 %v1020, %v1056
    %v1059 = vsub.f32 %v577, %v852
    %v1060 = vsub.f32 %v579, %v853
    %v1061 = vsub.f32 %v690, %v854
    %v1062 = vsub.f32 %v692, %v855
    %v1063 = vsub.f32 %v581, %v852
    %v1064 = vsub.f32 %v583, %v853
    %v1065 = vsub.f32 %v694, %v854
    %v1066 = vsub.f32 %v696, %v855
    %v1067 = vsub.f32 %v587, %v852
    %v1068 = vsub.f32 %v589, %v853
    %v1069 = vsub.f32 %v700, %v854
    %v1070 = vsub.f32 %v702, %v855
    %v1071 = vsub.f32 %v591, %v852
    %v1072 = vsub.f32 %v593, %v853
    %v1073 = vsub.f32 %v704, %v854
    %v1074 = vsub.f32 %v706, %v855
    %v1075 = vsub.f32 %v597, %v852
    %v1076 = vsub.f32 %v599, %v853
    %v1077 = vsub.f32 %v710, %v854
    %v1078 = vsub.f32 %v712, %v855
    %v1079 = vsub.f32 %v601, %v852
    %v1080 = vsub.f32 %v603, %v853
    %v1081 = vsub.f32 %v714, %v854
    %v1082 = vsub.f32 %v716, %v855
    %v1083 = vsub.f32 %v607, %v852
    %v1084 = vsub.f32 %v609, %v853
    %v1085 = vsub.f32 %v720, %v854
    %v1086 = vsub.f32 %v722, %v855
    %v1087 = vsub.f32 %v611, %v852
    %v1088 = vsub.f32 %v613, %v853
    %v1089 = vsub.f32 %v724, %v854
    %v1090 = vsub.f32 %v726, %v855
    %v1091 = vsub.f32 %v617, %v852
    %v1092 = vsub.f32 %v619, %v853
    %v1093 = vsub.f32 %v730, %v854
    %v1094 = vsub.f32 %v732, %v855
    %v1095 = vsub.f32 %v621, %v852
    %v1096 = vsub.f32 %v623, %v853
    %v1097 = vsub.f32 %v734, %v854
    %v1098 = vsub.f32 %v736, %v855
    %v1099 = vsub.f32 %v627, %v852
    %v1100 = vsub.f32 %v629, %v853
    %v1101 = vsub.f32 %v740, %v854
    %v1102 = vsub.f32 %v742, %v855
    %v1103 = vsub.f32 %v631, %v852
    %v1104 = vsub.f32 %v633, %v853
    %v1105 = vsub.f32 %v744, %v854
    %v1106 = vsub.f32 %v746, %v855
    %v1107 = vsub.f32 %v637, %v852
    %v1108 = vsub.f32 %v639, %v853
    %v1109 = vsub.f32 %v750, %v854
    %v1110 = vsub.f32 %v752, %v855
    %v1111 = vsub.f32 %v641, %v852
    %v1112 = vsub.f32 %v643, %v853
    %v1113 = vsub.f32 %v754, %v854
    %v1114 = vsub.f32 %v756, %v855
    %v1115 = vsub.f32 %v647, %v852
    %v1116 = vsub.f32 %v649, %v853
    %v1117 = vsub.f32 %v760, %v854
    %v1118 = vsub.f32 %v762, %v855
    %v1119 = vsub.f32 %v651, %v852
    %v1120 = vsub.f32 %v653, %v853
    %v1121 = vsub.f32 %v764, %v854
    %v1122 = vsub.f32 %v766, %v855
    %v1124 = vlaneseq
    %v1125 = vshrl.u32 %v1124, 7
    %v1126 = vsub.s32 0, %v1125
    %v1127 = vrot.slane %v1058, %v1126
    %v1128 = vlaneseq
    %v1129 = vshrl.u32 %v1128, 7
    %v1130 = vsub.s32 1, %v1129
    %v1131 = vrot.slane %v1058, %v1130
    %v1132 = vlaneseq
    %v1133 = vshrl.u32 %v1132, 7
    %v1134 = vsub.s32 2, %v1133
    %v1135 = vrot.slane %v1058, %v1134
    %v1136 = vlaneseq
    %v1137 = vshrl.u32 %v1136, 7
    %v1138 = vsub.s32 3, %v1137
    %v1139 = vrot.slane %v1058, %v1138
    %v1144 = vmul.f32 %v1059, %v1127
    %v1145 = vmul.f32 %v1060, %v1131
    %v1146 = vmul.f32 %v1061, %v1135
    %v1147 = vmul.f32 %v1062, %v1139
    %v1148 = vmul.f32 %v1063, %v1127
    %v1149 = vmul.f32 %v1064, %v1131
    %v1150 = vmul.f32 %v1065, %v1135
    %v1151 = vmul.f32 %v1066, %v1139
    %v1152 = vmul.f32 %v1067, %v1127
    %v1153 = vmul.f32 %v1068, %v1131
    %v1154 = vmul.f32 %v1069, %v1135
    %v1155 = vmul.f32 %v1070, %v1139
    %v1156 = vmul.f32 %v1071, %v1127
    %v1157 = vmul.f32 %v1072, %v1131
    %v1158 = vmul.f32 %v1073, %v1135
    %v1159 = vmul.f32 %v1074, %v1139
    %v1160 = vmul.f32 %v1075, %v1127
    %v1161 = vmul.f32 %v1076, %v1131
    %v1162 = vmul.f32 %v1077, %v1135
    %v1163 = vmul.f32 %v1078, %v1139
    %v1164 = vmul.f32 %v1079, %v1127
    %v1165 = vmul.f32 %v1080, %v1131
    %v1166 = vmul.f32 %v1081, %v1135
    %v1167 = vmul.f32 %v1082, %v1139
    %v1168 = vmul.f32 %v1083, %v1127
    %v1169 = vmul.f32 %v1084, %v1131
    %v1170 = vmul.f32 %v1085, %v1135
    %v1171 = vmul.f32 %v1086, %v1139
    %v1172 = vmul.f32 %v1087, %v1127
    %v1173 = vmul.f32 %v1088, %v1131
    %v1174 = vmul.f32 %v1089, %v1135
    %v1175 = vmul.f32 %v1090, %v1139
    %v1176 = vmul.f32 %v1091, %v1127
    %v1177 = vmul.f32 %v1092, %v1131
    %v1178 = vmul.f32 %v1093, %v1135
    %v1179 = vmul.f32 %v1094, %v1139
    %v1180 = vmul.f32 %v1095, %v1127
    %v1181 = vmul.f32 %v1096, %v1131
    %v1182 = vmul.f32 %v1097, %v1135
    %v1183 = vmul.f32 %v1098, %v1139
    %v1184 = vmul.f32 %v1099, %v1127
    %v1185 = vmul.f32 %v1100, %v1131
    %v1186 = vmul.f32 %v1101, %v1135
    %v1187 = vmul.f32 %v1102, %v1139
    %v1188 = vmul.f32 %v1103, %v1127
    %v1189 = vmul.f32 %v1104, %v1131
    %v1190 = vmul.f32 %v1105, %v1135
    %v1191 = vmul.f32 %v1106, %v1139
    %v1192 = vmul.f32 %v1107, %v1127
    %v1193 = vmul.f32 %v1108, %v1131
    %v1194 = vmul.f32 %v1109, %v1135
    %v1195 = vmul.f32 %v1110, %v1139
    %v1196 = vmul.f32 %v1111, %v1127
    %v1197 = vmul.f32 %v1112, %v1131
    %v1198 = vmul.f32 %v1113, %v1135
    %v1199 = vmul.f32 %v1114, %v1139
    %v1200 = vmul.f32 %v1115, %v1127
    %v1201 = vmul.f32 %v1116, %v1131
    %v1202 = vmul.f32 %v1117, %v1135
    %v1203 = vmul.f32 %v1118, %v1139
    %v1204 = vmul.f32 %v1119, %v1127
    %v1205 = vmul.f32 %v1120, %v1131
    %v1206 = vmul.f32 %v1121, %v1135
    %v1207 = vmul.f32 %v1122, %v1139
    %v1208 = vld [vmem:[%s3] sm:$0xf]
    %v1210 = vlaneseq
    %v1211 = vshrl.u32 %v1210, 7
    %v1212 = vsub.s32 0, %v1211
    %v1213 = vrot.slane %v1208, %v1212
    %v1214 = vlaneseq
    %v1215 = vshrl.u32 %v1214, 7
    %v1216 = vsub.s32 1, %v1215
    %v1217 = vrot.slane %v1208, %v1216
    %v1218 = vlaneseq
    %v1219 = vshrl.u32 %v1218, 7
    %v1220 = vsub.s32 2, %v1219
    %v1221 = vrot.slane %v1208, %v1220
    %v1222 = vlaneseq
    %v1223 = vshrl.u32 %v1222, 7
    %v1224 = vsub.s32 3, %v1223
    %v1225 = vrot.slane %v1208, %v1224
    %v1230 = vadd.f32 %v1144, %v1213
    %v1231 = vadd.f32 %v1145, %v1217
    %v1232 = vadd.f32 %v1146, %v1221
    %v1233 = vadd.f32 %v1147, %v1225
    %v1234 = vadd.f32 %v1148, %v1213
    %v1235 = vadd.f32 %v1149, %v1217
    %v1236 = vadd.f32 %v1150, %v1221
    %v1237 = vadd.f32 %v1151, %v1225
    %v1238 = vadd.f32 %v1152, %v1213
    %v1239 = vadd.f32 %v1153, %v1217
    %v1240 = vadd.f32 %v1154, %v1221
    %v1241 = vadd.f32 %v1155, %v1225
    %v1242 = vadd.f32 %v1156, %v1213
    %v1243 = vadd.f32 %v1157, %v1217
    %v1244 = vadd.f32 %v1158, %v1221
    %v1245 = vadd.f32 %v1159, %v1225
    %v1246 = vadd.f32 %v1160, %v1213
    %v1247 = vadd.f32 %v1161, %v1217
    %v1248 = vadd.f32 %v1162, %v1221
    %v1249 = vadd.f32 %v1163, %v1225
    %v1250 = vadd.f32 %v1164, %v1213
    %v1251 = vadd.f32 %v1165, %v1217
    %v1252 = vadd.f32 %v1166, %v1221
    %v1253 = vadd.f32 %v1167, %v1225
    %v1254 = vadd.f32 %v1168, %v1213
    %v1255 = vadd.f32 %v1169, %v1217
    %v1256 = vadd.f32 %v1170, %v1221
    %v1257 = vadd.f32 %v1171, %v1225
    %v1258 = vadd.f32 %v1172, %v1213
    %v1259 = vadd.f32 %v1173, %v1217
    %v1260 = vadd.f32 %v1174, %v1221
    %v1261 = vadd.f32 %v1175, %v1225
    %v1262 = vadd.f32 %v1176, %v1213
    %v1263 = vadd.f32 %v1177, %v1217
    %v1264 = vadd.f32 %v1178, %v1221
    %v1265 = vadd.f32 %v1179, %v1225
    %v1266 = vadd.f32 %v1180, %v1213
    %v1267 = vadd.f32 %v1181, %v1217
    %v1268 = vadd.f32 %v1182, %v1221
    %v1269 = vadd.f32 %v1183, %v1225
    %v1270 = vadd.f32 %v1184, %v1213
    %v1271 = vadd.f32 %v1185, %v1217
    %v1272 = vadd.f32 %v1186, %v1221
    %v1273 = vadd.f32 %v1187, %v1225
    %v1274 = vadd.f32 %v1188, %v1213
    %v1275 = vadd.f32 %v1189, %v1217
    %v1276 = vadd.f32 %v1190, %v1221
    %v1277 = vadd.f32 %v1191, %v1225
    %v1278 = vadd.f32 %v1192, %v1213
    %v1279 = vadd.f32 %v1193, %v1217
    %v1280 = vadd.f32 %v1194, %v1221
    %v1281 = vadd.f32 %v1195, %v1225
    %v1282 = vadd.f32 %v1196, %v1213
    %v1283 = vadd.f32 %v1197, %v1217
    %v1284 = vadd.f32 %v1198, %v1221
    %v1285 = vadd.f32 %v1199, %v1225
    %v1286 = vadd.f32 %v1200, %v1213
    %v1287 = vadd.f32 %v1201, %v1217
    %v1288 = vadd.f32 %v1202, %v1221
    %v1289 = vadd.f32 %v1203, %v1225
    %v1290 = vadd.f32 %v1204, %v1213
    %v1291 = vadd.f32 %v1205, %v1217
    %v1292 = vadd.f32 %v1206, %v1221
    %v1293 = vadd.f32 %v1207, %v1225
    %v1294 = vmax.f32 %v1230, 0.0
    %v1295 = vmax.f32 %v1231, 0.0
    %v1296 = vmax.f32 %v1232, 0.0
    %v1297 = vmax.f32 %v1233, 0.0
    %v1298 = vmax.f32 %v1234, 0.0
    %v1299 = vmax.f32 %v1235, 0.0
    %v1300 = vmax.f32 %v1236, 0.0
    %v1301 = vmax.f32 %v1237, 0.0
    %v1302 = vmax.f32 %v1238, 0.0
    %v1303 = vmax.f32 %v1239, 0.0
    %v1304 = vmax.f32 %v1240, 0.0
    %v1305 = vmax.f32 %v1241, 0.0
    %v1306 = vmax.f32 %v1242, 0.0
    %v1307 = vmax.f32 %v1243, 0.0
    %v1308 = vmax.f32 %v1244, 0.0
    %v1309 = vmax.f32 %v1245, 0.0
    %v1310 = vmax.f32 %v1246, 0.0
    %v1311 = vmax.f32 %v1247, 0.0
    %v1312 = vmax.f32 %v1248, 0.0
    %v1313 = vmax.f32 %v1249, 0.0
    %v1314 = vmax.f32 %v1250, 0.0
    %v1315 = vmax.f32 %v1251, 0.0
    %v1316 = vmax.f32 %v1252, 0.0
    %v1317 = vmax.f32 %v1253, 0.0
    %v1318 = vmax.f32 %v1254, 0.0
    %v1319 = vmax.f32 %v1255, 0.0
    %v1320 = vmax.f32 %v1256, 0.0
    %v1321 = vmax.f32 %v1257, 0.0
    %v1322 = vmax.f32 %v1258, 0.0
    %v1323 = vmax.f32 %v1259, 0.0
    %v1324 = vmax.f32 %v1260, 0.0
    %v1325 = vmax.f32 %v1261, 0.0
    %v1326 = vmax.f32 %v1262, 0.0
    %v1327 = vmax.f32 %v1263, 0.0
    %v1328 = vmax.f32 %v1264, 0.0
    %v1329 = vmax.f32 %v1265, 0.0
    %v1330 = vmax.f32 %v1266, 0.0
    %v1331 = vmax.f32 %v1267, 0.0
    %v1332 = vmax.f32 %v1268, 0.0
    %v1333 = vmax.f32 %v1269, 0.0
    %v1334 = vmax.f32 %v1270, 0.0
    %v1335 = vmax.f32 %v1271, 0.0
    %v1336 = vmax.f32 %v1272, 0.0
    %v1337 = vmax.f32 %v1273, 0.0
    %v1338 = vmax.f32 %v1274, 0.0
    %v1339 = vmax.f32 %v1275, 0.0
    %v1340 = vmax.f32 %v1276, 0.0
    %v1341 = vmax.f32 %v1277, 0.0
    %v1342 = vmax.f32 %v1278, 0.0
    %v1343 = vmax.f32 %v1279, 0.0
    %v1344 = vmax.f32 %v1280, 0.0
    %v1345 = vmax.f32 %v1281, 0.0
    %v1346 = vmax.f32 %v1282, 0.0
    %v1347 = vmax.f32 %v1283, 0.0
    %v1348 = vmax.f32 %v1284, 0.0
    %v1349 = vmax.f32 %v1285, 0.0
    %v1350 = vmax.f32 %v1286, 0.0
    %v1351 = vmax.f32 %v1287, 0.0
    %v1352 = vmax.f32 %v1288, 0.0
    %v1353 = vmax.f32 %v1289, 0.0
    %v1354 = vmax.f32 %v1290, 0.0
    %v1355 = vmax.f32 %v1291, 0.0
    %v1356 = vmax.f32 %v1292, 0.0
    %v1357 = vmax.f32 %v1293, 0.0
    %v1358 = vpack.c.bf16 %v1298, %v1294
    %v1359 = vpack.c.bf16 %v1299, %v1295
    %v1360 = vpack.c.bf16 %v1300, %v1296
    %v1361 = vpack.c.bf16 %v1301, %v1297
    %v1362 = vpack.c.bf16 %v1306, %v1302
    %v1363 = vpack.c.bf16 %v1307, %v1303
    %v1364 = vpack.c.bf16 %v1308, %v1304
    %v1365 = vpack.c.bf16 %v1309, %v1305
    %v1366 = vpack.c.bf16 %v1314, %v1310
    %v1367 = vpack.c.bf16 %v1315, %v1311
    %v1368 = vpack.c.bf16 %v1316, %v1312
    %v1369 = vpack.c.bf16 %v1317, %v1313
    %v1370 = vpack.c.bf16 %v1322, %v1318
    %v1371 = vpack.c.bf16 %v1323, %v1319
    %v1372 = vpack.c.bf16 %v1324, %v1320
    %v1373 = vpack.c.bf16 %v1325, %v1321
    %v1374 = vpack.c.bf16 %v1330, %v1326
    %v1375 = vpack.c.bf16 %v1331, %v1327
    %v1376 = vpack.c.bf16 %v1332, %v1328
    %v1377 = vpack.c.bf16 %v1333, %v1329
    %v1378 = vpack.c.bf16 %v1338, %v1334
    %v1379 = vpack.c.bf16 %v1339, %v1335
    %v1380 = vpack.c.bf16 %v1340, %v1336
    %v1381 = vpack.c.bf16 %v1341, %v1337
    %v1382 = vpack.c.bf16 %v1346, %v1342
    %v1383 = vpack.c.bf16 %v1347, %v1343
    %v1384 = vpack.c.bf16 %v1348, %v1344
    %v1385 = vpack.c.bf16 %v1349, %v1345
    %v1386 = vpack.c.bf16 %v1354, %v1350
    %v1387 = vpack.c.bf16 %v1355, %v1351
    %v1388 = vpack.c.bf16 %v1356, %v1352
    %v1389 = vpack.c.bf16 %v1357, %v1353
    %v1390 = vld [vmem:[#allocation5] sm:$0xff]
    %v1391 = vld [vmem:[#allocation5 + $0x8] sm:$0xf]
    %v1392 = vld [vmem:[#allocation5 + $0xc] sm:$0xff]
    %v1393 = vld [vmem:[#allocation5 + $0x14] sm:$0xf]
    %v1394 = vld [vmem:[#allocation5 + $0x18] sm:$0xff]
    %v1395 = vld [vmem:[#allocation5 + $0x20] sm:$0xf]
    %v1396 = vld [vmem:[#allocation5 + $0x24] sm:$0xff]
    %v1397 = vld [vmem:[#allocation5 + $0x2c] sm:$0xf]
    %v1398 = vld [vmem:[#allocation5 + $0x30] sm:$0xff]
    %v1399 = vld [vmem:[#allocation5 + $0x38] sm:$0xf]
    %v1400 = vld [vmem:[#allocation5 + $0x3c] sm:$0xff]
    %v1401 = vld [vmem:[#allocation5 + $0x44] sm:$0xf]
    %v1402 = vld [vmem:[#allocation5 + $0x48] sm:$0xff]
    %v1403 = vld [vmem:[#allocation5 + $0x50] sm:$0xf]
    %v1404 = vld [vmem:[#allocation5 + $0x54] sm:$0xff]
    %v1405 = vld [vmem:[#allocation5 + $0x5c] sm:$0xf]
    %v1406 = vld [vmem:[#allocation5 + $0x60] sm:$0xff]
    %v1407 = vld [vmem:[#allocation5 + $0x68] sm:$0xf]
    %v1408 = vld [vmem:[#allocation5 + $0x6c] sm:$0xff]
    %v1409 = vld [vmem:[#allocation5 + $0x74] sm:$0xf]
    %v1410 = vld [vmem:[#allocation5 + $0x78] sm:$0xff]
    %v1411 = vld [vmem:[#allocation5 + $0x80] sm:$0xf]
    %v1412 = vld [vmem:[#allocation5 + $0x84] sm:$0xff]
    %v1413 = vld [vmem:[#allocation5 + $0x8c] sm:$0xf]
    %v1414 = vld [vmem:[#allocation5 + $0x90] sm:$0xff]
    %v1415 = vld [vmem:[#allocation5 + $0x98] sm:$0xf]
    %v1416 = vld [vmem:[#allocation5 + $0x9c] sm:$0xff]
    %v1417 = vld [vmem:[#allocation5 + $0xa4] sm:$0xf]
    %v1418 = vld [vmem:[#allocation5 + $0xa8] sm:$0xff]
    %v1419 = vld [vmem:[#allocation5 + $0xb0] sm:$0xf]
    %v1420 = vld [vmem:[#allocation5 + $0xb4] sm:$0xff]
    %v1421 = vld [vmem:[#allocation5 + $0xbc] sm:$0xf]
    %v1422 = vld [vmem:[#allocation5 + $0xc0] sm:$0xff]
    %v1423 = vld [vmem:[#allocation5 + $0xc8] sm:$0xf]
    %v1424 = vld [vmem:[#allocation5 + $0xcc] sm:$0xff]
    %v1425 = vld [vmem:[#allocation5 + $0xd4] sm:$0xf]
    %v1426 = vld [vmem:[#allocation5 + $0xd8] sm:$0xff]
    %v1427 = vld [vmem:[#allocation5 + $0xe0] sm:$0xf]
    %v1428 = vld [vmem:[#allocation5 + $0xe4] sm:$0xff]
    %v1429 = vld [vmem:[#allocation5 + $0xec] sm:$0xf]
    %v1430 = vld [vmem:[#allocation5 + $0xf0] sm:$0xff]
    %v1431 = vld [vmem:[#allocation5 + $0xf8] sm:$0xf]
    %v1432 = vld [vmem:[#allocation5 + $0xfc] sm:$0xff]
    %v1433 = vld [vmem:[#allocation5 + $0x104] sm:$0xf]
    %v1434 = vld [vmem:[#allocation5 + $0x108] sm:$0xff]
    %v1435 = vld [vmem:[#allocation5 + $0x110] sm:$0xf]
    %v1436 = vld [vmem:[#allocation5 + $0x114] sm:$0xff]
    %v1437 = vld [vmem:[#allocation5 + $0x11c] sm:$0xf]
    %v1438 = vld [vmem:[#allocation5 + $0x120] sm:$0xff]
    %v1439 = vld [vmem:[#allocation5 + $0x128] sm:$0xf]
    %v1440 = vld [vmem:[#allocation5 + $0x12c] sm:$0xff]
    %v1441 = vld [vmem:[#allocation5 + $0x134] sm:$0xf]
    %v1442 = vld [vmem:[#allocation5 + $0x138] sm:$0xff]
    %v1443 = vld [vmem:[#allocation5 + $0x140] sm:$0xf]
    %v1444 = vld [vmem:[#allocation5 + $0x144] sm:$0xff]
    %v1445 = vld [vmem:[#allocation5 + $0x14c] sm:$0xf]
    %v1446 = vld [vmem:[#allocation5 + $0x150] sm:$0xff]
    %v1447 = vld [vmem:[#allocation5 + $0x158] sm:$0xf]
    %v1448 = vld [vmem:[#allocation5 + $0x15c] sm:$0xff]
    %v1449 = vld [vmem:[#allocation5 + $0x164] sm:$0xf]
    %v1450 = vld [vmem:[#allocation5 + $0x168] sm:$0xff]
    %v1451 = vld [vmem:[#allocation5 + $0x170] sm:$0xf]
    %v1452 = vld [vmem:[#allocation5 + $0x174] sm:$0xff]
    %v1453 = vld [vmem:[#allocation5 + $0x17c] sm:$0xf]
    %v1454 = vld [vmem:[#allocation5 + $0x180] sm:$0xff]
    %v1455 = vld [vmem:[#allocation5 + $0x188] sm:$0xf]
    %v1456 = vld [vmem:[#allocation5 + $0x18c] sm:$0xff]
    %v1457 = vld [vmem:[#allocation5 + $0x194] sm:$0xf]
    %v1458 = vld [vmem:[#allocation5 + $0x198] sm:$0xff]
    %v1459 = vld [vmem:[#allocation5 + $0x1a0] sm:$0xf]
    %v1460 = vld [vmem:[#allocation5 + $0x1a4] sm:$0xff]
    %v1461 = vld [vmem:[#allocation5 + $0x1ac] sm:$0xf]
    %v1462 = vld [vmem:[#allocation5 + $0x1b0] sm:$0xff]
    %v1463 = vld [vmem:[#allocation5 + $0x1b8] sm:$0xf]
    %v1464 = vld [vmem:[#allocation5 + $0x1bc] sm:$0xff]
    %v1465 = vld [vmem:[#allocation5 + $0x1c4] sm:$0xf]
    %v1466 = vld [vmem:[#allocation5 + $0x1c8] sm:$0xff]
    %v1467 = vld [vmem:[#allocation5 + $0x1d0] sm:$0xf]
    %v1468 = vld [vmem:[#allocation5 + $0x1d4] sm:$0xff]
    %v1469 = vld [vmem:[#allocation5 + $0x1dc] sm:$0xf]
    %v1470 = vld [vmem:[#allocation5 + $0x1e0] sm:$0xff]
    %v1471 = vld [vmem:[#allocation5 + $0x1e8] sm:$0xf]
    %v1472 = vld [vmem:[#allocation5 + $0x1ec] sm:$0xff]
    %v1473 = vld [vmem:[#allocation5 + $0x1f4] sm:$0xf]
    %v1474 = vld [vmem:[#allocation5 + $0x1f8] sm:$0xff]
    %v1475 = vld [vmem:[#allocation5 + $0x200] sm:$0xf]
    %v1476 = vld [vmem:[#allocation5 + $0x204] sm:$0xff]
    %v1477 = vld [vmem:[#allocation5 + $0x20c] sm:$0xf]
    %v1478 = vld [vmem:[#allocation5 + $0x210] sm:$0xff]
    %v1479 = vld [vmem:[#allocation5 + $0x218] sm:$0xf]
    %v1480 = vld [vmem:[#allocation5 + $0x21c] sm:$0xff]
    %v1481 = vld [vmem:[#allocation5 + $0x224] sm:$0xf]
    %v1482 = vld [vmem:[#allocation5 + $0x228] sm:$0xff]
    %v1483 = vld [vmem:[#allocation5 + $0x230] sm:$0xf]
    %v1484 = vld [vmem:[#allocation5 + $0x234] sm:$0xff]
    %v1485 = vld [vmem:[#allocation5 + $0x23c] sm:$0xf]
    %v1486 = vld [vmem:[#allocation5 + $0x240] sm:$0xff]
    %v1487 = vld [vmem:[#allocation5 + $0x248] sm:$0xf]
    %v1488 = vld [vmem:[#allocation5 + $0x24c] sm:$0xff]
    %v1489 = vld [vmem:[#allocation5 + $0x254] sm:$0xf]
    %v1490 = vld [vmem:[#allocation5 + $0x258] sm:$0xff]
    %v1491 = vld [vmem:[#allocation5 + $0x260] sm:$0xf]
    %v1492 = vld [vmem:[#allocation5 + $0x264] sm:$0xff]
    %v1493 = vld [vmem:[#allocation5 + $0x26c] sm:$0xf]
    %v1494 = vld [vmem:[#allocation5 + $0x270] sm:$0xff]
    %v1495 = vld [vmem:[#allocation5 + $0x278] sm:$0xf]
    %v1496 = vld [vmem:[#allocation5 + $0x27c] sm:$0xff]
    %v1497 = vld [vmem:[#allocation5 + $0x284] sm:$0xf]
    %v1498 = vld [vmem:[#allocation5 + $0x288] sm:$0xff]
    %v1499 = vld [vmem:[#allocation5 + $0x290] sm:$0xf]
    %v1500 = vld [vmem:[#allocation5 + $0x294] sm:$0xff]
    %v1501 = vld [vmem:[#allocation5 + $0x29c] sm:$0xf]
    %v1502 = vld [vmem:[#allocation5 + $0x2a0] sm:$0xff]
    %v1503 = vld [vmem:[#allocation5 + $0x2a8] sm:$0xf]
    %v1504 = vld [vmem:[#allocation5 + $0x2ac] sm:$0xff]
    %v1505 = vld [vmem:[#allocation5 + $0x2b4] sm:$0xf]
    %v1506 = vld [vmem:[#allocation5 + $0x2b8] sm:$0xff]
    %v1507 = vld [vmem:[#allocation5 + $0x2c0] sm:$0xf]
    %v1508 = vld [vmem:[#allocation5 + $0x2c4] sm:$0xff]
    %v1509 = vld [vmem:[#allocation5 + $0x2cc] sm:$0xf]
    %v1510 = vld [vmem:[#allocation5 + $0x2d0] sm:$0xff]
    %v1511 = vld [vmem:[#allocation5 + $0x2d8] sm:$0xf]
    %v1512 = vld [vmem:[#allocation5 + $0x2dc] sm:$0xff]
    %v1513 = vld [vmem:[#allocation5 + $0x2e4] sm:$0xf]
    %v1514 = vld [vmem:[#allocation5 + $0x2e8] sm:$0xff]
    %v1515 = vld [vmem:[#allocation5 + $0x2f0] sm:$0xf]
    %v1516 = vld [vmem:[#allocation5 + $0x2f4] sm:$0xff]
    %v1517 = vld [vmem:[#allocation5 + $0x2fc] sm:$0xf]
    %v1646 = vunpack.c.l.b16 %v1390
    %v1647 = vunpack.c.h.b16 %v1390
    %v1648 = vunpack.c.l.b16 %v1391
    %v1649 = vunpack.c.l.b16 %v1392
    %v1650 = vunpack.c.h.b16 %v1392
    %v1651 = vunpack.c.l.b16 %v1393
    %v1652 = vunpack.c.l.b16 %v1394
    %v1653 = vunpack.c.h.b16 %v1394
    %v1654 = vunpack.c.l.b16 %v1395
    %v1655 = vunpack.c.l.b16 %v1396
    %v1656 = vunpack.c.h.b16 %v1396
    %v1657 = vunpack.c.l.b16 %v1397
    %v1658 = vunpack.c.l.b16 %v1398
    %v1659 = vunpack.c.h.b16 %v1398
    %v1660 = vunpack.c.l.b16 %v1399
    %v1661 = vunpack.c.l.b16 %v1400
    %v1662 = vunpack.c.h.b16 %v1400
    %v1663 = vunpack.c.l.b16 %v1401
    %v1664 = vunpack.c.l.b16 %v1402
    %v1665 = vunpack.c.h.b16 %v1402
    %v1666 = vunpack.c.l.b16 %v1403
    %v1667 = vunpack.c.l.b16 %v1404
    %v1668 = vunpack.c.h.b16 %v1404
    %v1669 = vunpack.c.l.b16 %v1405
    %v1670 = vunpack.c.l.b16 %v1406
    %v1671 = vunpack.c.h.b16 %v1406
    %v1672 = vunpack.c.l.b16 %v1407
    %v1673 = vunpack.c.l.b16 %v1408
    %v1674 = vunpack.c.h.b16 %v1408
    %v1675 = vunpack.c.l.b16 %v1409
    %v1676 = vunpack.c.l.b16 %v1410
    %v1677 = vunpack.c.h.b16 %v1410
    %v1678 = vunpack.c.l.b16 %v1411
    %v1679 = vunpack.c.l.b16 %v1412
    %v1680 = vunpack.c.h.b16 %v1412
    %v1681 = vunpack.c.l.b16 %v1413
    %v1682 = vunpack.c.l.b16 %v1414
    %v1683 = vunpack.c.h.b16 %v1414
    %v1684 = vunpack.c.l.b16 %v1415
    %v1685 = vunpack.c.l.b16 %v1416
    %v1686 = vunpack.c.h.b16 %v1416
    %v1687 = vunpack.c.l.b16 %v1417
    %v1688 = vunpack.c.l.b16 %v1418
    %v1689 = vunpack.c.h.b16 %v1418
    %v1690 = vunpack.c.l.b16 %v1419
    %v1691 = vunpack.c.l.b16 %v1420
    %v1692 = vunpack.c.h.b16 %v1420
    %v1693 = vunpack.c.l.b16 %v1421
    %v1694 = vunpack.c.l.b16 %v1422
    %v1695 = vunpack.c.h.b16 %v1422
    %v1696 = vunpack.c.l.b16 %v1423
    %v1697 = vunpack.c.l.b16 %v1424
    %v1698 = vunpack.c.h.b16 %v1424
    %v1699 = vunpack.c.l.b16 %v1425
    %v1700 = vunpack.c.l.b16 %v1426
    %v1701 = vunpack.c.h.b16 %v1426
    %v1702 = vunpack.c.l.b16 %v1427
    %v1703 = vunpack.c.l.b16 %v1428
    %v1704 = vunpack.c.h.b16 %v1428
    %v1705 = vunpack.c.l.b16 %v1429
    %v1706 = vunpack.c.l.b16 %v1430
    %v1707 = vunpack.c.h.b16 %v1430
    %v1708 = vunpack.c.l.b16 %v1431
    %v1709 = vunpack.c.l.b16 %v1432
    %v1710 = vunpack.c.h.b16 %v1432
    %v1711 = vunpack.c.l.b16 %v1433
    %v1712 = vunpack.c.l.b16 %v1434
    %v1713 = vunpack.c.h.b16 %v1434
    %v1714 = vunpack.c.l.b16 %v1435
    %v1715 = vunpack.c.l.b16 %v1436
    %v1716 = vunpack.c.h.b16 %v1436
    %v1717 = vunpack.c.l.b16 %v1437
    %v1718 = vunpack.c.l.b16 %v1438
    %v1719 = vunpack.c.h.b16 %v1438
    %v1720 = vunpack.c.l.b16 %v1439
    %v1721 = vunpack.c.l.b16 %v1440
    %v1722 = vunpack.c.h.b16 %v1440
    %v1723 = vunpack.c.l.b16 %v1441
    %v1724 = vunpack.c.l.b16 %v1442
    %v1725 = vunpack.c.h.b16 %v1442
    %v1726 = vunpack.c.l.b16 %v1443
    %v1727 = vunpack.c.l.b16 %v1444
    %v1728 = vunpack.c.h.b16 %v1444
    %v1729 = vunpack.c.l.b16 %v1445
    %v1730 = vunpack.c.l.b16 %v1446
    %v1731 = vunpack.c.h.b16 %v1446
    %v1732 = vunpack.c.l.b16 %v1447
    %v1733 = vunpack.c.l.b16 %v1448
    %v1734 = vunpack.c.h.b16 %v1448
    %v1735 = vunpack.c.l.b16 %v1449
    %v1736 = vunpack.c.l.b16 %v1450
    %v1737 = vunpack.c.h.b16 %v1450
    %v1738 = vunpack.c.l.b16 %v1451
    %v1739 = vunpack.c.l.b16 %v1452
    %v1740 = vunpack.c.h.b16 %v1452
    %v1741 = vunpack.c.l.b16 %v1453
    %v1742 = vunpack.c.l.b16 %v1454
    %v1743 = vunpack.c.h.b16 %v1454
    %v1744 = vunpack.c.l.b16 %v1455
    %v1745 = vunpack.c.l.b16 %v1456
    %v1746 = vunpack.c.h.b16 %v1456
    %v1747 = vunpack.c.l.b16 %v1457
    %v1748 = vunpack.c.l.b16 %v1458
    %v1749 = vunpack.c.h.b16 %v1458
    %v1750 = vunpack.c.l.b16 %v1459
    %v1751 = vunpack.c.l.b16 %v1460
    %v1752 = vunpack.c.h.b16 %v1460
    %v1753 = vunpack.c.l.b16 %v1461
    %v1754 = vunpack.c.l.b16 %v1462
    %v1755 = vunpack.c.h.b16 %v1462
    %v1756 = vunpack.c.l.b16 %v1463
    %v1757 = vunpack.c.l.b16 %v1464
    %v1758 = vunpack.c.h.b16 %v1464
    %v1759 = vunpack.c.l.b16 %v1465
    %v1760 = vunpack.c.l.b16 %v1466
    %v1761 = vunpack.c.h.b16 %v1466
    %v1762 = vunpack.c.l.b16 %v1467
    %v1763 = vunpack.c.l.b16 %v1468
    %v1764 = vunpack.c.h.b16 %v1468
    %v1765 = vunpack.c.l.b16 %v1469
    %v1766 = vunpack.c.l.b16 %v1470
    %v1767 = vunpack.c.h.b16 %v1470
    %v1768 = vunpack.c.l.b16 %v1471
    %v1769 = vunpack.c.l.b16 %v1472
    %v1770 = vunpack.c.h.b16 %v1472
    %v1771 = vunpack.c.l.b16 %v1473
    %v1772 = vunpack.c.l.b16 %v1474
    %v1773 = vunpack.c.h.b16 %v1474
    %v1774 = vunpack.c.l.b16 %v1475
    %v1775 = vunpack.c.l.b16 %v1476
    %v1776 = vunpack.c.h.b16 %v1476
    %v1777 = vunpack.c.l.b16 %v1477
    %v1778 = vunpack.c.l.b16 %v1478
    %v1779 = vunpack.c.h.b16 %v1478
    %v1780 = vunpack.c.l.b16 %v1479
    %v1781 = vunpack.c.l.b16 %v1480
    %v1782 = vunpack.c.h.b16 %v1480
    %v1783 = vunpack.c.l.b16 %v1481
    %v1784 = vunpack.c.l.b16 %v1482
    %v1785 = vunpack.c.h.b16 %v1482
    %v1786 = vunpack.c.l.b16 %v1483
    %v1787 = vunpack.c.l.b16 %v1484
    %v1788 = vunpack.c.h.b16 %v1484
    %v1789 = vunpack.c.l.b16 %v1485
    %v1790 = vunpack.c.l.b16 %v1486
    %v1791 = vunpack.c.h.b16 %v1486
    %v1792 = vunpack.c.l.b16 %v1487
    %v1793 = vunpack.c.l.b16 %v1488
    %v1794 = vunpack.c.h.b16 %v1488
    %v1795 = vunpack.c.l.b16 %v1489
    %v1796 = vunpack.c.l.b16 %v1490
    %v1797 = vunpack.c.h.b16 %v1490
    %v1798 = vunpack.c.l.b16 %v1491
    %v1799 = vunpack.c.l.b16 %v1492
    %v1800 = vunpack.c.h.b16 %v1492
    %v1801 = vunpack.c.l.b16 %v1493
    %v1802 = vunpack.c.l.b16 %v1494
    %v1803 = vunpack.c.h.b16 %v1494
    %v1804 = vunpack.c.l.b16 %v1495
    %v1805 = vunpack.c.l.b16 %v1496
    %v1806 = vunpack.c.h.b16 %v1496
    %v1807 = vunpack.c.l.b16 %v1497
    %v1808 = vunpack.c.l.b16 %v1498
    %v1809 = vunpack.c.h.b16 %v1498
    %v1810 = vunpack.c.l.b16 %v1499
    %v1811 = vunpack.c.l.b16 %v1500
    %v1812 = vunpack.c.h.b16 %v1500
    %v1813 = vunpack.c.l.b16 %v1501
    %v1814 = vunpack.c.l.b16 %v1502
    %v1815 = vunpack.c.h.b16 %v1502
    %v1816 = vunpack.c.l.b16 %v1503
    %v1817 = vunpack.c.l.b16 %v1504
    %v1818 = vunpack.c.h.b16 %v1504
    %v1819 = vunpack.c.l.b16 %v1505
    %v1820 = vunpack.c.l.b16 %v1506
    %v1821 = vunpack.c.h.b16 %v1506
    %v1822 = vunpack.c.l.b16 %v1507
    %v1823 = vunpack.c.l.b16 %v1508
    %v1824 = vunpack.c.h.b16 %v1508
    %v1825 = vunpack.c.l.b16 %v1509
    %v1826 = vunpack.c.l.b16 %v1510
    %v1827 = vunpack.c.h.b16 %v1510
    %v1828 = vunpack.c.l.b16 %v1511
    %v1829 = vunpack.c.l.b16 %v1512
    %v1830 = vunpack.c.h.b16 %v1512
    %v1831 = vunpack.c.l.b16 %v1513
    %v1832 = vunpack.c.l.b16 %v1514
    %v1833 = vunpack.c.h.b16 %v1514
    %v1834 = vunpack.c.l.b16 %v1515
    %v1835 = vunpack.c.l.b16 %v1516
    %v1836 = vunpack.c.h.b16 %v1516
    %v1837 = vunpack.c.l.b16 %v1517
    %v1838 = vpack.c.b16 %v1649, %v1646
    %v1839 = vpack.c.b16 %v1650, %v1647
    %v1840 = vpack.c.b16 %v1651, %v1648
    %v1841 = vpack.c.b16 %v1655, %v1652
    %v1842 = vpack.c.b16 %v1656, %v1653
    %v1843 = vpack.c.b16 %v1657, %v1654
    %v1844 = vpack.c.b16 %v1661, %v1658
    %v1845 = vpack.c.b16 %v1662, %v1659
    %v1846 = vpack.c.b16 %v1663, %v1660
    %v1847 = vpack.c.b16 %v1667, %v1664
    %v1848 = vpack.c.b16 %v1668, %v1665
    %v1849 = vpack.c.b16 %v1669, %v1666
    %v1850 = vpack.c.b16 %v1673, %v1670
    %v1851 = vpack.c.b16 %v1674, %v1671
    %v1852 = vpack.c.b16 %v1675, %v1672
    %v1853 = vpack.c.b16 %v1679, %v1676
    %v1854 = vpack.c.b16 %v1680, %v1677
    %v1855 = vpack.c.b16 %v1681, %v1678
    %v1856 = vpack.c.b16 %v1685, %v1682
    %v1857 = vpack.c.b16 %v1686, %v1683
    %v1858 = vpack.c.b16 %v1687, %v1684
    %v1859 = vpack.c.b16 %v1691, %v1688
    %v1860 = vpack.c.b16 %v1692, %v1689
    %v1861 = vpack.c.b16 %v1693, %v1690
    %v1862 = vpack.c.b16 %v1697, %v1694
    %v1863 = vpack.c.b16 %v1698, %v1695
    %v1864 = vpack.c.b16 %v1699, %v1696
    %v1865 = vpack.c.b16 %v1703, %v1700
    %v1866 = vpack.c.b16 %v1704, %v1701
    %v1867 = vpack.c.b16 %v1705, %v1702
    %v1868 = vpack.c.b16 %v1709, %v1706
    %v1869 = vpack.c.b16 %v1710, %v1707
    %v1870 = vpack.c.b16 %v1711, %v1708
    %v1871 = vpack.c.b16 %v1715, %v1712
    %v1872 = vpack.c.b16 %v1716, %v1713
    %v1873 = vpack.c.b16 %v1717, %v1714
    %v1874 = vpack.c.b16 %v1721, %v1718
    %v1875 = vpack.c.b16 %v1722, %v1719
    %v1876 = vpack.c.b16 %v1723, %v1720
    %v1877 = vpack.c.b16 %v1727, %v1724
    %v1878 = vpack.c.b16 %v1728, %v1725
    %v1879 = vpack.c.b16 %v1729, %v1726
    %v1880 = vpack.c.b16 %v1733, %v1730
    %v1881 = vpack.c.b16 %v1734, %v1731
    %v1882 = vpack.c.b16 %v1735, %v1732
    %v1883 = vpack.c.b16 %v1739, %v1736
    %v1884 = vpack.c.b16 %v1740, %v1737
    %v1885 = vpack.c.b16 %v1741, %v1738
    %v1886 = vpack.c.b16 %v1745, %v1742
    %v1887 = vpack.c.b16 %v1746, %v1743
    %v1888 = vpack.c.b16 %v1747, %v1744
    %v1889 = vpack.c.b16 %v1751, %v1748
    %v1890 = vpack.c.b16 %v1752, %v1749
    %v1891 = vpack.c.b16 %v1753, %v1750
    %v1892 = vpack.c.b16 %v1757, %v1754
    %v1893 = vpack.c.b16 %v1758, %v1755
    %v1894 = vpack.c.b16 %v1759, %v1756
    %v1895 = vpack.c.b16 %v1763, %v1760
    %v1896 = vpack.c.b16 %v1764, %v1761
    %v1897 = vpack.c.b16 %v1765, %v1762
    %v1898 = vpack.c.b16 %v1769, %v1766
    %v1899 = vpack.c.b16 %v1770, %v1767
    %v1900 = vpack.c.b16 %v1771, %v1768
    %v1901 = vpack.c.b16 %v1775, %v1772
    %v1902 = vpack.c.b16 %v1776, %v1773
    %v1903 = vpack.c.b16 %v1777, %v1774
    %v1904 = vpack.c.b16 %v1781, %v1778
    %v1905 = vpack.c.b16 %v1782, %v1779
    %v1906 = vpack.c.b16 %v1783, %v1780
    %v1907 = vpack.c.b16 %v1787, %v1784
    %v1908 = vpack.c.b16 %v1788, %v1785
    %v1909 = vpack.c.b16 %v1789, %v1786
    %v1910 = vpack.c.b16 %v1793, %v1790
    %v1911 = vpack.c.b16 %v1794, %v1791
    %v1912 = vpack.c.b16 %v1795, %v1792
    %v1913 = vpack.c.b16 %v1799, %v1796
    %v1914 = vpack.c.b16 %v1800, %v1797
    %v1915 = vpack.c.b16 %v1801, %v1798
    %v1916 = vpack.c.b16 %v1805, %v1802
    %v1917 = vpack.c.b16 %v1806, %v1803
    %v1918 = vpack.c.b16 %v1807, %v1804
    %v1919 = vpack.c.b16 %v1811, %v1808
    %v1920 = vpack.c.b16 %v1812, %v1809
    %v1921 = vpack.c.b16 %v1813, %v1810
    %v1922 = vpack.c.b16 %v1817, %v1814
    %v1923 = vpack.c.b16 %v1818, %v1815
    %v1924 = vpack.c.b16 %v1819, %v1816
    %v1925 = vpack.c.b16 %v1823, %v1820
    %v1926 = vpack.c.b16 %v1824, %v1821
    %v1927 = vpack.c.b16 %v1825, %v1822
    %v1928 = vpack.c.b16 %v1829, %v1826
    %v1929 = vpack.c.b16 %v1830, %v1827
    %v1930 = vpack.c.b16 %v1831, %v1828
    %v1931 = vpack.c.b16 %v1835, %v1832
    %v1932 = vpack.c.b16 %v1836, %v1833
    %v1933 = vpack.c.b16 %v1837, %v1834
    %2030 = vmatprep.subr.bf16.mxu0 %v1839
    %2031 = vmatpush1.bf16.msra.mxu0 %v1838
    %2032 = vmatprep.subr.bf16.mxu0 %v1842
    %2033 = vmatpush1.bf16.msra.mxu0 %v1841
    %2034 = vmatprep.subr.bf16.mxu0 %v1845
    %2035 = vmatpush1.bf16.msra.mxu0 %v1844
    %2036 = vmatprep.subr.bf16.mxu0 %v1848
    %2037 = vmatpush1.bf16.msra.mxu0 %v1847
    %2038 = vmatprep.subr.bf16.mxu0 %v1851
    %2039 = vmatpush1.bf16.msra.mxu0 %v1850
    %2040 = vmatprep.subr.bf16.mxu0 %v1854
    %2041 = vmatpush1.bf16.msra.mxu0 %v1853
    %2042 = vmatprep.subr.bf16.mxu0 %v1857
    %2043 = vmatpush1.bf16.msra.mxu0 %v1856
    %2044 = vmatprep.subr.bf16.mxu0 %v1860
    %2045 = vmatpush1.bf16.msra.mxu0 %v1859
    %2046 = vmatprep.subr.bf16.mxu0 %v1863
    %2047 = vmatpush1.bf16.msra.mxu0 %v1862
    %2048 = vmatprep.subr.bf16.mxu0 %v1866
    %2049 = vmatpush1.bf16.msra.mxu0 %v1865
    %2050 = vmatprep.subr.bf16.mxu0 %v1869
    %2051 = vmatpush1.bf16.msra.mxu0 %v1868
    %2052 = vmatprep.subr.bf16.mxu0 %v1872
    %2053 = vmatpush1.bf16.msra.mxu0 %v1871
    %2054 = vmatprep.subr.bf16.mxu0 %v1875
    %2055 = vmatpush1.bf16.msra.mxu0 %v1874
    %2056 = vmatprep.subr.bf16.mxu0 %v1878
    %2057 = vmatpush1.bf16.msra.mxu0 %v1877
    %2058 = vmatprep.subr.bf16.mxu0 %v1881
    %2059 = vmatpush1.bf16.msra.mxu0 %v1880
    %2060 = vmatprep.subr.bf16.mxu0 %v1884
    %2061 = vmatpush1.bf16.msra.mxu0 %v1883
    %2062 = vmatprep.mubr.bf16.mxu0 %v1359
    %2063 = vmatmul.mubr.bf16.gmra.mrb[0].mxu0 %v1358
    %v2064 = vpop.f32.mrb[0].mxu0
    %v2065 = vadd.f32 0.0, %v2064
    %v2066 = vpop.f32.mrb[0].mxu0
    %v2067 = vadd.f32 0.0, %v2066
    %v2068 = vpop.f32.mrb[0].mxu0
    %v2069 = vadd.f32 0.0, %v2068
    %v2070 = vpop.f32.mrb[0].mxu0
    %v2071 = vadd.f32 0.0, %v2070
    %2072 = vmatprep.mubr.bf16.mxu0 %v1363
    %2073 = vmatmul.mubr.bf16.gmra.mrb[0].mxu0 %v1362
    %v2074 = vpop.f32.mrb[0].mxu0
    %v2075 = vadd.f32 0.0, %v2074
    %v2076 = vpop.f32.mrb[0].mxu0
    %v2077 = vadd.f32 0.0, %v2076
    %v2078 = vpop.f32.mrb[0].mxu0
    %v2079 = vadd.f32 0.0, %v2078
    %v2080 = vpop.f32.mrb[0].mxu0
    %v2081 = vadd.f32 0.0, %v2080
    %2082 = vmatprep.mubr.bf16.mxu0 %v1367
    %2083 = vmatmul.mubr.bf16.gmra.mrb[0].mxu0 %v1366
    %v2084 = vpop.f32.mrb[0].mxu0
    %v2085 = vadd.f32 0.0, %v2084
    %v2086 = vpop.f32.mrb[0].mxu0
    %v2087 = vadd.f32 0.0, %v2086
    %v2088 = vpop.f32.mrb[0].mxu0
    %v2089 = vadd.f32 0.0, %v2088
    %v2090 = vpop.f32.mrb[0].mxu0
    %v2091 = vadd.f32 0.0, %v2090
    %2092 = vmatprep.mubr.bf16.mxu0 %v1371
    %2093 = vmatmul.mubr.bf16.gmra.mrb[0].mxu0 %v1370
    %v2094 = vpop.f32.mrb[0].mxu0
    %v2095 = vadd.f32 0.0, %v2094
    %v2096 = vpop.f32.mrb[0].mxu0
    %v2097 = vadd.f32 0.0, %v2096
    %v2098 = vpop.f32.mrb[0].mxu0
    %v2099 = vadd.f32 0.0, %v2098
    %v2100 = vpop.f32.mrb[0].mxu0
    %v2101 = vadd.f32 0.0, %v2100
    %2102 = vmatprep.mubr.bf16.mxu0 %v1375
    %2103 = vmatmul.mubr.bf16.gmra.mrb[0].mxu0 %v1374
    %v2104 = vpop.f32.mrb[0].mxu0
    %v2105 = vadd.f32 0.0, %v2104
    %v2106 = vpop.f32.mrb[0].mxu0
    %v2107 = vadd.f32 0.0, %v2106
    %v2108 = vpop.f32.mrb[0].mxu0
    %v2109 = vadd.f32 0.0, %v2108
    %v2110 = vpop.f32.mrb[0].mxu0
    %v2111 = vadd.f32 0.0, %v2110
    %2112 = vmatprep.mubr.bf16.mxu0 %v1379
    %2113 = vmatmul.mubr.bf16.gmra.mrb[0].mxu0 %v1378
    %v2114 = vpop.f32.mrb[0].mxu0
    %v2115 = vadd.f32 0.0, %v2114
    %v2116 = vpop.f32.mrb[0].mxu0
    %v2117 = vadd.f32 0.0, %v2116
    %v2118 = vpop.f32.mrb[0].mxu0
    %v2119 = vadd.f32 0.0, %v2118
    %v2120 = vpop.f32.mrb[0].mxu0
    %v2121 = vadd.f32 0.0, %v2120
    %2122 = vmatprep.mubr.bf16.mxu0 %v1383
    %2123 = vmatmul.mubr.bf16.gmra.mrb[0].mxu0 %v1382
    %v2124 = vpop.f32.mrb[0].mxu0
    %v2125 = vadd.f32 0.0, %v2124
    %v2126 = vpop.f32.mrb[0].mxu0
    %v2127 = vadd.f32 0.0, %v2126
    %v2128 = vpop.f32.mrb[0].mxu0
    %v2129 = vadd.f32 0.0, %v2128
    %v2130 = vpop.f32.mrb[0].mxu0
    %v2131 = vadd.f32 0.0, %v2130
    %2132 = vmatprep.mubr.bf16.mxu0 %v1387
    %2133 = vmatmul.mubr.bf16.gmra.mrb[0].mxu0 %v1386
    %v2134 = vpop.f32.mrb[0].mxu0
    %v2135 = vadd.f32 0.0, %v2134
    %v2136 = vpop.f32.mrb[0].mxu0
    %v2137 = vadd.f32 0.0, %v2136
    %v2138 = vpop.f32.mrb[0].mxu0
    %v2139 = vadd.f32 0.0, %v2138
    %v2140 = vpop.f32.mrb[0].mxu0
    %v2141 = vadd.f32 0.0, %v2140
    %2142 = vdwg.mxu0
    %2143 = vmatprep.subr.bf16.mxu0 %v1887
    %2144 = vmatpush1.bf16.msra.mxu0 %v1886
    %2145 = vmatprep.subr.bf16.mxu0 %v1890
    %2146 = vmatpush1.bf16.msra.mxu0 %v1889
    %2147 = vmatprep.subr.bf16.mxu0 %v1893
    %2148 = vmatpush1.bf16.msra.mxu0 %v1892
    %2149 = vmatprep.subr.bf16.mxu0 %v1896
    %2150 = vmatpush1.bf16.msra.mxu0 %v1895
    %2151 = vmatprep.subr.bf16.mxu0 %v1899
    %2152 = vmatpush1.bf16.msra.mxu0 %v1898
    %2153 = vmatprep.subr.bf16.mxu0 %v1902
    %2154 = vmatpush1.bf16.msra.mxu0 %v1901
    %2155 = vmatprep.subr.bf16.mxu0 %v1905
    %2156 = vmatpush1.bf16.msra.mxu0 %v1904
    %2157 = vmatprep.subr.bf16.mxu0 %v1908
    %2158 = vmatpush1.bf16.msra.mxu0 %v1907
    %2159 = vmatprep.subr.bf16.mxu0 %v1911
    %2160 = vmatpush1.bf16.msra.mxu0 %v1910
    %2161 = vmatprep.subr.bf16.mxu0 %v1914
    %2162 = vmatpush1.bf16.msra.mxu0 %v1913
    %2163 = vmatprep.subr.bf16.mxu0 %v1917
    %2164 = vmatpush1.bf16.msra.mxu0 %v1916
    %2165 = vmatprep.subr.bf16.mxu0 %v1920
    %2166 = vmatpush1.bf16.msra.mxu0 %v1919
    %2167 = vmatprep.subr.bf16.mxu0 %v1923
    %2168 = vmatpush1.bf16.msra.mxu0 %v1922
    %2169 = vmatprep.subr.bf16.mxu0 %v1926
    %2170 = vmatpush1.bf16.msra.mxu0 %v1925
    %2171 = vmatprep.subr.bf16.mxu0 %v1929
    %2172 = vmatpush1.bf16.msra.mxu0 %v1928
    %2173 = vmatprep.subr.bf16.mxu0 %v1932
    %2174 = vmatpush1.bf16.msra.mxu0 %v1931
    %2175 = vmatprep.mubr.bf16.mxu0 %v1361
    %2176 = vmatmul.mubr.bf16.gmra.mrb[0].mxu0 %v1360
    %v2177 = vpop.f32.mrb[0].mxu0
    %v2178 = vadd.f32 %v2065, %v2177
    %v2179 = vpop.f32.mrb[0].mxu0
    %v2180 = vadd.f32 %v2067, %v2179
    %v2181 = vpop.f32.mrb[0].mxu0
    %v2182 = vadd.f32 %v2069, %v2181
    %v2183 = vpop.f32.mrb[0].mxu0
    %v2184 = vadd.f32 %v2071, %v2183
    %2185 = vmatprep.mubr.bf16.mxu0 %v1365
    %2186 = vmatmul.mubr.bf16.gmra.mrb[0].mxu0 %v1364
    %v2187 = vpop.f32.mrb[0].mxu0
    %v2188 = vadd.f32 %v2075, %v2187
    %v2189 = vpop.f32.mrb[0].mxu0
    %v2190 = vadd.f32 %v2077, %v2189
    %v2191 = vpop.f32.mrb[0].mxu0
    %v2192 = vadd.f32 %v2079, %v2191
    %v2193 = vpop.f32.mrb[0].mxu0
    %v2194 = vadd.f32 %v2081, %v2193
    %2195 = vmatprep.mubr.bf16.mxu0 %v1369
    %2196 = vmatmul.mubr.bf16.gmra.mrb[0].mxu0 %v1368
    %v2197 = vpop.f32.mrb[0].mxu0
    %v2198 = vadd.f32 %v2085, %v2197
    %v2199 = vpop.f32.mrb[0].mxu0
    %v2200 = vadd.f32 %v2087, %v2199
    %v2201 = vpop.f32.mrb[0].mxu0
    %v2202 = vadd.f32 %v2089, %v2201
    %v2203 = vpop.f32.mrb[0].mxu0
    %v2204 = vadd.f32 %v2091, %v2203
    %2205 = vmatprep.mubr.bf16.mxu0 %v1373
    %2206 = vmatmul.mubr.bf16.gmra.mrb[0].mxu0 %v1372
    %v2207 = vpop.f32.mrb[0].mxu0
    %v2208 = vadd.f32 %v2095, %v2207
    %v2209 = vpop.f32.mrb[0].mxu0
    %v2210 = vadd.f32 %v2097, %v2209
    %v2211 = vpop.f32.mrb[0].mxu0
    %v2212 = vadd.f32 %v2099, %v2211
    %v2213 = vpop.f32.mrb[0].mxu0
    %v2214 = vadd.f32 %v2101, %v2213
    %2215 = vmatprep.mubr.bf16.mxu0 %v1377
    %2216 = vmatmul.mubr.bf16.gmra.mrb[0].mxu0 %v1376
    %v2217 = vpop.f32.mrb[0].mxu0
    %v2218 = vadd.f32 %v2105, %v2217
    %v2219 = vpop.f32.mrb[0].mxu0
    %v2220 = vadd.f32 %v2107, %v2219
    %v2221 = vpop.f32.mrb[0].mxu0
    %v2222 = vadd.f32 %v2109, %v2221
    %v2223 = vpop.f32.mrb[0].mxu0
    %v2224 = vadd.f32 %v2111, %v2223
    %2225 = vmatprep.mubr.bf16.mxu0 %v1381
    %2226 = vmatmul.mubr.bf16.gmra.mrb[0].mxu0 %v1380
    %v2227 = vpop.f32.mrb[0].mxu0
    %v2228 = vadd.f32 %v2115, %v2227
    %v2229 = vpop.f32.mrb[0].mxu0
    %v2230 = vadd.f32 %v2117, %v2229
    %v2231 = vpop.f32.mrb[0].mxu0
    %v2232 = vadd.f32 %v2119, %v2231
    %v2233 = vpop.f32.mrb[0].mxu0
    %v2234 = vadd.f32 %v2121, %v2233
    %2235 = vmatprep.mubr.bf16.mxu0 %v1385
    %2236 = vmatmul.mubr.bf16.gmra.mrb[0].mxu0 %v1384
    %v2237 = vpop.f32.mrb[0].mxu0
    %v2238 = vadd.f32 %v2125, %v2237
    %v2239 = vpop.f32.mrb[0].mxu0
    %v2240 = vadd.f32 %v2127, %v2239
    %v2241 = vpop.f32.mrb[0].mxu0
    %v2242 = vadd.f32 %v2129, %v2241
    %v2243 = vpop.f32.mrb[0].mxu0
    %v2244 = vadd.f32 %v2131, %v2243
    %2245 = vmatprep.mubr.bf16.mxu0 %v1389
    %2246 = vmatmul.mubr.bf16.gmra.mrb[0].mxu0 %v1388
    %v2247 = vpop.f32.mrb[0].mxu0
    %v2248 = vadd.f32 %v2135, %v2247
    %v2249 = vpop.f32.mrb[0].mxu0
    %v2250 = vadd.f32 %v2137, %v2249
    %v2251 = vpop.f32.mrb[0].mxu0
    %v2252 = vadd.f32 %v2139, %v2251
    %v2253 = vpop.f32.mrb[0].mxu0
    %v2254 = vadd.f32 %v2141, %v2253
    %2255 = vdwg.mxu0
    %2256 = vmatprep.subr.bf16.mxu0 0
    %2257 = vmatpush1.bf16.msra.mxu0 %v1840
    %2258 = vmatprep.subr.bf16.mxu0 0
    %2259 = vmatpush1.bf16.msra.mxu0 %v1843
    %2260 = vmatprep.subr.bf16.mxu0 0
    %2261 = vmatpush1.bf16.msra.mxu0 %v1846
    %2262 = vmatprep.subr.bf16.mxu0 0
    %2263 = vmatpush1.bf16.msra.mxu0 %v1849
    %2264 = vmatprep.subr.bf16.mxu0 0
    %2265 = vmatpush1.bf16.msra.mxu0 %v1852
    %2266 = vmatprep.subr.bf16.mxu0 0
    %2267 = vmatpush1.bf16.msra.mxu0 %v1855
    %2268 = vmatprep.subr.bf16.mxu0 0
    %2269 = vmatpush1.bf16.msra.mxu0 %v1858
    %2270 = vmatprep.subr.bf16.mxu0 0
    %2271 = vmatpush1.bf16.msra.mxu0 %v1861
    %2272 = vmatprep.subr.bf16.mxu0 0
    %2273 = vmatpush1.bf16.msra.mxu0 %v1864
    %2274 = vmatprep.subr.bf16.mxu0 0
    %2275 = vmatpush1.bf16.msra.mxu0 %v1867
    %2276 = vmatprep.subr.bf16.mxu0 0
    %2277 = vmatpush1.bf16.msra.mxu0 %v1870
    %2278 = vmatprep.subr.bf16.mxu0 0
    %2279 = vmatpush1.bf16.msra.mxu0 %v1873
    %2280 = vmatprep.subr.bf16.mxu0 0
    %2281 = vmatpush1.bf16.msra.mxu0 %v1876
    %2282 = vmatprep.subr.bf16.mxu0 0
    %2283 = vmatpush1.bf16.msra.mxu0 %v1879
    %2284 = vmatprep.subr.bf16.mxu0 0
    %2285 = vmatpush1.bf16.msra.mxu0 %v1882
    %2286 = vmatprep.subr.bf16.mxu0 0
    %2287 = vmatpush1.bf16.msra.mxu0 %v1885
    %2288 = vmatprep.mubr.bf16.mxu0 %v1359
    %2289 = vmatmul.mubr.bf16.gmra.mrb[0].mxu0 %v1358
    %v2290 = vpop.f32.mrb[0].mxu0
    %v2291 = vadd.f32 0.0, %v2290
    %v2292 = vpop.f32.mrb[0].mxu0
    %v2293 = vpop.f32.mrb[0].mxu0
    %v2294 = vadd.f32 0.0, %v2293
    %v2295 = vpop.f32.mrb[0].mxu0
    %2296 = vmatprep.mubr.bf16.mxu0 %v1363
    %2297 = vmatmul.mubr.bf16.gmra.mrb[0].mxu0 %v1362
    %v2298 = vpop.f32.mrb[0].mxu0
    %v2299 = vadd.f32 0.0, %v2298
    %v2300 = vpop.f32.mrb[0].mxu0
    %v2301 = vpop.f32.mrb[0].mxu0
    %v2302 = vadd.f32 0.0, %v2301
    %v2303 = vpop.f32.mrb[0].mxu0
    %2304 = vmatprep.mubr.bf16.mxu0 %v1367
    %2305 = vmatmul.mubr.bf16.gmra.mrb[0].mxu0 %v1366
    %v2306 = vpop.f32.mrb[0].mxu0
    %v2307 = vadd.f32 0.0, %v2306
    %v2308 = vpop.f32.mrb[0].mxu0
    %v2309 = vpop.f32.mrb[0].mxu0
    %v2310 = vadd.f32 0.0, %v2309
    %v2311 = vpop.f32.mrb[0].mxu0
    %2312 = vmatprep.mubr.bf16.mxu0 %v1371
    %2313 = vmatmul.mubr.bf16.gmra.mrb[0].mxu0 %v1370
    %v2314 = vpop.f32.mrb[0].mxu0
    %v2315 = vadd.f32 0.0, %v2314
    %v2316 = vpop.f32.mrb[0].mxu0
    %v2317 = vpop.f32.mrb[0].mxu0
    %v2318 = vadd.f32 0.0, %v2317
    %v2319 = vpop.f32.mrb[0].mxu0
    %2320 = vmatprep.mubr.bf16.mxu0 %v1375
    %2321 = vmatmul.mubr.bf16.gmra.mrb[0].mxu0 %v1374
    %v2322 = vpop.f32.mrb[0].mxu0
    %v2323 = vadd.f32 0.0, %v2322
    %v2324 = vpop.f32.mrb[0].mxu0
    %v2325 = vpop.f32.mrb[0].mxu0
    %v2326 = vadd.f32 0.0, %v2325
    %v2327 = vpop.f32.mrb[0].mxu0
    %2328 = vmatprep.mubr.bf16.mxu0 %v1379
    %2329 = vmatmul.mubr.bf16.gmra.mrb[0].mxu0 %v1378
    %v2330 = vpop.f32.mrb[0].mxu0
    %v2331 = vadd.f32 0.0, %v2330
    %v2332 = vpop.f32.mrb[0].mxu0
    %v2333 = vpop.f32.mrb[0].mxu0
    %v2334 = vadd.f32 0.0, %v2333
    %v2335 = vpop.f32.mrb[0].mxu0
    %2336 = vmatprep.mubr.bf16.mxu0 %v1383
    %2337 = vmatmul.mubr.bf16.gmra.mrb[0].mxu0 %v1382
    %v2338 = vpop.f32.mrb[0].mxu0
    %v2339 = vadd.f32 0.0, %v2338
    %v2340 = vpop.f32.mrb[0].mxu0
    %v2341 = vpop.f32.mrb[0].mxu0
    %v2342 = vadd.f32 0.0, %v2341
    %v2343 = vpop.f32.mrb[0].mxu0
    %2344 = vmatprep.mubr.bf16.mxu0 %v1387
    %2345 = vmatmul.mubr.bf16.gmra.mrb[0].mxu0 %v1386
    %v2346 = vpop.f32.mrb[0].mxu0
    %v2347 = vadd.f32 0.0, %v2346
    %v2348 = vpop.f32.mrb[0].mxu0
    %v2349 = vpop.f32.mrb[0].mxu0
    %v2350 = vadd.f32 0.0, %v2349
    %v2351 = vpop.f32.mrb[0].mxu0
    %2352 = vdwg.mxu0
    %2353 = vmatprep.subr.bf16.mxu0 0
    %2354 = vmatpush1.bf16.msra.mxu0 %v1888
    %2355 = vmatprep.subr.bf16.mxu0 0
    %2356 = vmatpush1.bf16.msra.mxu0 %v1891
    %2357 = vmatprep.subr.bf16.mxu0 0
    %2358 = vmatpush1.bf16.msra.mxu0 %v1894
    %2359 = vmatprep.subr.bf16.mxu0 0
    %2360 = vmatpush1.bf16.msra.mxu0 %v1897
    %2361 = vmatprep.subr.bf16.mxu0 0
    %2362 = vmatpush1.bf16.msra.mxu0 %v1900
    %2363 = vmatprep.subr.bf16.mxu0 0
    %2364 = vmatpush1.bf16.msra.mxu0 %v1903
    %2365 = vmatprep.subr.bf16.mxu0 0
    %2366 = vmatpush1.bf16.msra.mxu0 %v1906
    %2367 = vmatprep.subr.bf16.mxu0 0
    %2368 = vmatpush1.bf16.msra.mxu0 %v1909
    %2369 = vmatprep.subr.bf16.mxu0 0
    %2370 = vmatpush1.bf16.msra.mxu0 %v1912
    %2371 = vmatprep.subr.bf16.mxu0 0
    %2372 = vmatpush1.bf16.msra.mxu0 %v1915
    %2373 = vmatprep.subr.bf16.mxu0 0
    %2374 = vmatpush1.bf16.msra.mxu0 %v1918
    %2375 = vmatprep.subr.bf16.mxu0 0
    %2376 = vmatpush1.bf16.msra.mxu0 %v1921
    %2377 = vmatprep.subr.bf16.mxu0 0
    %2378 = vmatpush1.bf16.msra.mxu0 %v1924
    %2379 = vmatprep.subr.bf16.mxu0 0
    %2380 = vmatpush1.bf16.msra.mxu0 %v1927
    %2381 = vmatprep.subr.bf16.mxu0 0
    %2382 = vmatpush1.bf16.msra.mxu0 %v1930
    %2383 = vmatprep.subr.bf16.mxu0 0
    %2384 = vmatpush1.bf16.msra.mxu0 %v1933
    %2385 = vmatprep.mubr.bf16.mxu0 %v1361
    %2386 = vmatmul.mubr.bf16.gmra.mrb[0].mxu0 %v1360
    %v2387 = vpop.f32.mrb[0].mxu0
    %v2388 = vadd.f32 %v2291, %v2387
    %v2389 = vpop.f32.mrb[0].mxu0
    %v2390 = vpop.f32.mrb[0].mxu0
    %v2391 = vadd.f32 %v2294, %v2390
    %v2392 = vpop.f32.mrb[0].mxu0
    %2393 = vmatprep.mubr.bf16.mxu0 %v1365
    %2394 = vmatmul.mubr.bf16.gmra.mrb[0].mxu0 %v1364
    %v2395 = vpop.f32.mrb[0].mxu0
    %v2396 = vadd.f32 %v2299, %v2395
    %v2397 = vpop.f32.mrb[0].mxu0
    %v2398 = vpop.f32.mrb[0].mxu0
    %v2399 = vadd.f32 %v2302, %v2398
    %v2400 = vpop.f32.mrb[0].mxu0
    %2401 = vmatprep.mubr.bf16.mxu0 %v1369
    %2402 = vmatmul.mubr.bf16.gmra.mrb[0].mxu0 %v1368
    %v2403 = vpop.f32.mrb[0].mxu0
    %v2404 = vadd.f32 %v2307, %v2403
    %v2405 = vpop.f32.mrb[0].mxu0
    %v2406 = vpop.f32.mrb[0].mxu0
    %v2407 = vadd.f32 %v2310, %v2406
    %v2408 = vpop.f32.mrb[0].mxu0
    %2409 = vmatprep.mubr.bf16.mxu0 %v1373
    %2410 = vmatmul.mubr.bf16.gmra.mrb[0].mxu0 %v1372
    %v2411 = vpop.f32.mrb[0].mxu0
    %v2412 = vadd.f32 %v2315, %v2411
    %v2413 = vpop.f32.mrb[0].mxu0
    %v2414 = vpop.f32.mrb[0].mxu0
    %v2415 = vadd.f32 %v2318, %v2414
    %v2416 = vpop.f32.mrb[0].mxu0
    %2417 = vmatprep.mubr.bf16.mxu0 %v1377
    %2418 = vmatmul.mubr.bf16.gmra.mrb[0].mxu0 %v1376
    %v2419 = vpop.f32.mrb[0].mxu0
    %v2420 = vadd.f32 %v2323, %v2419
    %v2421 = vpop.f32.mrb[0].mxu0
    %v2422 = vpop.f32.mrb[0].mxu0
    %v2423 = vadd.f32 %v2326, %v2422
    %v2424 = vpop.f32.mrb[0].mxu0
    %2425 = vmatprep.mubr.bf16.mxu0 %v1381
    %2426 = vmatmul.mubr.bf16.gmra.mrb[0].mxu0 %v1380
    %v2427 = vpop.f32.mrb[0].mxu0
    %v2428 = vadd.f32 %v2331, %v2427
    %v2429 = vpop.f32.mrb[0].mxu0
    %v2430 = vpop.f32.mrb[0].mxu0
    %v2431 = vadd.f32 %v2334, %v2430
    %v2432 = vpop.f32.mrb[0].mxu0
    %2433 = vmatprep.mubr.bf16.mxu0 %v1385
    %2434 = vmatmul.mubr.bf16.gmra.mrb[0].mxu0 %v1384
    %v2435 = vpop.f32.mrb[0].mxu0
    %v2436 = vadd.f32 %v2339, %v2435
    %v2437 = vpop.f32.mrb[0].mxu0
    %v2438 = vpop.f32.mrb[0].mxu0
    %v2439 = vadd.f32 %v2342, %v2438
    %v2440 = vpop.f32.mrb[0].mxu0
    %2441 = vmatprep.mubr.bf16.mxu0 %v1389
    %2442 = vmatmul.mubr.bf16.gmra.mrb[0].mxu0 %v1388
    %v2443 = vpop.f32.mrb[0].mxu0
    %v2444 = vadd.f32 %v2347, %v2443
    %v2445 = vpop.f32.mrb[0].mxu0
    %v2446 = vpop.f32.mrb[0].mxu0
    %v2447 = vadd.f32 %v2350, %v2446
    %v2448 = vpop.f32.mrb[0].mxu0
    %2449 = vdwg.mxu0
    %v2450 = vadd.f32 %v2178, %v2182
    %v2451 = vadd.f32 %v2450, %v2188
    %v2452 = vadd.f32 %v2451, %v2192
    %v2453 = vadd.f32 %v2452, %v2198
    %v2454 = vadd.f32 %v2453, %v2202
    %v2455 = vadd.f32 %v2454, %v2208
    %v2456 = vadd.f32 %v2455, %v2212
    %v2457 = vadd.f32 %v2456, %v2218
    %v2458 = vadd.f32 %v2457, %v2222
    %v2459 = vadd.f32 %v2458, %v2228
    %v2460 = vadd.f32 %v2459, %v2232
    %v2461 = vadd.f32 %v2460, %v2238
    %v2462 = vadd.f32 %v2461, %v2242
    %v2463 = vadd.f32 %v2462, %v2248
    %v2464 = vadd.f32 %v2463, %v2252
    %v2465 = vrot.slane %v2464, 4
    %v2466 = vadd.f32 %v2464, %v2465
    %v2467 = vrot.slane %v2466, 2
    %v2468 = vadd.f32 %v2466, %v2467
    %v2469 = vrot.slane %v2468, 1
    %v2470 = vadd.f32 %v2468, %v2469
    %v2471 = vadd.f32 %v2180, %v2184
    %v2472 = vadd.f32 %v2471, %v2190
    %v2473 = vadd.f32 %v2472, %v2194
    %v2474 = vadd.f32 %v2473, %v2200
    %v2475 = vadd.f32 %v2474, %v2204
    %v2476 = vadd.f32 %v2475, %v2210
    %v2477 = vadd.f32 %v2476, %v2214
    %v2478 = vadd.f32 %v2477, %v2220
    %v2479 = vadd.f32 %v2478, %v2224
    %v2480 = vadd.f32 %v2479, %v2230
    %v2481 = vadd.f32 %v2480, %v2234
    %v2482 = vadd.f32 %v2481, %v2240
    %v2483 = vadd.f32 %v2482, %v2244
    %v2484 = vadd.f32 %v2483, %v2250
    %v2485 = vadd.f32 %v2484, %v2254
    %v2486 = vrot.slane %v2485, 4
    %v2487 = vadd.f32 %v2485, %v2486
    %v2488 = vrot.slane %v2487, 2
    %v2489 = vadd.f32 %v2487, %v2488
    %v2490 = vrot.slane %v2489, 1
    %v2491 = vadd.f32 %v2489, %v2490
    %v2492 = vadd.f32 %v2388, %v2391
    %v2493 = vadd.f32 %v2492, %v2396
    %v2494 = vadd.f32 %v2493, %v2399
    %v2495 = vadd.f32 %v2494, %v2404
    %v2496 = vadd.f32 %v2495, %v2407
    %v2497 = vadd.f32 %v2496, %v2412
    %v2498 = vadd.f32 %v2497, %v2415
    %v2499 = vadd.f32 %v2498, %v2420
    %v2500 = vadd.f32 %v2499, %v2423
    %v2501 = vadd.f32 %v2500, %v2428
    %v2502 = vadd.f32 %v2501, %v2431
    %v2503 = vadd.f32 %v2502, %v2436
    %v2504 = vadd.f32 %v2503, %v2439
    %v2505 = vadd.f32 %v2504, %v2444
    %v2506 = vadd.f32 %v2505, %v2447
    %v2507 = vrot.slane %v2506, 4
    %v2508 = vadd.f32 %v2506, %v2507
    %v2509 = vrot.slane %v2508, 2
    %v2510 = vadd.f32 %v2508, %v2509
    %v2511 = vrot.slane %v2510, 1
    %v2512 = vadd.f32 %v2510, %v2511
    %v2513 = vmul.f32 %v2470, 0.0078125
    %v2514 = vmul.f32 %v2491, 0.0078125
    %v2515 = vmul.f32 %v2512, 0.0078125
    %v2516 = vmul.f32 %v2178, %v2178
    %v2517 = vmul.f32 %v2180, %v2180
    %v2518 = vmul.f32 %v2388, %v2388
    %v2519 = vmul.f32 %v2182, %v2182
    %v2520 = vmul.f32 %v2184, %v2184
    %v2521 = vmul.f32 %v2391, %v2391
    %v2522 = vmul.f32 %v2188, %v2188
    %v2523 = vmul.f32 %v2190, %v2190
    %v2524 = vmul.f32 %v2396, %v2396
    %v2525 = vmul.f32 %v2192, %v2192
    %v2526 = vmul.f32 %v2194, %v2194
    %v2527 = vmul.f32 %v2399, %v2399
    %v2528 = vmul.f32 %v2198, %v2198
    %v2529 = vmul.f32 %v2200, %v2200
    %v2530 = vmul.f32 %v2404, %v2404
    %v2531 = vmul.f32 %v2202, %v2202
    %v2532 = vmul.f32 %v2204, %v2204
    %v2533 = vmul.f32 %v2407, %v2407
    %v2534 = vmul.f32 %v2208, %v2208
    %v2535 = vmul.f32 %v2210, %v2210
    %v2536 = vmul.f32 %v2412, %v2412
    %v2537 = vmul.f32 %v2212, %v2212
    %v2538 = vmul.f32 %v2214, %v2214
    %v2539 = vmul.f32 %v2415, %v2415
    %v2540 = vmul.f32 %v2218, %v2218
    %v2541 = vmul.f32 %v2220, %v2220
    %v2542 = vmul.f32 %v2420, %v2420
    %v2543 = vmul.f32 %v2222, %v2222
    %v2544 = vmul.f32 %v2224, %v2224
    %v2545 = vmul.f32 %v2423, %v2423
    %v2546 = vmul.f32 %v2228, %v2228
    %v2547 = vmul.f32 %v2230, %v2230
    %v2548 = vmul.f32 %v2428, %v2428
    %v2549 = vmul.f32 %v2232, %v2232
    %v2550 = vmul.f32 %v2234, %v2234
    %v2551 = vmul.f32 %v2431, %v2431
    %v2552 = vmul.f32 %v2238, %v2238
    %v2553 = vmul.f32 %v2240, %v2240
    %v2554 = vmul.f32 %v2436, %v2436
    %v2555 = vmul.f32 %v2242, %v2242
    %v2556 = vmul.f32 %v2244, %v2244
    %v2557 = vmul.f32 %v2439, %v2439
    %v2558 = vmul.f32 %v2248, %v2248
    %v2559 = vmul.f32 %v2250, %v2250
    %v2560 = vmul.f32 %v2444, %v2444
    %v2561 = vmul.f32 %v2252, %v2252
    %v2562 = vmul.f32 %v2254, %v2254
    %v2563 = vmul.f32 %v2447, %v2447
    %v2564 = vadd.f32 %v2516, %v2519
    %v2565 = vadd.f32 %v2564, %v2522
    %v2566 = vadd.f32 %v2565, %v2525
    %v2567 = vadd.f32 %v2566, %v2528
    %v2568 = vadd.f32 %v2567, %v2531
    %v2569 = vadd.f32 %v2568, %v2534
    %v2570 = vadd.f32 %v2569, %v2537
    %v2571 = vadd.f32 %v2570, %v2540
    %v2572 = vadd.f32 %v2571, %v2543
    %v2573 = vadd.f32 %v2572, %v2546
    %v2574 = vadd.f32 %v2573, %v2549
    %v2575 = vadd.f32 %v2574, %v2552
    %v2576 = vadd.f32 %v2575, %v2555
    %v2577 = vadd.f32 %v2576, %v2558
    %v2578 = vadd.f32 %v2577, %v2561
    %v2579 = vrot.slane %v2578, 4
    %v2580 = vadd.f32 %v2578, %v2579
    %v2581 = vrot.slane %v2580, 2
    %v2582 = vadd.f32 %v2580, %v2581
    %v2583 = vrot.slane %v2582, 1
    %v2584 = vadd.f32 %v2582, %v2583
    %v2585 = vadd.f32 %v2517, %v2520
    %v2586 = vadd.f32 %v2585, %v2523
    %v2587 = vadd.f32 %v2586, %v2526
    %v2588 = vadd.f32 %v2587, %v2529
    %v2589 = vadd.f32 %v2588, %v2532
    %v2590 = vadd.f32 %v2589, %v2535
    %v2591 = vadd.f32 %v2590, %v2538
    %v2592 = vadd.f32 %v2591, %v2541
    %v2593 = vadd.f32 %v2592, %v2544
    %v2594 = vadd.f32 %v2593, %v2547
    %v2595 = vadd.f32 %v2594, %v2550
    %v2596 = vadd.f32 %v2595, %v2553
    %v2597 = vadd.f32 %v2596, %v2556
    %v2598 = vadd.f32 %v2597, %v2559
    %v2599 = vadd.f32 %v2598, %v2562
    %v2600 = vrot.slane %v2599, 4
    %v2601 = vadd.f32 %v2599, %v2600
    %v2602 = vrot.slane %v2601, 2
    %v2603 = vadd.f32 %v2601, %v2602
    %v2604 = vrot.slane %v2603, 1
    %v2605 = vadd.f32 %v2603, %v2604
    %v2606 = vadd.f32 %v2518, %v2521
    %v2607 = vadd.f32 %v2606, %v2524
    %v2608 = vadd.f32 %v2607, %v2527
    %v2609 = vadd.f32 %v2608, %v2530
    %v2610 = vadd.f32 %v2609, %v2533
    %v2611 = vadd.f32 %v2610, %v2536
    %v2612 = vadd.f32 %v2611, %v2539
    %v2613 = vadd.f32 %v2612, %v2542
    %v2614 = vadd.f32 %v2613, %v2545
    %v2615 = vadd.f32 %v2614, %v2548
    %v2616 = vadd.f32 %v2615, %v2551
    %v2617 = vadd.f32 %v2616, %v2554
    %v2618 = vadd.f32 %v2617, %v2557
    %v2619 = vadd.f32 %v2618, %v2560
    %v2620 = vadd.f32 %v2619, %v2563
    %v2621 = vrot.slane %v2620, 4
    %v2622 = vadd.f32 %v2620, %v2621
    %v2623 = vrot.slane %v2622, 2
    %v2624 = vadd.f32 %v2622, %v2623
    %v2625 = vrot.slane %v2624, 1
    %v2626 = vadd.f32 %v2624, %v2625
    %v2627 = vmul.f32 %v2584, 0.0078125
    %v2628 = vmul.f32 %v2605, 0.0078125
    %v2629 = vmul.f32 %v2626, 0.0078125
    %v2630 = vmul.f32 %v2513, %v2513
    %v2631 = vmul.f32 %v2514, %v2514
    %v2632 = vmul.f32 %v2515, %v2515
    %v2633 = vsub.f32 %v2627, %v2630
    %v2634 = vsub.f32 %v2628, %v2631
    %v2635 = vsub.f32 %v2629, %v2632
    %v2636 = vmax.f32 %v2633, 0.0
    %v2637 = vmax.f32 %v2634, 0.0
    %v2638 = vmax.f32 %v2635, 0.0
    %v2639 = vld [vmem:[%s5] sm:$0x7]
    %v2640 = vadd.f32 %v2636, 1e-05
    %v2641 = vadd.f32 %v2637, 1e-05
    %v2642 = vadd.f32 %v2638, 1e-05
    %v2643 = vrsqrt.pop %v2640
    %v2644 = vrsqrt.pop %v2641
    %v2645 = vrsqrt.pop %v2642
    %v2649 = vcombine.low %v2643, %v2644
    %v2651 = vunpack.c.l.s4 1966171168
    %v2652 = vunpack.c.0.s8 %v2651
    %v2653 = vlaneseq
    %v2654 = vshrl.u32 %v2653, 7
    %v2655 = vsub.s32 %v2652, %v2654
    %v2656 = vrot.slane %v2649, %v2655
    %v2658 = vunpack.c.l.s4 1966171168
    %v2659 = vunpack.c.0.s8 %v2658
    %v2660 = vlaneseq
    %v2661 = vshrl.u32 %v2660, 7
    %v2662 = vsub.s32 %v2659, %v2661
    %v2663 = vrot.slane %v2645, %v2662
    %v2664 = vcombine.low %v2656, %v2663
    %v2666 = vunpack.c.l.s4 1966171168
    %v2667 = vunpack.c.0.s8 %v2666
    %v2668 = vlaneseq
    %v2669 = vshrl.u32 %v2668, 7
    %v2670 = vsub.s32 %v2667, %v2669
    %v2671 = vrot.slane %v2664, %v2670
    %v2673 = vmul.f32 %v2639, %v2671
    %v2674 = vsub.f32 %v2178, %v2513
    %v2675 = vsub.f32 %v2180, %v2514
    %v2676 = vsub.f32 %v2388, %v2515
    %v2677 = vsub.f32 %v2182, %v2513
    %v2678 = vsub.f32 %v2184, %v2514
    %v2679 = vsub.f32 %v2391, %v2515
    %v2680 = vsub.f32 %v2188, %v2513
    %v2681 = vsub.f32 %v2190, %v2514
    %v2682 = vsub.f32 %v2396, %v2515
    %v2683 = vsub.f32 %v2192, %v2513
    %v2684 = vsub.f32 %v2194, %v2514
    %v2685 = vsub.f32 %v2399, %v2515
    %v2686 = vsub.f32 %v2198, %v2513
    %v2687 = vsub.f32 %v2200, %v2514
    %v2688 = vsub.f32 %v2404, %v2515
    %v2689 = vsub.f32 %v2202, %v2513
    %v2690 = vsub.f32 %v2204, %v2514
    %v2691 = vsub.f32 %v2407, %v2515
    %v2692 = vsub.f32 %v2208, %v2513
    %v2693 = vsub.f32 %v2210, %v2514
    %v2694 = vsub.f32 %v2412, %v2515
    %v2695 = vsub.f32 %v2212, %v2513
    %v2696 = vsub.f32 %v2214, %v2514
    %v2697 = vsub.f32 %v2415, %v2515
    %v2698 = vsub.f32 %v2218, %v2513
    %v2699 = vsub.f32 %v2220, %v2514
    %v2700 = vsub.f32 %v2420, %v2515
    %v2701 = vsub.f32 %v2222, %v2513
    %v2702 = vsub.f32 %v2224, %v2514
    %v2703 = vsub.f32 %v2423, %v2515
    %v2704 = vsub.f32 %v2228, %v2513
    %v2705 = vsub.f32 %v2230, %v2514
    %v2706 = vsub.f32 %v2428, %v2515
    %v2707 = vsub.f32 %v2232, %v2513
    %v2708 = vsub.f32 %v2234, %v2514
    %v2709 = vsub.f32 %v2431, %v2515
    %v2710 = vsub.f32 %v2238, %v2513
    %v2711 = vsub.f32 %v2240, %v2514
    %v2712 = vsub.f32 %v2436, %v2515
    %v2713 = vsub.f32 %v2242, %v2513
    %v2714 = vsub.f32 %v2244, %v2514
    %v2715 = vsub.f32 %v2439, %v2515
    %v2716 = vsub.f32 %v2248, %v2513
    %v2717 = vsub.f32 %v2250, %v2514
    %v2718 = vsub.f32 %v2444, %v2515
    %v2719 = vsub.f32 %v2252, %v2513
    %v2720 = vsub.f32 %v2254, %v2514
    %v2721 = vsub.f32 %v2447, %v2515
    %v2723 = vlaneseq
    %v2724 = vshrl.u32 %v2723, 7
    %v2725 = vsub.s32 0, %v2724
    %v2726 = vrot.slane %v2673, %v2725
    %v2727 = vlaneseq
    %v2728 = vshrl.u32 %v2727, 7
    %v2729 = vsub.s32 1, %v2728
    %v2730 = vrot.slane %v2673, %v2729
    %v2731 = vlaneseq
    %v2732 = vshrl.u32 %v2731, 7
    %v2733 = vsub.s32 2, %v2732
    %v2734 = vrot.slane %v2673, %v2733
    %v2738 = vmul.f32 %v2674, %v2726
    %v2739 = vmul.f32 %v2675, %v2730
    %v2740 = vmul.f32 %v2676, %v2734
    %v2741 = vmul.f32 %v2677, %v2726
    %v2742 = vmul.f32 %v2678, %v2730
    %v2743 = vmul.f32 %v2679, %v2734
    %v2744 = vmul.f32 %v2680, %v2726
    %v2745 = vmul.f32 %v2681, %v2730
    %v2746 = vmul.f32 %v2682, %v2734
    %v2747 = vmul.f32 %v2683, %v2726
    %v2748 = vmul.f32 %v2684, %v2730
    %v2749 = vmul.f32 %v2685, %v2734
    %v2750 = vmul.f32 %v2686, %v2726
    %v2751 = vmul.f32 %v2687, %v2730
    %v2752 = vmul.f32 %v2688, %v2734
    %v2753 = vmul.f32 %v2689, %v2726
    %v2754 = vmul.f32 %v2690, %v2730
    %v2755 = vmul.f32 %v2691, %v2734
    %v2756 = vmul.f32 %v2692, %v2726
    %v2757 = vmul.f32 %v2693, %v2730
    %v2758 = vmul.f32 %v2694, %v2734
    %v2759 = vmul.f32 %v2695, %v2726
    %v2760 = vmul.f32 %v2696, %v2730
    %v2761 = vmul.f32 %v2697, %v2734
    %v2762 = vmul.f32 %v2698, %v2726
    %v2763 = vmul.f32 %v2699, %v2730
    %v2764 = vmul.f32 %v2700, %v2734
    %v2765 = vmul.f32 %v2701, %v2726
    %v2766 = vmul.f32 %v2702, %v2730
    %v2767 = vmul.f32 %v2703, %v2734
    %v2768 = vmul.f32 %v2704, %v2726
    %v2769 = vmul.f32 %v2705, %v2730
    %v2770 = vmul.f32 %v2706, %v2734
    %v2771 = vmul.f32 %v2707, %v2726
    %v2772 = vmul.f32 %v2708, %v2730
    %v2773 = vmul.f32 %v2709, %v2734
    %v2774 = vmul.f32 %v2710, %v2726
    %v2775 = vmul.f32 %v2711, %v2730
    %v2776 = vmul.f32 %v2712, %v2734
    %v2777 = vmul.f32 %v2713, %v2726
    %v2778 = vmul.f32 %v2714, %v2730
    %v2779 = vmul.f32 %v2715, %v2734
    %v2780 = vmul.f32 %v2716, %v2726
    %v2781 = vmul.f32 %v2717, %v2730
    %v2782 = vmul.f32 %v2718, %v2734
    %v2783 = vmul.f32 %v2719, %v2726
    %v2784 = vmul.f32 %v2720, %v2730
    %v2785 = vmul.f32 %v2721, %v2734
    %v2786 = vld [vmem:[%s6] sm:$0x7]
    %v2788 = vlaneseq
    %v2789 = vshrl.u32 %v2788, 7
    %v2790 = vsub.s32 0, %v2789
    %v2791 = vrot.slane %v2786, %v2790
    %v2792 = vlaneseq
    %v2793 = vshrl.u32 %v2792, 7
    %v2794 = vsub.s32 1, %v2793
    %v2795 = vrot.slane %v2786, %v2794
    %v2796 = vlaneseq
    %v2797 = vshrl.u32 %v2796, 7
    %v2798 = vsub.s32 2, %v2797
    %v2799 = vrot.slane %v2786, %v2798
    %v2803 = vadd.f32 %v2738, %v2791
    %v2804 = vadd.f32 %v2739, %v2795
    %v2805 = vadd.f32 %v2740, %v2799
    %v2806 = vadd.f32 %v2741, %v2791
    %v2807 = vadd.f32 %v2742, %v2795
    %v2808 = vadd.f32 %v2743, %v2799
    %v2809 = vadd.f32 %v2744, %v2791
    %v2810 = vadd.f32 %v2745, %v2795
    %v2811 = vadd.f32 %v2746, %v2799
    %v2812 = vadd.f32 %v2747, %v2791
    %v2813 = vadd.f32 %v2748, %v2795
    %v2814 = vadd.f32 %v2749, %v2799
    %v2815 = vadd.f32 %v2750, %v2791
    %v2816 = vadd.f32 %v2751, %v2795
    %v2817 = vadd.f32 %v2752, %v2799
    %v2818 = vadd.f32 %v2753, %v2791
    %v2819 = vadd.f32 %v2754, %v2795
    %v2820 = vadd.f32 %v2755, %v2799
    %v2821 = vadd.f32 %v2756, %v2791
    %v2822 = vadd.f32 %v2757, %v2795
    %v2823 = vadd.f32 %v2758, %v2799
    %v2824 = vadd.f32 %v2759, %v2791
    %v2825 = vadd.f32 %v2760, %v2795
    %v2826 = vadd.f32 %v2761, %v2799
    %v2827 = vadd.f32 %v2762, %v2791
    %v2828 = vadd.f32 %v2763, %v2795
    %v2829 = vadd.f32 %v2764, %v2799
    %v2830 = vadd.f32 %v2765, %v2791
    %v2831 = vadd.f32 %v2766, %v2795
    %v2832 = vadd.f32 %v2767, %v2799
    %v2833 = vadd.f32 %v2768, %v2791
    %v2834 = vadd.f32 %v2769, %v2795
    %v2835 = vadd.f32 %v2770, %v2799
    %v2836 = vadd.f32 %v2771, %v2791
    %v2837 = vadd.f32 %v2772, %v2795
    %v2838 = vadd.f32 %v2773, %v2799
    %v2839 = vadd.f32 %v2774, %v2791
    %v2840 = vadd.f32 %v2775, %v2795
    %v2841 = vadd.f32 %v2776, %v2799
    %v2842 = vadd.f32 %v2777, %v2791
    %v2843 = vadd.f32 %v2778, %v2795
    %v2844 = vadd.f32 %v2779, %v2799
    %v2845 = vadd.f32 %v2780, %v2791
    %v2846 = vadd.f32 %v2781, %v2795
    %v2847 = vadd.f32 %v2782, %v2799
    %v2848 = vadd.f32 %v2783, %v2791
    %v2849 = vadd.f32 %v2784, %v2795
    %v2850 = vadd.f32 %v2785, %v2799
    %v2851 = vmax.f32 %v2803, 0.0
    %v2852 = vmax.f32 %v2804, 0.0
    %v2853 = vmax.f32 %v2805, 0.0
    %v2854 = vmax.f32 %v2806, 0.0
    %v2855 = vmax.f32 %v2807, 0.0
    %v2856 = vmax.f32 %v2808, 0.0
    %v2857 = vmax.f32 %v2809, 0.0
    %v2858 = vmax.f32 %v2810, 0.0
    %v2859 = vmax.f32 %v2811, 0.0
    %v2860 = vmax.f32 %v2812, 0.0
    %v2861 = vmax.f32 %v2813, 0.0
    %v2862 = vmax.f32 %v2814, 0.0
    %v2863 = vmax.f32 %v2815, 0.0
    %v2864 = vmax.f32 %v2816, 0.0
    %v2865 = vmax.f32 %v2817, 0.0
    %v2866 = vmax.f32 %v2818, 0.0
    %v2867 = vmax.f32 %v2819, 0.0
    %v2868 = vmax.f32 %v2820, 0.0
    %v2869 = vmax.f32 %v2821, 0.0
    %v2870 = vmax.f32 %v2822, 0.0
    %v2871 = vmax.f32 %v2823, 0.0
    %v2872 = vmax.f32 %v2824, 0.0
    %v2873 = vmax.f32 %v2825, 0.0
    %v2874 = vmax.f32 %v2826, 0.0
    %v2875 = vmax.f32 %v2827, 0.0
    %v2876 = vmax.f32 %v2828, 0.0
    %v2877 = vmax.f32 %v2829, 0.0
    %v2878 = vmax.f32 %v2830, 0.0
    %v2879 = vmax.f32 %v2831, 0.0
    %v2880 = vmax.f32 %v2832, 0.0
    %v2881 = vmax.f32 %v2833, 0.0
    %v2882 = vmax.f32 %v2834, 0.0
    %v2883 = vmax.f32 %v2835, 0.0
    %v2884 = vmax.f32 %v2836, 0.0
    %v2885 = vmax.f32 %v2837, 0.0
    %v2886 = vmax.f32 %v2838, 0.0
    %v2887 = vmax.f32 %v2839, 0.0
    %v2888 = vmax.f32 %v2840, 0.0
    %v2889 = vmax.f32 %v2841, 0.0
    %v2890 = vmax.f32 %v2842, 0.0
    %v2891 = vmax.f32 %v2843, 0.0
    %v2892 = vmax.f32 %v2844, 0.0
    %v2893 = vmax.f32 %v2845, 0.0
    %v2894 = vmax.f32 %v2846, 0.0
    %v2895 = vmax.f32 %v2847, 0.0
    %v2896 = vmax.f32 %v2848, 0.0
    %v2897 = vmax.f32 %v2849, 0.0
    %v2898 = vmax.f32 %v2850, 0.0
    %v2899 = vpack.c.bf16 %v2854, %v2851
    %v2900 = vpack.c.bf16 %v2855, %v2852
    %v2901 = vpack.c.bf16 %v2856, %v2853
    %v2902 = vpack.c.bf16 %v2860, %v2857
    %v2903 = vpack.c.bf16 %v2861, %v2858
    %v2904 = vpack.c.bf16 %v2862, %v2859
    %v2905 = vpack.c.bf16 %v2866, %v2863
    %v2906 = vpack.c.bf16 %v2867, %v2864
    %v2907 = vpack.c.bf16 %v2868, %v2865
    %v2908 = vpack.c.bf16 %v2872, %v2869
    %v2909 = vpack.c.bf16 %v2873, %v2870
    %v2910 = vpack.c.bf16 %v2874, %v2871
    %v2911 = vpack.c.bf16 %v2878, %v2875
    %v2912 = vpack.c.bf16 %v2879, %v2876
    %v2913 = vpack.c.bf16 %v2880, %v2877
    %v2914 = vpack.c.bf16 %v2884, %v2881
    %v2915 = vpack.c.bf16 %v2885, %v2882
    %v2916 = vpack.c.bf16 %v2886, %v2883
    %v2917 = vpack.c.bf16 %v2890, %v2887
    %v2918 = vpack.c.bf16 %v2891, %v2888
    %v2919 = vpack.c.bf16 %v2892, %v2889
    %v2920 = vpack.c.bf16 %v2896, %v2893
    %v2921 = vpack.c.bf16 %v2897, %v2894
    %v2922 = vpack.c.bf16 %v2898, %v2895
    %v2923 = vld [vmem:[%s7] sm:$0xff]
    %v2924 = vld [vmem:[%s7 + $0x8] sm:$0xff]
    %v2925 = vld [vmem:[%s7 + $0x10] sm:$0xff]
    %v2926 = vld [vmem:[%s7 + $0x18] sm:$0xff]
    %v2927 = vld [vmem:[%s7 + $0x20] sm:$0xff]
    %v2928 = vld [vmem:[%s7 + $0x28] sm:$0xff]
    %v2929 = vld [vmem:[%s7 + $0x30] sm:$0xff]
    %v2930 = vld [vmem:[%s7 + $0x38] sm:$0xff]
    %v2931 = vld [vmem:[%s7 + $0x40] sm:$0xff]
    %v2932 = vld [vmem:[%s7 + $0x48] sm:$0xff]
    %v2933 = vld [vmem:[%s7 + $0x50] sm:$0xff]
    %v2934 = vld [vmem:[%s7 + $0x58] sm:$0xff]
    %v2935 = vld [vmem:[%s7 + $0x60] sm:$0xff]
    %v2936 = vld [vmem:[%s7 + $0x68] sm:$0xff]
    %v2937 = vld [vmem:[%s7 + $0x70] sm:$0xff]
    %v2938 = vld [vmem:[%s7 + $0x78] sm:$0xff]
    %v2939 = vld [vmem:[%s7 + $0x80] sm:$0xff]
    %v2940 = vld [vmem:[%s7 + $0x88] sm:$0xff]
    %v2941 = vld [vmem:[%s7 + $0x90] sm:$0xff]
    %v2942 = vld [vmem:[%s7 + $0x98] sm:$0xff]
    %v2943 = vld [vmem:[%s7 + $0xa0] sm:$0xff]
    %v2944 = vld [vmem:[%s7 + $0xa8] sm:$0xff]
    %v2945 = vld [vmem:[%s7 + $0xb0] sm:$0xff]
    %v2946 = vld [vmem:[%s7 + $0xb8] sm:$0xff]
    %v2947 = vld [vmem:[%s7 + $0xc0] sm:$0xff]
    %v2948 = vld [vmem:[%s7 + $0xc8] sm:$0xff]
    %v2949 = vld [vmem:[%s7 + $0xd0] sm:$0xff]
    %v2950 = vld [vmem:[%s7 + $0xd8] sm:$0xff]
    %v2951 = vld [vmem:[%s7 + $0xe0] sm:$0xff]
    %v2952 = vld [vmem:[%s7 + $0xe8] sm:$0xff]
    %v2953 = vld [vmem:[%s7 + $0xf0] sm:$0xff]
    %v2954 = vld [vmem:[%s7 + $0xf8] sm:$0xff]
    %v2955 = vld [vmem:[%s7 + $0x100] sm:$0xff]
    %v2956 = vld [vmem:[%s7 + $0x108] sm:$0xff]
    %v2957 = vld [vmem:[%s7 + $0x110] sm:$0xff]
    %v2958 = vld [vmem:[%s7 + $0x118] sm:$0xff]
    %v2959 = vld [vmem:[%s7 + $0x120] sm:$0xff]
    %v2960 = vld [vmem:[%s7 + $0x128] sm:$0xff]
    %v2961 = vld [vmem:[%s7 + $0x130] sm:$0xff]
    %v2962 = vld [vmem:[%s7 + $0x138] sm:$0xff]
    %v2963 = vld [vmem:[%s7 + $0x140] sm:$0xff]
    %v2964 = vld [vmem:[%s7 + $0x148] sm:$0xff]
    %v2965 = vld [vmem:[%s7 + $0x150] sm:$0xff]
    %v2966 = vld [vmem:[%s7 + $0x158] sm:$0xff]
    %v2967 = vld [vmem:[%s7 + $0x160] sm:$0xff]
    %v2968 = vld [vmem:[%s7 + $0x168] sm:$0xff]
    %v2969 = vld [vmem:[%s7 + $0x170] sm:$0xff]
    %v2970 = vld [vmem:[%s7 + $0x178] sm:$0xff]
    %v2971 = vld [vmem:[%s8] sm:$0x3]
    %v2973 = vlaneseq
    %v2974 = vshrl.u32 %v2973, 7
    %v2975 = vsub.s32 0, %v2974
    %v2976 = vrot.slane %v2971, %v2975
    %v2977 = vlaneseq
    %v2978 = vshrl.u32 %v2977, 7
    %v2979 = vsub.s32 1, %v2978
    %v2980 = vrot.slane %v2971, %v2979
    %v3031 = vunpack.c.l.b16 %v2923
    %v3032 = vunpack.c.h.b16 %v2923
    %v3033 = vunpack.c.l.b16 %v2924
    %v3034 = vunpack.c.h.b16 %v2924
    %v3035 = vunpack.c.l.b16 %v2925
    %v3036 = vunpack.c.h.b16 %v2925
    %v3037 = vunpack.c.l.b16 %v2926
    %v3038 = vunpack.c.h.b16 %v2926
    %v3039 = vunpack.c.l.b16 %v2927
    %v3040 = vunpack.c.h.b16 %v2927
    %v3041 = vunpack.c.l.b16 %v2928
    %v3042 = vunpack.c.h.b16 %v2928
    %v3043 = vunpack.c.l.b16 %v2929
    %v3044 = vunpack.c.h.b16 %v2929
    %v3045 = vunpack.c.l.b16 %v2930
    %v3046 = vunpack.c.h.b16 %v2930
    %v3047 = vunpack.c.l.b16 %v2931
    %v3048 = vunpack.c.h.b16 %v2931
    %v3049 = vunpack.c.l.b16 %v2932
    %v3050 = vunpack.c.h.b16 %v2932
    %v3051 = vunpack.c.l.b16 %v2933
    %v3052 = vunpack.c.h.b16 %v2933
    %v3053 = vunpack.c.l.b16 %v2934
    %v3054 = vunpack.c.h.b16 %v2934
    %v3055 = vunpack.c.l.b16 %v2935
    %v3056 = vunpack.c.h.b16 %v2935
    %v3057 = vunpack.c.l.b16 %v2936
    %v3058 = vunpack.c.h.b16 %v2936
    %v3059 = vunpack.c.l.b16 %v2937
    %v3060 = vunpack.c.h.b16 %v2937
    %v3061 = vunpack.c.l.b16 %v2938
    %v3062 = vunpack.c.h.b16 %v2938
    %v3063 = vunpack.c.l.b16 %v2939
    %v3064 = vunpack.c.h.b16 %v2939
    %v3065 = vunpack.c.l.b16 %v2940
    %v3066 = vunpack.c.h.b16 %v2940
    %v3067 = vunpack.c.l.b16 %v2941
    %v3068 = vunpack.c.h.b16 %v2941
    %v3069 = vunpack.c.l.b16 %v2942
    %v3070 = vunpack.c.h.b16 %v2942
    %v3071 = vunpack.c.l.b16 %v2943
    %v3072 = vunpack.c.h.b16 %v2943
    %v3073 = vunpack.c.l.b16 %v2944
    %v3074 = vunpack.c.h.b16 %v2944
    %v3075 = vunpack.c.l.b16 %v2945
    %v3076 = vunpack.c.h.b16 %v2945
    %v3077 = vunpack.c.l.b16 %v2946
    %v3078 = vunpack.c.h.b16 %v2946
    %v3079 = vunpack.c.l.b16 %v2947
    %v3080 = vunpack.c.h.b16 %v2947
    %v3081 = vunpack.c.l.b16 %v2948
    %v3082 = vunpack.c.h.b16 %v2948
    %v3083 = vunpack.c.l.b16 %v2949
    %v3084 = vunpack.c.h.b16 %v2949
    %v3085 = vunpack.c.l.b16 %v2950
    %v3086 = vunpack.c.h.b16 %v2950
    %v3087 = vunpack.c.l.b16 %v2951
    %v3088 = vunpack.c.h.b16 %v2951
    %v3089 = vunpack.c.l.b16 %v2952
    %v3090 = vunpack.c.h.b16 %v2952
    %v3091 = vunpack.c.l.b16 %v2953
    %v3092 = vunpack.c.h.b16 %v2953
    %v3093 = vunpack.c.l.b16 %v2954
    %v3094 = vunpack.c.h.b16 %v2954
    %v3095 = vunpack.c.l.b16 %v2955
    %v3096 = vunpack.c.h.b16 %v2955
    %v3097 = vunpack.c.l.b16 %v2956
    %v3098 = vunpack.c.h.b16 %v2956
    %v3099 = vunpack.c.l.b16 %v2957
    %v3100 = vunpack.c.h.b16 %v2957
    %v3101 = vunpack.c.l.b16 %v2958
    %v3102 = vunpack.c.h.b16 %v2958
    %v3103 = vunpack.c.l.b16 %v2959
    %v3104 = vunpack.c.h.b16 %v2959
    %v3105 = vunpack.c.l.b16 %v2960
    %v3106 = vunpack.c.h.b16 %v2960
    %v3107 = vunpack.c.l.b16 %v2961
    %v3108 = vunpack.c.h.b16 %v2961
    %v3109 = vunpack.c.l.b16 %v2962
    %v3110 = vunpack.c.h.b16 %v2962
    %v3111 = vunpack.c.l.b16 %v2963
    %v3112 = vunpack.c.h.b16 %v2963
    %v3113 = vunpack.c.l.b16 %v2964
    %v3114 = vunpack.c.h.b16 %v2964
    %v3115 = vunpack.c.l.b16 %v2965
    %v3116 = vunpack.c.h.b16 %v2965
    %v3117 = vunpack.c.l.b16 %v2966
    %v3118 = vunpack.c.h.b16 %v2966
    %v3119 = vunpack.c.l.b16 %v2967
    %v3120 = vunpack.c.h.b16 %v2967
    %v3121 = vunpack.c.l.b16 %v2968
    %v3122 = vunpack.c.h.b16 %v2968
    %v3123 = vunpack.c.l.b16 %v2969
    %v3124 = vunpack.c.h.b16 %v2969
    %v3125 = vunpack.c.l.b16 %v2970
    %v3126 = vunpack.c.h.b16 %v2970
    %v3127 = vpack.c.b16 %v3033, %v3031
    %v3128 = vpack.c.b16 %v3034, %v3032
    %v3129 = vpack.c.b16 %v3037, %v3035
    %v3130 = vpack.c.b16 %v3038, %v3036
    %v3131 = vpack.c.b16 %v3041, %v3039
    %v3132 = vpack.c.b16 %v3042, %v3040
    %v3133 = vpack.c.b16 %v3045, %v3043
    %v3134 = vpack.c.b16 %v3046, %v3044
    %v3135 = vpack.c.b16 %v3049, %v3047
    %v3136 = vpack.c.b16 %v3050, %v3048
    %v3137 = vpack.c.b16 %v3053, %v3051
    %v3138 = vpack.c.b16 %v3054, %v3052
    %v3139 = vpack.c.b16 %v3057, %v3055
    %v3140 = vpack.c.b16 %v3058, %v3056
    %v3141 = vpack.c.b16 %v3061, %v3059
    %v3142 = vpack.c.b16 %v3062, %v3060
    %v3143 = vpack.c.b16 %v3065, %v3063
    %v3144 = vpack.c.b16 %v3066, %v3064
    %v3145 = vpack.c.b16 %v3069, %v3067
    %v3146 = vpack.c.b16 %v3070, %v3068
    %v3147 = vpack.c.b16 %v3073, %v3071
    %v3148 = vpack.c.b16 %v3074, %v3072
    %v3149 = vpack.c.b16 %v3077, %v3075
    %v3150 = vpack.c.b16 %v3078, %v3076
    %v3151 = vpack.c.b16 %v3081, %v3079
    %v3152 = vpack.c.b16 %v3082, %v3080
    %v3153 = vpack.c.b16 %v3085, %v3083
    %v3154 = vpack.c.b16 %v3086, %v3084
    %v3155 = vpack.c.b16 %v3089, %v3087
    %v3156 = vpack.c.b16 %v3090, %v3088
    %v3157 = vpack.c.b16 %v3093, %v3091
    %v3158 = vpack.c.b16 %v3094, %v3092
    %v3159 = vpack.c.b16 %v3097, %v3095
    %v3160 = vpack.c.b16 %v3098, %v3096
    %v3161 = vpack.c.b16 %v3101, %v3099
    %v3162 = vpack.c.b16 %v3102, %v3100
    %v3163 = vpack.c.b16 %v3105, %v3103
    %v3164 = vpack.c.b16 %v3106, %v3104
    %v3165 = vpack.c.b16 %v3109, %v3107
    %v3166 = vpack.c.b16 %v3110, %v3108
    %v3167 = vpack.c.b16 %v3113, %v3111
    %v3168 = vpack.c.b16 %v3114, %v3112
    %v3169 = vpack.c.b16 %v3117, %v3115
    %v3170 = vpack.c.b16 %v3118, %v3116
    %v3171 = vpack.c.b16 %v3121, %v3119
    %v3172 = vpack.c.b16 %v3122, %v3120
    %v3173 = vpack.c.b16 %v3125, %v3123
    %v3174 = vpack.c.b16 %v3126, %v3124
    %3223 = vmatprep.subr.bf16.mxu0 %v3128
    %3224 = vmatpush1.bf16.msra.mxu0 %v3127
    %3225 = vmatprep.subr.bf16.mxu0 %v3130
    %3226 = vmatpush1.bf16.msra.mxu0 %v3129
    %3227 = vmatprep.subr.bf16.mxu0 %v3132
    %3228 = vmatpush1.bf16.msra.mxu0 %v3131
    %3229 = vmatprep.subr.bf16.mxu0 %v3134
    %3230 = vmatpush1.bf16.msra.mxu0 %v3133
    %3231 = vmatprep.subr.bf16.mxu0 %v3136
    %3232 = vmatpush1.bf16.msra.mxu0 %v3135
    %3233 = vmatprep.subr.bf16.mxu0 %v3138
    %3234 = vmatpush1.bf16.msra.mxu0 %v3137
    %3235 = vmatprep.subr.bf16.mxu0 %v3140
    %3236 = vmatpush1.bf16.msra.mxu0 %v3139
    %3237 = vmatprep.subr.bf16.mxu0 %v3142
    %3238 = vmatpush1.bf16.msra.mxu0 %v3141
    %3239 = vmatprep.subr.bf16.mxu0 %v3144
    %3240 = vmatpush1.bf16.msra.mxu0 %v3143
    %3241 = vmatprep.subr.bf16.mxu0 %v3146
    %3242 = vmatpush1.bf16.msra.mxu0 %v3145
    %3243 = vmatprep.subr.bf16.mxu0 %v3148
    %3244 = vmatpush1.bf16.msra.mxu0 %v3147
    %3245 = vmatprep.subr.bf16.mxu0 %v3150
    %3246 = vmatpush1.bf16.msra.mxu0 %v3149
    %3247 = vmatprep.subr.bf16.mxu0 %v3152
    %3248 = vmatpush1.bf16.msra.mxu0 %v3151
    %3249 = vmatprep.subr.bf16.mxu0 %v3154
    %3250 = vmatpush1.bf16.msra.mxu0 %v3153
    %3251 = vmatprep.subr.bf16.mxu0 %v3156
    %3252 = vmatpush1.bf16.msra.mxu0 %v3155
    %3253 = vmatprep.subr.bf16.mxu0 %v3158
    %3254 = vmatpush1.bf16.msra.mxu0 %v3157
    %3255 = vmatprep.mubr.bf16.mxu0 %v2900
    %3256 = vmatmul.mubr.bf16.gmra.mrb[0].mxu0 %v2899
    %v3257 = vpop.f32.mrb[0].mxu0
    %v3258 = vadd.f32 %v2976, %v3257
    %v3259 = vpop.f32.mrb[0].mxu0
    %v3260 = vadd.f32 %v2980, %v3259
    %v3261 = vpop.f32.mrb[0].mxu0
    %v3262 = vadd.f32 %v2976, %v3261
    %v3263 = vpop.f32.mrb[0].mxu0
    %v3264 = vadd.f32 %v2980, %v3263
    %3265 = vmatprep.mubr.bf16.mxu0 %v2903
    %3266 = vmatmul.mubr.bf16.gmra.mrb[0].mxu0 %v2902
    %v3267 = vpop.f32.mrb[0].mxu0
    %v3268 = vadd.f32 %v2976, %v3267
    %v3269 = vpop.f32.mrb[0].mxu0
    %v3270 = vadd.f32 %v2980, %v3269
    %v3271 = vpop.f32.mrb[0].mxu0
    %v3272 = vadd.f32 %v2976, %v3271
    %v3273 = vpop.f32.mrb[0].mxu0
    %v3274 = vadd.f32 %v2980, %v3273
    %3275 = vmatprep.mubr.bf16.mxu0 %v2906
    %3276 = vmatmul.mubr.bf16.gmra.mrb[0].mxu0 %v2905
    %v3277 = vpop.f32.mrb[0].mxu0
    %v3278 = vadd.f32 %v2976, %v3277
    %v3279 = vpop.f32.mrb[0].mxu0
    %v3280 = vadd.f32 %v2980, %v3279
    %v3281 = vpop.f32.mrb[0].mxu0
    %v3282 = vadd.f32 %v2976, %v3281
    %v3283 = vpop.f32.mrb[0].mxu0
    %v3284 = vadd.f32 %v2980, %v3283
    %3285 = vmatprep.mubr.bf16.mxu0 %v2909
    %3286 = vmatmul.mubr.bf16.gmra.mrb[0].mxu0 %v2908
    %v3287 = vpop.f32.mrb[0].mxu0
    %v3288 = vadd.f32 %v2976, %v3287
    %v3289 = vpop.f32.mrb[0].mxu0
    %v3290 = vadd.f32 %v2980, %v3289
    %v3291 = vpop.f32.mrb[0].mxu0
    %v3292 = vadd.f32 %v2976, %v3291
    %v3293 = vpop.f32.mrb[0].mxu0
    %v3294 = vadd.f32 %v2980, %v3293
    %3295 = vmatprep.mubr.bf16.mxu0 %v2912
    %3296 = vmatmul.mubr.bf16.gmra.mrb[0].mxu0 %v2911
    %v3297 = vpop.f32.mrb[0].mxu0
    %v3298 = vadd.f32 %v2976, %v3297
    %v3299 = vpop.f32.mrb[0].mxu0
    %v3300 = vadd.f32 %v2980, %v3299
    %v3301 = vpop.f32.mrb[0].mxu0
    %v3302 = vadd.f32 %v2976, %v3301
    %v3303 = vpop.f32.mrb[0].mxu0
    %v3304 = vadd.f32 %v2980, %v3303
    %3305 = vmatprep.mubr.bf16.mxu0 %v2915
    %3306 = vmatmul.mubr.bf16.gmra.mrb[0].mxu0 %v2914
    %v3307 = vpop.f32.mrb[0].mxu0
    %v3308 = vadd.f32 %v2976, %v3307
    %v3309 = vpop.f32.mrb[0].mxu0
    %v3310 = vadd.f32 %v2980, %v3309
    %v3311 = vpop.f32.mrb[0].mxu0
    %v3312 = vadd.f32 %v2976, %v3311
    %v3313 = vpop.f32.mrb[0].mxu0
    %v3314 = vadd.f32 %v2980, %v3313
    %3315 = vmatprep.mubr.bf16.mxu0 %v2918
    %3316 = vmatmul.mubr.bf16.gmra.mrb[0].mxu0 %v2917
    %v3317 = vpop.f32.mrb[0].mxu0
    %v3318 = vadd.f32 %v2976, %v3317
    %v3319 = vpop.f32.mrb[0].mxu0
    %v3320 = vadd.f32 %v2980, %v3319
    %v3321 = vpop.f32.mrb[0].mxu0
    %v3322 = vadd.f32 %v2976, %v3321
    %v3323 = vpop.f32.mrb[0].mxu0
    %v3324 = vadd.f32 %v2980, %v3323
    %3325 = vmatprep.mubr.bf16.mxu0 %v2921
    %3326 = vmatmul.mubr.bf16.gmra.mrb[0].mxu0 %v2920
    %v3327 = vpop.f32.mrb[0].mxu0
    %v3328 = vadd.f32 %v2976, %v3327
    %v3329 = vpop.f32.mrb[0].mxu0
    %v3330 = vadd.f32 %v2980, %v3329
    %v3331 = vpop.f32.mrb[0].mxu0
    %v3332 = vadd.f32 %v2976, %v3331
    %v3333 = vpop.f32.mrb[0].mxu0
    %v3334 = vadd.f32 %v2980, %v3333
    %3335 = vdwg.mxu0
    %3336 = vmatprep.subr.bf16.mxu0 %v3160
    %3337 = vmatpush1.bf16.msra.mxu0 %v3159
    %3338 = vmatprep.subr.bf16.mxu0 %v3162
    %3339 = vmatpush1.bf16.msra.mxu0 %v3161
    %3340 = vmatprep.subr.bf16.mxu0 %v3164
    %3341 = vmatpush1.bf16.msra.mxu0 %v3163
    %3342 = vmatprep.subr.bf16.mxu0 %v3166
    %3343 = vmatpush1.bf16.msra.mxu0 %v3165
    %3344 = vmatprep.subr.bf16.mxu0 %v3168
    %3345 = vmatpush1.bf16.msra.mxu0 %v3167
    %3346 = vmatprep.subr.bf16.mxu0 %v3170
    %3347 = vmatpush1.bf16.msra.mxu0 %v3169
    %3348 = vmatprep.subr.bf16.mxu0 %v3172
    %3349 = vmatpush1.bf16.msra.mxu0 %v3171
    %3350 = vmatprep.subr.bf16.mxu0 %v3174
    %3351 = vmatpush1.bf16.msra.mxu0 %v3173
    %3352 = vmatprep.subr.bf16.mxu0 0
    %3353 = vmatpush1.bf16.msra.mxu0 0
    %3354 = vmatprep.subr.bf16.mxu0 0
    %3355 = vmatpush1.bf16.msra.mxu0 0
    %3356 = vmatprep.subr.bf16.mxu0 0
    %3357 = vmatpush1.bf16.msra.mxu0 0
    %3358 = vmatprep.subr.bf16.mxu0 0
    %3359 = vmatpush1.bf16.msra.mxu0 0
    %3360 = vmatprep.subr.bf16.mxu0 0
    %3361 = vmatpush1.bf16.msra.mxu0 0
    %3362 = vmatprep.subr.bf16.mxu0 0
    %3363 = vmatpush1.bf16.msra.mxu0 0
    %3364 = vmatprep.subr.bf16.mxu0 0
    %3365 = vmatpush1.bf16.msra.mxu0 0
    %3366 = vmatprep.subr.bf16.mxu0 0
    %3367 = vmatpush1.bf16.msra.mxu0 0
    %3368 = vmatprep.mubr.bf16.mxu0 0
    %3369 = vmatmul.mubr.bf16.gmra.mrb[0].mxu0 %v2901
    %v3370 = vpop.f32.mrb[0].mxu0
    %v3371 = vadd.f32 %v3258, %v3370
    %v3372 = vpop.f32.mrb[0].mxu0
    %v3373 = vadd.f32 %v3260, %v3372
    %v3374 = vpop.f32.mrb[0].mxu0
    %v3375 = vadd.f32 %v3262, %v3374
    %v3376 = vpop.f32.mrb[0].mxu0
    %v3377 = vadd.f32 %v3264, %v3376
    %3378 = vmatprep.mubr.bf16.mxu0 0
    %3379 = vmatmul.mubr.bf16.gmra.mrb[0].mxu0 %v2904
    %v3380 = vpop.f32.mrb[0].mxu0
    %v3381 = vadd.f32 %v3268, %v3380
    %v3382 = vpop.f32.mrb[0].mxu0
    %v3383 = vadd.f32 %v3270, %v3382
    %v3384 = vpop.f32.mrb[0].mxu0
    %v3385 = vadd.f32 %v3272, %v3384
    %v3386 = vpop.f32.mrb[0].mxu0
    %v3387 = vadd.f32 %v3274, %v3386
    %3388 = vmatprep.mubr.bf16.mxu0 0
    %3389 = vmatmul.mubr.bf16.gmra.mrb[0].mxu0 %v2907
    %v3390 = vpop.f32.mrb[0].mxu0
    %v3391 = vadd.f32 %v3278, %v3390
    %v3392 = vpop.f32.mrb[0].mxu0
    %v3393 = vadd.f32 %v3280, %v3392
    %v3394 = vpop.f32.mrb[0].mxu0
    %v3395 = vadd.f32 %v3282, %v3394
    %v3396 = vpop.f32.mrb[0].mxu0
    %v3397 = vadd.f32 %v3284, %v3396
    %3398 = vmatprep.mubr.bf16.mxu0 0
    %3399 = vmatmul.mubr.bf16.gmra.mrb[0].mxu0 %v2910
    %v3400 = vpop.f32.mrb[0].mxu0
    %v3401 = vadd.f32 %v3288, %v3400
    %v3402 = vpop.f32.mrb[0].mxu0
    %v3403 = vadd.f32 %v3290, %v3402
    %v3404 = vpop.f32.mrb[0].mxu0
    %v3405 = vadd.f32 %v3292, %v3404
    %v3406 = vpop.f32.mrb[0].mxu0
    %v3407 = vadd.f32 %v3294, %v3406
    %3408 = vmatprep.mubr.bf16.mxu0 0
    %3409 = vmatmul.mubr.bf16.gmra.mrb[0].mxu0 %v2913
    %v3410 = vpop.f32.mrb[0].mxu0
    %v3411 = vadd.f32 %v3298, %v3410
    %v3412 = vpop.f32.mrb[0].mxu0
    %v3413 = vadd.f32 %v3300, %v3412
    %v3414 = vpop.f32.mrb[0].mxu0
    %v3415 = vadd.f32 %v3302, %v3414
    %v3416 = vpop.f32.mrb[0].mxu0
    %v3417 = vadd.f32 %v3304, %v3416
    %3418 = vmatprep.mubr.bf16.mxu0 0
    %3419 = vmatmul.mubr.bf16.gmra.mrb[0].mxu0 %v2916
    %v3420 = vpop.f32.mrb[0].mxu0
    %v3421 = vadd.f32 %v3308, %v3420
    %v3422 = vpop.f32.mrb[0].mxu0
    %v3423 = vadd.f32 %v3310, %v3422
    %v3424 = vpop.f32.mrb[0].mxu0
    %v3425 = vadd.f32 %v3312, %v3424
    %v3426 = vpop.f32.mrb[0].mxu0
    %v3427 = vadd.f32 %v3314, %v3426
    %3428 = vmatprep.mubr.bf16.mxu0 0
    %3429 = vmatmul.mubr.bf16.gmra.mrb[0].mxu0 %v2919
    %v3430 = vpop.f32.mrb[0].mxu0
    %v3431 = vadd.f32 %v3318, %v3430
    %v3432 = vpop.f32.mrb[0].mxu0
    %v3433 = vadd.f32 %v3320, %v3432
    %v3434 = vpop.f32.mrb[0].mxu0
    %v3435 = vadd.f32 %v3322, %v3434
    %v3436 = vpop.f32.mrb[0].mxu0
    %v3437 = vadd.f32 %v3324, %v3436
    %3438 = vmatprep.mubr.bf16.mxu0 0
    %3439 = vmatmul.mubr.bf16.gmra.mrb[0].mxu0 %v2922
    %v3440 = vpop.f32.mrb[0].mxu0
    %v3441 = vadd.f32 %v3328, %v3440
    %v3442 = vpop.f32.mrb[0].mxu0
    %v3443 = vadd.f32 %v3330, %v3442
    %v3444 = vpop.f32.mrb[0].mxu0
    %v3445 = vadd.f32 %v3332, %v3444
    %v3446 = vpop.f32.mrb[0].mxu0
    %v3447 = vadd.f32 %v3334, %v3446
    %3448 = vdwg.mxu0
    %3449 = vst [vmem:[#allocation7] sm:$0xff] %v3371
    %3450 = vst [vmem:[#allocation7 + $0x8] sm:$0xff] %v3373
    %3451 = vst [vmem:[#allocation7 + $0x10] sm:$0xff] %v3375
    %3452 = vst [vmem:[#allocation7 + $0x18] sm:$0xff] %v3377
    %3453 = vst [vmem:[#allocation7 + $0x20] sm:$0xff] %v3381
    %3454 = vst [vmem:[#allocation7 + $0x28] sm:$0xff] %v3383
    %3455 = vst [vmem:[#allocation7 + $0x30] sm:$0xff] %v3385
    %3456 = vst [vmem:[#allocation7 + $0x38] sm:$0xff] %v3387
    %3457 = vst [vmem:[#allocation7 + $0x40] sm:$0xff] %v3391
    %3458 = vst [vmem:[#allocation7 + $0x48] sm:$0xff] %v3393
    %3459 = vst [vmem:[#allocation7 + $0x50] sm:$0xff] %v3395
    %3460 = vst [vmem:[#allocation7 + $0x58] sm:$0xff] %v3397
    %3461 = vst [vmem:[#allocation7 + $0x60] sm:$0xff] %v3401
    %3462 = vst [vmem:[#allocation7 + $0x68] sm:$0xff] %v3403
    %3463 = vst [vmem:[#allocation7 + $0x70] sm:$0xff] %v3405
    %3464 = vst [vmem:[#allocation7 + $0x78] sm:$0xff] %v3407
    %3465 = vst [vmem:[#allocation7 + $0x80] sm:$0xff] %v3411
    %3466 = vst [vmem:[#allocation7 + $0x88] sm:$0xff] %v3413
    %3467 = vst [vmem:[#allocation7 + $0x90] sm:$0xff] %v3415
    %3468 = vst [vmem:[#allocation7 + $0x98] sm:$0xff] %v3417
    %3469 = vst [vmem:[#allocation7 + $0xa0] sm:$0xff] %v3421
    %3470 = vst [vmem:[#allocation7 + $0xa8] sm:$0xff] %v3423
    %3471 = vst [vmem:[#allocation7 + $0xb0] sm:$0xff] %v3425
    %3472 = vst [vmem:[#allocation7 + $0xb8] sm:$0xff] %v3427
    %3473 = vst [vmem:[#allocation7 + $0xc0] sm:$0xff] %v3431
    %3474 = vst [vmem:[#allocation7 + $0xc8] sm:$0xff] %v3433
    %3475 = vst [vmem:[#allocation7 + $0xd0] sm:$0xff] %v3435
    %3476 = vst [vmem:[#allocation7 + $0xd8] sm:$0xff] %v3437
    %3477 = vst [vmem:[#allocation7 + $0xe0] sm:$0xff] %v3441
    %3478 = vst [vmem:[#allocation7 + $0xe8] sm:$0xff] %v3443
    %3479 = vst [vmem:[#allocation7 + $0xf0] sm:$0xff] %v3445
    %3480 = vst [vmem:[#allocation7 + $0xf8] sm:$0xff] %v3447
    // Predicated region
    $region46: #{expander_forward.1} parent=1 // pred_check
      _
    $region47: #{expander_forward.1} parent=1 // pred_check_branch
      %3482 = sbr.rel (0) target = $region49
    $region48: #{expander_forward.1} parent=1 // pred_region
      %s3484 = ssub.s32 4096, 4096
      %3485 = vsyncadd [#allocation4], %s3484
      %s3486 = sshll.u32 [#allocation7], 4
      %s3487 = int_to_ptr.vmem [resolvable:$true] %s3486
      %3492 = dma.vmem_to_hbm [thread:$0]  %s3487, 4096, %s9, [#allocation4], 256, 256, 16
    $region49: #{expander_forward.1} parent=1 // pred_fallthru
      _
    // Predicated region
    $region50: #{expander_forward.1} parent=1 // pred_check
      _
    $region51: #{expander_forward.1} parent=1 // pred_check_branch
      %3494 = sbr.rel (0) target = $region53
    $region52: #{expander_forward.1} parent=1 // pred_region
      %3495 = dma.done [#allocation4], 4096
    $region53: #{expander_forward.1} parent=1 // pred_fallthru
      _
    %3496 = vsyncpa [#allocation3], 1
    %3497 = vsyncpa [#allocation6], 1
    %3498 = vsyncpa [#allocation4], 1

</llo_original>
